<compile_context>
chip_gen: v7x
topology: tpu7x:2x2x1
jax: 0.10.0
libtpu: 0.0.40
codegen_flags: <defaults>
</compile_context>

<pallas_src>
import functools

import jax
import jax.numpy as jnp
from jax.experimental import pallas as pl
from jax.experimental.pallas import tpu as pltpu

LRELU_SLOPE = 0.01      # nn.LeakyReLU() default
BN_EPS = 1e-5           # nn.BatchNorm2d default
NUM_EMBEDDINGS = 32
EMBEDDING_DIM = 64

LANE = 128
_MAX_TILE_M = 512
_VMEM_LIMIT_BYTES = 32 * 1024 * 1024   # explicit budget; fits v7x's 64 MiB VMEM


def _round_up(x, m):
    return (x + m - 1) // m * m


def _pick_tile_m(m):
    # bf16 operands -> second-minor block dim must be a multiple of 16.
    return min(_MAX_TILE_M, _round_up(m, 16))


def _compiler_params():
    return pltpu.CompilerParams(
        dimension_semantics=("parallel",),       # shard M across TCs on v7x
        vmem_limit_bytes=_VMEM_LIMIT_BYTES)


# ----------------------------------------------------------------------------
# Pallas kernels
# ----------------------------------------------------------------------------

def _mm_bias_stats_kernel(a_ref, w_ref, b_ref, y_ref, st_ref, *, tm, m_true):
    """Pass 1: Y = A @ W + b (bf16 x bf16 -> f32 acc) + masked BN partials."""
    y = jnp.dot(a_ref[...], w_ref[...], preferred_element_type=jnp.float32)
    y = y + b_ref[...]
    y_ref[...] = y
    # Per-tile partial sum / sum-of-squares for BatchNorm batch statistics.
    # Rows >= m_true are zero-padded patch rows and must not contribute.
    row = pl.program_id(0) * tm + jax.lax.broadcasted_iota(jnp.int32, (tm, 1), 0)
    valid = (row < m_true).astype(jnp.float32)
    yv = y * valid
    s = jnp.sum(yv, axis=0, keepdims=True)            # (1, C)
    ss = jnp.sum(yv * yv, axis=0, keepdims=True)      # (1, C)
    st_ref[...] = jnp.concatenate([s, ss], axis=0).reshape(1, 2, s.shape[1])


def _scale_shift_act_kernel(y_ref, sc_ref, sh_ref, o_ref, *, act):
    """Pass 2: per-channel affine (folded BatchNorm) + activation, f32 math."""
    t = y_ref[...] * sc_ref[...] + sh_ref[...]
    if act == "lrelu":
        t = jnp.where(t >= 0, t, LRELU_SLOPE * t)
    elif act == "tanh":
        t = jnp.tanh(t)
    o_ref[...] = t.astype(o_ref.dtype)


def _mm_bias_tanh_kernel(a_ref, w_ref, b_ref, o_ref):
    """Final layer: matmul + bias + tanh fused (no BatchNorm)."""
    y = jnp.dot(a_ref[...], w_ref[...], preferred_element_type=jnp.float32)
    o_ref[...] = jnp.tanh(y + b_ref[...])


def _vq_kernel(x_ref, e_ref, esq_ref, q_ref, sse_ref, *, tm, m_true):
    """Nearest-codebook lookup + gather + masked per-tile sum of squared error.

    Kept in f32 so the argmin (first-index tie-break) matches torch.argmin.
    Padded codebook rows carry a huge squared norm so they are never selected;
    padded D columns are zero on both sides and cancel out.
    """
    x = x_ref[...]                                     # (tm, Dp)
    e = e_ref[...]                                     # (Kp, Dp)
    sx = jnp.sum(x * x, axis=1, keepdims=True)         # (tm, 1)
    xe = jax.lax.dot_general(x, e, (((1,), (1,)), ((), ())),
                             preferred_element_type=jnp.float32)   # (tm, Kp)
    d = sx - 2.0 * xe + esq_ref[...]
    min_d = jnp.min(d, axis=1, keepdims=True)
    kp = d.shape[1]
    col = jax.lax.broadcasted_iota(jnp.int32, d.shape, 1)
    idx = jnp.min(jnp.where(d <= min_d, col, kp), axis=1, keepdims=True)
    one_hot = (col == idx).astype(jnp.float32)         # (tm, Kp)
    q = jnp.dot(one_hot, e, preferred_element_type=jnp.float32)    # (tm, Dp)
    q_ref[...] = q
    row = pl.program_id(0) * tm + jax.lax.broadcasted_iota(jnp.int32, (tm, 1), 0)
    valid = (row < m_true).astype(jnp.float32)
    err = (q - x) * valid
    sse_ref[...] = jnp.broadcast_to(jnp.sum(err * err), sse_ref.shape)


# ----------------------------------------------------------------------------
# pallas_call wrappers
# ----------------------------------------------------------------------------

def _pad_rows(a, m_pad):
    m = a.shape[0]
    if m_pad == m:
        return a
    return jnp.pad(a, ((0, m_pad - m), (0, 0)))


def _matmul_bias_stats(patches, w, b):
    """patches (M, K) bf16; w (K, Cp) bf16; b (1, Cp) f32 ->
    Y (Mp, Cp) f32 and per-tile BN partials (nt, 2, Cp) f32."""
    m_true, k = patches.shape
    c_pad = w.shape[1]
    tm = _pick_tile_m(m_true)
    m_pad = _round_up(m_true, tm)
    nt = m_pad // tm
    patches = _pad_rows(patches, m_pad)
    kernel = functools.partial(_mm_bias_stats_kernel, tm=tm, m_true=m_true)
    y, st = pl.pallas_call(
        kernel,
        out_shape=(jax.ShapeDtypeStruct((m_pad, c_pad), jnp.float32),
                   jax.ShapeDtypeStruct((nt, 2, c_pad), jnp.float32)),
        grid=(nt,),
        in_specs=[pl.BlockSpec((tm, k), lambda i: (i, 0)),
                  pl.BlockSpec((k, c_pad), lambda i: (0, 0)),
                  pl.BlockSpec((1, c_pad), lambda i: (0, 0))],
        out_specs=(pl.BlockSpec((tm, c_pad), lambda i: (i, 0)),
                   pl.BlockSpec((1, 2, c_pad), lambda i: (i, 0, 0))),
        compiler_params=_compiler_params(),
    )(patches, w, b)
    return y, st


def _scale_shift_act(y, scale, shift, act, out_dtype):
    m_pad, c_pad = y.shape
    tm = min(_MAX_TILE_M, m_pad)
    nt = m_pad // tm
    kernel = functools.partial(_scale_shift_act_kernel, act=act)
    return pl.pallas_call(
        kernel,
        out_shape=jax.ShapeDtypeStruct((m_pad, c_pad), out_dtype),
        grid=(nt,),
        in_specs=[pl.BlockSpec((tm, c_pad), lambda i: (i, 0)),
                  pl.BlockSpec((1, c_pad), lambda i: (0, 0)),
                  pl.BlockSpec((1, c_pad), lambda i: (0, 0))],
        out_specs=pl.BlockSpec((tm, c_pad), lambda i: (i, 0)),
        compiler_params=_compiler_params(),
    )(y, scale, shift)


# ----------------------------------------------------------------------------
# JAX glue: im2col, BN folding, layer wrappers
# ----------------------------------------------------------------------------

def _im2col(x, kh, kw, stride, pad):
    """NHWC -> (N*OH*OW, kh*kw*C) bf16 patches (feature order: dy, dx, c)."""
    # TODO(synk): assemble the kh*kw shifted windows inside the matmul kernel
    # (memory_space=pl.ANY + manual DMA) to avoid the im2col HBM expansion.
    n, h, w, c = x.shape
    if pad:
        x = jnp.pad(x, ((0, 0), (pad, pad), (pad, pad), (0, 0)))
    oh = (h + 2 * pad - kh) // stride + 1
    ow = (w + 2 * pad - kw) // stride + 1
    cols = []
    for i in range(kh):
        for j in range(kw):
            cols.append(x[:, i:i + (oh - 1) * stride + 1:stride,
                           j:j + (ow - 1) * stride + 1:stride, :])
    patches = jnp.stack(cols, axis=3)            # (N, OH, OW, kh*kw, C)
    return patches.reshape(n * oh * ow, kh * kw * c), (n, oh, ow)


def _bn_scale_shift(s, ss, count, gamma, beta):
    mean = s / count
    var = jnp.maximum(ss / count - mean * mean, 0.0)   # biased var (PyTorch BN)
    scale = gamma * jax.lax.rsqrt(var + BN_EPS)
    shift = beta - mean * scale
    return scale, shift


def _pad_row_vec(v, c_pad):
    return jnp.pad(v, (0, c_pad - v.shape[0])).reshape(1, c_pad)


def conv_bn_lrelu_layer(x, layer, kh, kw, stride, pad, out_dtype):
    patches, (n, oh, ow) = _im2col(x, kh, kw, stride, pad)
    m_true = patches.shape[0]
    y, st = _matmul_bias_stats(patches, layer["w"], layer["b"])
    cout = layer["cout"]
    c_pad = y.shape[1]
    s = jnp.sum(st[:, 0, :cout], axis=0)
    ss = jnp.sum(st[:, 1, :cout], axis=0)
    scale, shift = _bn_scale_shift(s, ss, jnp.float32(m_true),
                                   layer["gamma"], layer["beta"])
    o = _scale_shift_act(y, _pad_row_vec(scale, c_pad),
                         _pad_row_vec(shift, c_pad), "lrelu", out_dtype)
    return o[:m_true, :cout].reshape(n, oh, ow, cout)


def deconv_bn_lrelu_layer(x, layer, out_dtype):
    """ConvTranspose2d(k=4,s=2,p=1) + BN + LeakyReLU via sub-pixel decomposition:
    one stride-1 2x2 conv over the (1,1)-padded input computes all 4 output
    phases per window; phases are interleaved afterwards."""
    n, h, w, _ = x.shape
    cout = layer["cout"]
    xp = jnp.pad(x, ((0, 0), (1, 1), (1, 1), (0, 0)))
    patches, (_, oh, ow) = _im2col(xp, 2, 2, 1, 0)     # oh = h+1, ow = w+1
    m_true = patches.shape[0]
    y, _ = _matmul_bias_stats(patches, layer["w"], layer["b"])
    c_pad = y.shape[1]
    c4 = 4 * cout
    # BatchNorm stats over the *real* interleaved output positions only.
    # Boundary windows exist in y but not in the output, so the in-kernel
    # partials cannot be used; a cheap XLA reduce over the phase slices is.
    # TODO(synk): fold a per-row phase-validity mask into pass 1 so these
    # partial sums come out of the matmul pass as well.
    yv = y[:m_true, :c4].reshape(n, oh, ow, 4, cout)
    phases = (yv[:, :h, :w, 0], yv[:, :h, 1:, 1],
              yv[:, 1:, :w, 2], yv[:, 1:, 1:, 3])
    s = sum(p.sum(axis=(0, 1, 2)) for p in phases)
    ss = sum((p * p).sum(axis=(0, 1, 2)) for p in phases)
    count = jnp.float32(n * (2 * h) * (2 * w))
    scale, shift = _bn_scale_shift(s, ss, count, layer["gamma"], layer["beta"])
    o = _scale_shift_act(y, _pad_row_vec(jnp.tile(scale, 4), c_pad),
                         _pad_row_vec(jnp.tile(shift, 4), c_pad),
                         "lrelu", out_dtype)
    ov = o[:m_true, :c4].reshape(n, oh, ow, 4, cout)
    top = jnp.stack([ov[:, :h, :w, 0], ov[:, :h, 1:, 1]], axis=3)   # px axis
    bot = jnp.stack([ov[:, 1:, :w, 2], ov[:, 1:, 1:, 3]], axis=3)
    out = jnp.stack([top, bot], axis=2)                             # (n,h,2,w,2,c)
    return out.reshape(n, 2 * h, 2 * w, cout)


def conv_tanh_layer(x, layer, kh, kw, stride, pad):
    patches, (n, oh, ow) = _im2col(x, kh, kw, stride, pad)
    m_true, k = patches.shape
    c_pad = layer["w"].shape[1]
    tm = _pick_tile_m(m_true)
    m_pad = _round_up(m_true, tm)
    nt = m_pad // tm
    patches = _pad_rows(patches, m_pad)
    o = pl.pallas_call(
        _mm_bias_tanh_kernel,
        out_shape=jax.ShapeDtypeStruct((m_pad, c_pad), jnp.float32),
        grid=(nt,),
        in_specs=[pl.BlockSpec((tm, k), lambda i: (i, 0)),
                  pl.BlockSpec((k, c_pad), lambda i: (0, 0)),
                  pl.BlockSpec((1, c_pad), lambda i: (0, 0))],
        out_specs=pl.BlockSpec((tm, c_pad), lambda i: (i, 0)),
        compiler_params=_compiler_params(),
    )(patches, layer["w"], layer["b"])
    cout = layer["cout"]
    return o[:m_true, :cout].reshape(n, oh, ow, cout)


def vector_quantize(flat_x, cb):
    m_true, d = flat_x.shape
    e, esq = cb["e"], cb["esq"]          # (Kp, Dp) f32, (1, Kp) f32
    kp, dp = e.shape
    x = jnp.pad(flat_x.astype(jnp.float32), ((0, 0), (0, dp - d)))
    tm = _pick_tile_m(m_true)
    m_pad = _round_up(m_true, tm)
    nt = m_pad // tm
    x = _pad_rows(x, m_pad)
    kernel = functools.partial(_vq_kernel, tm=tm, m_true=m_true)
    q, sse_p = pl.pallas_call(
        kernel,
        out_shape=(jax.ShapeDtypeStruct((m_pad, dp), jnp.float32),
                   jax.ShapeDtypeStruct((nt, 1, LANE), jnp.float32)),
        grid=(nt,),
        in_specs=[pl.BlockSpec((tm, dp), lambda i: (i, 0)),
                  pl.BlockSpec((kp, dp), lambda i: (0, 0)),
                  pl.BlockSpec((1, kp), lambda i: (0, 0))],
        out_specs=(pl.BlockSpec((tm, dp), lambda i: (i, 0)),
                   pl.BlockSpec((1, 1, LANE), lambda i: (i, 0, 0))),
        compiler_params=_compiler_params(),
    )(x, e, esq)
    sse = jnp.sum(sse_p[:, 0, 0])
    mse = sse / jnp.float32(m_true * d)
    vq_loss = mse + 0.25 * mse      # commitment + 0.25 * embedding (same fwd value)
    return q[:m_true, :d], vq_loss


# ----------------------------------------------------------------------------
# Parameter construction / one-time preprocessing
# ----------------------------------------------------------------------------

def _conv_weight_mat(w_pt, c_pad):
    """PyTorch Conv2d weight (Cout, Cin, KH, KW) -> bf16 (KH*KW*Cin, c_pad)."""
    cout, cin, kh, kw = w_pt.shape
    m = jnp.transpose(w_pt, (2, 3, 1, 0)).reshape(kh * kw * cin, cout)
    return jnp.pad(m, ((0, 0), (0, c_pad - cout))).astype(jnp.bfloat16)


def _convT_subpixel_weight_mat(w_ct, c_pad):
    """PyTorch ConvTranspose2d weight (Cin, Cout, 4, 4) -> bf16 (2*2*Cin, c_pad).
    Column block p = py*2+px holds the 2x2 stride-1 kernel for output phase
    (py, px) of the k=4/s=2/p=1 transposed conv."""
    cin, cout, _, _ = w_ct.shape
    sel = ((3, 1), (2, 0))      # kernel taps hit by phase 0 / 1 along each axis
    blocks = []
    for py in range(2):
        for px in range(2):
            taps = [w_ct[:, :, sel[py][dy], sel[px][dx]]
                    for dy in range(2) for dx in range(2)]       # each (Cin, Cout)
            blocks.append(jnp.concatenate(taps, axis=0))         # (4*Cin, Cout)
    m = jnp.concatenate(blocks, axis=1)                          # (4*Cin, 4*Cout)
    return jnp.pad(m, ((0, 0), (0, c_pad - 4 * cout))).astype(jnp.bfloat16)


def prepare_params(p):
    """One-time weight preprocessing (layout, 128-lane padding, bf16 cast)."""
    def conv(prefix, bn=True):
        w = p[prefix + "_w"]
        cout = int(w.shape[0])
        c_pad = _round_up(cout, LANE)
        d = {"w": _conv_weight_mat(w, c_pad),
             "b": _pad_row_vec(p[prefix + "_b"].astype(jnp.float32), c_pad),
             "cout": cout}
        if bn:
            d["gamma"] = p[prefix + "_g"].astype(jnp.float32)
            d["beta"] = p[prefix + "_be"].astype(jnp.float32)
        return d

    def deconv(prefix):
        w = p[prefix + "_w"]                        # (Cin, Cout, 4, 4)
        cout = int(w.shape[1])
        c_pad = _round_up(4 * cout, LANE)
        return {"w": _convT_subpixel_weight_mat(w, c_pad),
                "b": _pad_row_vec(
                    jnp.tile(p[prefix + "_b"].astype(jnp.float32), 4), c_pad),
                "gamma": p[prefix + "_g"].astype(jnp.float32),
                "beta": p[prefix + "_be"].astype(jnp.float32),
                "cout": cout}

    cb = p["codebook"].astype(jnp.float32)          # (K, D)
    k, d = cb.shape
    kp, dp = _round_up(k, LANE), _round_up(d, LANE)
    e = jnp.pad(cb, ((0, kp - k), (0, dp - d)))
    esq = jnp.pad(jnp.sum(cb * cb, axis=1), (0, kp - k),
                  constant_values=1e30).reshape(1, kp)

    return {"enc1": conv("enc1"), "enc2": conv("enc2"), "enc3": conv("enc3"),
            "codebook": {"e": e, "esq": esq},
            "dec1": deconv("dec1"), "dec2": deconv("dec2"),
            "dec3": conv("dec3", bn=False)}


def init_params(key):
    keys = jax.random.split(key, 16)
    p = {}

    def conv_w(k, cout, cin, kh, kw):
        return jax.random.normal(k, (cout, cin, kh, kw), jnp.float32) * 0.1

    # Encoder: Conv(1->32,k4,s2,p1), Conv(32->64,k4,s2,p1), Conv(64->64,k1)
    p["enc1_w"] = conv_w(keys[0], 32, 1, 4, 4)
    p["enc1_b"] = jax.random.normal(keys[1], (32,), jnp.float32) * 0.01
    p["enc1_g"], p["enc1_be"] = jnp.ones((32,), jnp.float32), jnp.zeros((32,), jnp.float32)
    p["enc2_w"] = conv_w(keys[2], 64, 32, 4, 4)
    p["enc2_b"] = jax.random.normal(keys[3], (64,), jnp.float32) * 0.01
    p["enc2_g"], p["enc2_be"] = jnp.ones((64,), jnp.float32), jnp.zeros((64,), jnp.float32)
    p["enc3_w"] = conv_w(keys[4], 64, 64, 1, 1)
    p["enc3_b"] = jax.random.normal(keys[5], (64,), jnp.float32) * 0.01
    p["enc3_g"], p["enc3_be"] = jnp.ones((64,), jnp.float32), jnp.zeros((64,), jnp.float32)

    # Codebook: uniform(-1/K, 1/K) as in the reference
    p["codebook"] = jax.random.uniform(
        keys[6], (NUM_EMBEDDINGS, EMBEDDING_DIM), jnp.float32,
        minval=-1.0 / NUM_EMBEDDINGS, maxval=1.0 / NUM_EMBEDDINGS)

    # Decoder: ConvT(64->64,k4,s2,p1), ConvT(64->32,k4,s2,p1), Conv(32->1,k3,p1)
    p["dec1_w"] = jax.random.normal(keys[7], (64, 64, 4, 4), jnp.float32) * 0.1
    p["dec1_b"] = jax.random.normal(keys[8], (64,), jnp.float32) * 0.01
    p["dec1_g"], p["dec1_be"] = jnp.ones((64,), jnp.float32), jnp.zeros((64,), jnp.float32)
    p["dec2_w"] = jax.random.normal(keys[9], (64, 32, 4, 4), jnp.float32) * 0.1
    p["dec2_b"] = jax.random.normal(keys[10], (32,), jnp.float32) * 0.01
    p["dec2_g"], p["dec2_be"] = jnp.ones((32,), jnp.float32), jnp.zeros((32,), jnp.float32)
    p["dec3_w"] = conv_w(keys[11], 1, 32, 3, 3)
    p["dec3_b"] = jax.random.normal(keys[12], (1,), jnp.float32) * 0.01
    return p


# ----------------------------------------------------------------------------
# Forward pass
# ----------------------------------------------------------------------------

def vqvae_forward(prep, x_nchw):
    # --- Encoder (NHWC internally; bf16 MXU operands, f32 epilogues) ---
    x = jnp.transpose(x_nchw, (0, 2, 3, 1)).astype(jnp.bfloat16)
    h = conv_bn_lrelu_layer(x, prep["enc1"], 4, 4, 2, 1, jnp.bfloat16)
    h = conv_bn_lrelu_layer(h, prep["enc2"], 4, 4, 2, 1, jnp.bfloat16)
    z = conv_bn_lrelu_layer(h, prep["enc3"], 1, 1, 1, 0, jnp.float32)

    # --- Vector quantizer (exactly reproduces the PyTorch NCHW reshape) ---
    z_nchw = jnp.transpose(z, (0, 3, 1, 2))
    flat = z_nchw.reshape(-1, EMBEDDING_DIM)
    q_flat, vq_loss = vector_quantize(flat, prep["codebook"])
    zq = jnp.transpose(q_flat.reshape(z_nchw.shape), (0, 2, 3, 1))   # fwd = q

    # --- Decoder ---
    d = deconv_bn_lrelu_layer(zq.astype(jnp.bfloat16), prep["dec1"], jnp.bfloat16)
    d = deconv_bn_lrelu_layer(d, prep["dec2"], jnp.bfloat16)
    out = conv_tanh_layer(d, prep["dec3"], 3, 3, 1, 1)
    x_recon = jnp.transpose(out, (0, 3, 1, 2))                       # back to NCHW
    return x_recon, vq_loss


if __name__ == "__main__":
    key = jax.random.PRNGKey(0)
    pkey, xkey = jax.random.split(key)
    params = init_params(pkey)
    prep = prepare_params(params)            # one-time weight preprocessing
    x = jax.random.normal(xkey, (2, 1, 16, 16), jnp.float32)   # NCHW

    fwd = jax.jit(functools.partial(vqvae_forward, prep))
    x_recon, vq_loss = fwd(x)
    jax.block_until_ready((x_recon, vq_loss))

    assert x_recon.shape == (2, 1, 16, 16)
    assert x_recon.dtype == jnp.float32
    assert vq_loss.shape == ()
    assert bool(jnp.all(jnp.isfinite(x_recon)))
    assert bool(jnp.isfinite(vq_loss))
    print("KERNEL_OK")
</pallas_src>

<mosaic_0001>
module attributes {stable_mosaic.version = 11 : i64} {
  func.func @_mm_bias_stats_kernel(%arg0: i32, %arg1: memref<128x16xbf16, #tpu.memory_space<vmem>>, %arg2: memref<16x128xbf16, #tpu.memory_space<vmem>>, %arg3: memref<1x128xf32, #tpu.memory_space<vmem>>, %arg4: memref<128x128xf32, #tpu.memory_space<vmem>>, %arg5: memref<1x2x128xf32, #tpu.memory_space<vmem>>) attributes {dimension_semantics = [#tpu.dimension_semantics<parallel>], iteration_bounds = array<i64: 1>, scalar_prefetch = 0 : i64, scratch_operands = 0 : i64, tpu.core_type = #tpu.core_type<tc>, window_params = [{transform_indices = @transform_0, window_bounds = array<i64: 128, 16>}, {pipeline_mode = #tpu.pipeline_mode<synchronous>, transform_indices = @transform_1, window_bounds = array<i64: 16, 128>}, {pipeline_mode = #tpu.pipeline_mode<synchronous>, transform_indices = @transform_2, window_bounds = array<i64: 1, 128>}, {transform_indices = @transform_3, window_bounds = array<i64: 128, 128>}, {transform_indices = @transform_4, window_bounds = array<i64: 1, 2, 128>}]} {
    %c0 = arith.constant 0 : index
    %c0_0 = arith.constant 0 : index
    %0 = vector.load %arg1[%c0, %c0_0] : memref<128x16xbf16, #tpu.memory_space<vmem>>, vector<128x16xbf16>
    %c0_1 = arith.constant 0 : index
    %c0_2 = arith.constant 0 : index
    %1 = vector.load %arg2[%c0_1, %c0_2] : memref<16x128xbf16, #tpu.memory_space<vmem>>, vector<16x128xbf16>
    %cst = arith.constant dense<0.000000e+00> : vector<128x128xf32>
    %2 = tpu.matmul %0, %1, %cst {dimension_numbers = #tpu.dot_dimension_numbers<[1], [0], [0], [1], [0, 0, 1, 1], [], []>} : vector<128x16xbf16>, vector<16x128xbf16>, vector<128x128xf32> -> vector<128x128xf32>
    %c0_3 = arith.constant 0 : index
    %c0_4 = arith.constant 0 : index
    %3 = vector.load %arg3[%c0_3, %c0_4] : memref<1x128xf32, #tpu.memory_space<vmem>>, vector<1x128xf32>
    %4 = vector.broadcast %3 : vector<1x128xf32> to vector<128x128xf32>
    %5 = arith.addf %2, %4 : vector<128x128xf32>
    %c0_5 = arith.constant 0 : index
    %c0_6 = arith.constant 0 : index
    %6 = vector.load %arg4[%c0_5, %c0_6] : memref<128x128xf32, #tpu.memory_space<vmem>>, vector<128x128xf32>
    tpu.vector_store %arg4[%c0_5, %c0_6], %5 {strides = array<i32>} : memref<128x128xf32, #tpu.memory_space<vmem>>, vector<128x128xf32>,
    %c128_i32 = arith.constant 128 : i32
    %7 = arith.muli %arg0, %c128_i32 : i32
    %8 = tpu.iota {dimensions = array<i32: 0>} : vector<128x1xi32>
    %9 = vector.broadcast %7 : i32 to vector<128x1xi32>
    %10 = arith.addi %9, %8 : vector<128x1xi32>
    %c128_i32_7 = arith.constant 128 : i32
    %11 = vector.broadcast %c128_i32_7 : i32 to vector<128x1xi32>
    %12 = arith.cmpi slt, %10, %11 : vector<128x1xi32>
    %13 = arith.extui %12 : vector<128x1xi1> to vector<128x1xi32>
    %14 = arith.sitofp %13 : vector<128x1xi32> to vector<128x1xf32>
    %15 = vector.broadcast %14 : vector<128x1xf32> to vector<128x128xf32>
    %16 = arith.mulf %5, %15 : vector<128x128xf32>
    %cst_8 = arith.constant dense<0.000000e+00> : vector<128xf32>
    %17 = vector.multi_reduction <add>, %16, %cst_8 [0] : vector<128x128xf32> to vector<128xf32>
    %18 = vector.shape_cast %17 : vector<128xf32> to vector<1x128xf32>
    %19 = arith.mulf %16, %16 : vector<128x128xf32>
    %cst_9 = arith.constant dense<0.000000e+00> : vector<128xf32>
    %20 = vector.multi_reduction <add>, %19, %cst_9 [0] : vector<128x128xf32> to vector<128xf32>
    %21 = vector.shape_cast %20 : vector<128xf32> to vector<1x128xf32>
    %22 = tpu.concatenate %18, %21 in 0 : vector<1x128xf32>, vector<1x128xf32> -> vector<2x128xf32>
    %23 = vector.shape_cast %22 : vector<2x128xf32> to vector<1x2x128xf32>
    %c0_10 = arith.constant 0 : index
    %c0_11 = arith.constant 0 : index
    %c0_12 = arith.constant 0 : index
    %24 = vector.load %arg5[%c0_10, %c0_11, %c0_12] : memref<1x2x128xf32, #tpu.memory_space<vmem>>, vector<1x2x128xf32>
    tpu.vector_store %arg5[%c0_10, %c0_11, %c0_12], %23 {strides = array<i32>} : memref<1x2x128xf32, #tpu.memory_space<vmem>>, vector<1x2x128xf32>,
    return
  }
  func.func @transform_0(%arg0: i32) -> (i32, i32) {
    %c0_i32 = arith.constant 0 : i32
    %c0_i32_0 = arith.constant 0 : i32
    return %arg0, %c0_i32 : i32, i32
  }
  func.func @transform_1(%arg0: i32) -> (i32, i32) {
    %c0_i32 = arith.constant 0 : i32
    %c0_i32_0 = arith.constant 0 : i32
    %c0_i32_1 = arith.constant 0 : i32
    return %c0_i32, %c0_i32_0 : i32, i32
  }
  func.func @transform_2(%arg0: i32) -> (i32, i32) {
    %c0_i32 = arith.constant 0 : i32
    %c0_i32_0 = arith.constant 0 : i32
    %c0_i32_1 = arith.constant 0 : i32
    return %c0_i32, %c0_i32_0 : i32, i32
  }
  func.func @transform_3(%arg0: i32) -> (i32, i32) {
    %c0_i32 = arith.constant 0 : i32
    %c0_i32_0 = arith.constant 0 : i32
    return %arg0, %c0_i32 : i32, i32
  }
  func.func @transform_4(%arg0: i32) -> (i32, i32, i32) {
    %c0_i32 = arith.constant 0 : i32
    %c0_i32_0 = arith.constant 0 : i32
    %c0_i32_1 = arith.constant 0 : i32
    return %arg0, %c0_i32, %c0_i32_0 : i32, i32, i32
  }
}

module attributes {stable_mosaic.version = 11 : i64} {
  func.func @_scale_shift_act_kernel(%arg0: i32, %arg1: memref<128x128xf32, #tpu.memory_space<vmem>>, %arg2: memref<1x128xf32, #tpu.memory_space<vmem>>, %arg3: memref<1x128xf32, #tpu.memory_space<vmem>>, %arg4: memref<128x128xbf16, #tpu.memory_space<vmem>>) attributes {dimension_semantics = [#tpu.dimension_semantics<parallel>], iteration_bounds = array<i64: 1>, scalar_prefetch = 0 : i64, scratch_operands = 0 : i64, tpu.core_type = #tpu.core_type<tc>, window_params = [{transform_indices = @transform_0, window_bounds = array<i64: 128, 128>}, {pipeline_mode = #tpu.pipeline_mode<synchronous>, transform_indices = @transform_1, window_bounds = array<i64: 1, 128>}, {pipeline_mode = #tpu.pipeline_mode<synchronous>, transform_indices = @transform_2, window_bounds = array<i64: 1, 128>}, {transform_indices = @transform_3, window_bounds = array<i64: 128, 128>}]} {
    %c0 = arith.constant 0 : index
    %c0_0 = arith.constant 0 : index
    %0 = vector.load %arg1[%c0, %c0_0] : memref<128x128xf32, #tpu.memory_space<vmem>>, vector<128x128xf32>
    %c0_1 = arith.constant 0 : index
    %c0_2 = arith.constant 0 : index
    %1 = vector.load %arg2[%c0_1, %c0_2] : memref<1x128xf32, #tpu.memory_space<vmem>>, vector<1x128xf32>
    %2 = vector.broadcast %1 : vector<1x128xf32> to vector<128x128xf32>
    %3 = arith.mulf %0, %2 : vector<128x128xf32>
    %c0_3 = arith.constant 0 : index
    %c0_4 = arith.constant 0 : index
    %4 = vector.load %arg3[%c0_3, %c0_4] : memref<1x128xf32, #tpu.memory_space<vmem>>, vector<1x128xf32>
    %5 = vector.broadcast %4 : vector<1x128xf32> to vector<128x128xf32>
    %6 = arith.addf %3, %5 : vector<128x128xf32>
    %cst = arith.constant 0.000000e+00 : f32
    %7 = vector.broadcast %cst : f32 to vector<128x128xf32>
    %8 = arith.cmpf oge, %6, %7 : vector<128x128xf32>
    %cst_5 = arith.constant 0.00999999977 : f32
    %9 = vector.broadcast %cst_5 : f32 to vector<128x128xf32>
    %10 = arith.mulf %9, %6 : vector<128x128xf32>
    %11 = arith.select %8, %6, %10 : vector<128x128xi1>, vector<128x128xf32>
    %12 = arith.truncf %11 : vector<128x128xf32> to vector<128x128xbf16>
    %c0_6 = arith.constant 0 : index
    %c0_7 = arith.constant 0 : index
    %13 = vector.load %arg4[%c0_6, %c0_7] : memref<128x128xbf16, #tpu.memory_space<vmem>>, vector<128x128xbf16>
    tpu.vector_store %arg4[%c0_6, %c0_7], %12 {strides = array<i32>} : memref<128x128xbf16, #tpu.memory_space<vmem>>, vector<128x128xbf16>,
    return
  }
  func.func @transform_0(%arg0: i32) -> (i32, i32) {
    %c0_i32 = arith.constant 0 : i32
    %c0_i32_0 = arith.constant 0 : i32
    return %arg0, %c0_i32 : i32, i32
  }
  func.func @transform_1(%arg0: i32) -> (i32, i32) {
    %c0_i32 = arith.constant 0 : i32
    %c0_i32_0 = arith.constant 0 : i32
    %c0_i32_1 = arith.constant 0 : i32
    return %c0_i32, %c0_i32_0 : i32, i32
  }
  func.func @transform_2(%arg0: i32) -> (i32, i32) {
    %c0_i32 = arith.constant 0 : i32
    %c0_i32_0 = arith.constant 0 : i32
    %c0_i32_1 = arith.constant 0 : i32
    return %c0_i32, %c0_i32_0 : i32, i32
  }
  func.func @transform_3(%arg0: i32) -> (i32, i32) {
    %c0_i32 = arith.constant 0 : i32
    %c0_i32_0 = arith.constant 0 : i32
    return %arg0, %c0_i32 : i32, i32
  }
}

module attributes {stable_mosaic.version = 11 : i64} {
  func.func @_mm_bias_stats_kernel(%arg0: i32, %arg1: memref<32x512xbf16, #tpu.memory_space<vmem>>, %arg2: memref<512x128xbf16, #tpu.memory_space<vmem>>, %arg3: memref<1x128xf32, #tpu.memory_space<vmem>>, %arg4: memref<32x128xf32, #tpu.memory_space<vmem>>, %arg5: memref<1x2x128xf32, #tpu.memory_space<vmem>>) attributes {dimension_semantics = [#tpu.dimension_semantics<parallel>], iteration_bounds = array<i64: 1>, scalar_prefetch = 0 : i64, scratch_operands = 0 : i64, tpu.core_type = #tpu.core_type<tc>, window_params = [{transform_indices = @transform_0, window_bounds = array<i64: 32, 512>}, {pipeline_mode = #tpu.pipeline_mode<synchronous>, transform_indices = @transform_1, window_bounds = array<i64: 512, 128>}, {pipeline_mode = #tpu.pipeline_mode<synchronous>, transform_indices = @transform_2, window_bounds = array<i64: 1, 128>}, {transform_indices = @transform_3, window_bounds = array<i64: 32, 128>}, {transform_indices = @transform_4, window_bounds = array<i64: 1, 2, 128>}]} {
    %c0 = arith.constant 0 : index
    %c0_0 = arith.constant 0 : index
    %0 = vector.load %arg1[%c0, %c0_0] : memref<32x512xbf16, #tpu.memory_space<vmem>>, vector<32x512xbf16>
    %c0_1 = arith.constant 0 : index
    %c0_2 = arith.constant 0 : index
    %1 = vector.load %arg2[%c0_1, %c0_2] : memref<512x128xbf16, #tpu.memory_space<vmem>>, vector<512x128xbf16>
    %cst = arith.constant dense<0.000000e+00> : vector<32x128xf32>
    %2 = tpu.matmul %0, %1, %cst {dimension_numbers = #tpu.dot_dimension_numbers<[1], [0], [0], [1], [0, 0, 1, 1], [], []>} : vector<32x512xbf16>, vector<512x128xbf16>, vector<32x128xf32> -> vector<32x128xf32>
    %c0_3 = arith.constant 0 : index
    %c0_4 = arith.constant 0 : index
    %3 = vector.load %arg3[%c0_3, %c0_4] : memref<1x128xf32, #tpu.memory_space<vmem>>, vector<1x128xf32>
    %4 = vector.broadcast %3 : vector<1x128xf32> to vector<32x128xf32>
    %5 = arith.addf %2, %4 : vector<32x128xf32>
    %c0_5 = arith.constant 0 : index
    %c0_6 = arith.constant 0 : index
    %6 = vector.load %arg4[%c0_5, %c0_6] : memref<32x128xf32, #tpu.memory_space<vmem>>, vector<32x128xf32>
    tpu.vector_store %arg4[%c0_5, %c0_6], %5 {strides = array<i32>} : memref<32x128xf32, #tpu.memory_space<vmem>>, vector<32x128xf32>,
    %c32_i32 = arith.constant 32 : i32
    %7 = arith.muli %arg0, %c32_i32 : i32
    %8 = tpu.iota {dimensions = array<i32: 0>} : vector<32x1xi32>
    %9 = vector.broadcast %7 : i32 to vector<32x1xi32>
    %10 = arith.addi %9, %8 : vector<32x1xi32>
    %c32_i32_7 = arith.constant 32 : i32
    %11 = vector.broadcast %c32_i32_7 : i32 to vector<32x1xi32>
    %12 = arith.cmpi slt, %10, %11 : vector<32x1xi32>
    %13 = arith.extui %12 : vector<32x1xi1> to vector<32x1xi32>
    %14 = arith.sitofp %13 : vector<32x1xi32> to vector<32x1xf32>
    %15 = vector.broadcast %14 : vector<32x1xf32> to vector<32x128xf32>
    %16 = arith.mulf %5, %15 : vector<32x128xf32>
    %cst_8 = arith.constant dense<0.000000e+00> : vector<128xf32>
    %17 = vector.multi_reduction <add>, %16, %cst_8 [0] : vector<32x128xf32> to vector<128xf32>
    %18 = vector.shape_cast %17 : vector<128xf32> to vector<1x128xf32>
    %19 = arith.mulf %16, %16 : vector<32x128xf32>
    %cst_9 = arith.constant dense<0.000000e+00> : vector<128xf32>
    %20 = vector.multi_reduction <add>, %19, %cst_9 [0] : vector<32x128xf32> to vector<128xf32>
    %21 = vector.shape_cast %20 : vector<128xf32> to vector<1x128xf32>
    %22 = tpu.concatenate %18, %21 in 0 : vector<1x128xf32>, vector<1x128xf32> -> vector<2x128xf32>
    %23 = vector.shape_cast %22 : vector<2x128xf32> to vector<1x2x128xf32>
    %c0_10 = arith.constant 0 : index
    %c0_11 = arith.constant 0 : index
    %c0_12 = arith.constant 0 : index
    %24 = vector.load %arg5[%c0_10, %c0_11, %c0_12] : memref<1x2x128xf32, #tpu.memory_space<vmem>>, vector<1x2x128xf32>
    tpu.vector_store %arg5[%c0_10, %c0_11, %c0_12], %23 {strides = array<i32>} : memref<1x2x128xf32, #tpu.memory_space<vmem>>, vector<1x2x128xf32>,
    return
  }
  func.func @transform_0(%arg0: i32) -> (i32, i32) {
    %c0_i32 = arith.constant 0 : i32
    %c0_i32_0 = arith.constant 0 : i32
    return %arg0, %c0_i32 : i32, i32
  }
  func.func @transform_1(%arg0: i32) -> (i32, i32) {
    %c0_i32 = arith.constant 0 : i32
    %c0_i32_0 = arith.constant 0 : i32
    %c0_i32_1 = arith.constant 0 : i32
    return %c0_i32, %c0_i32_0 : i32, i32
  }
  func.func @transform_2(%arg0: i32) -> (i32, i32) {
    %c0_i32 = arith.constant 0 : i32
    %c0_i32_0 = arith.constant 0 : i32
    %c0_i32_1 = arith.constant 0 : i32
    return %c0_i32, %c0_i32_0 : i32, i32
  }
  func.func @transform_3(%arg0: i32) -> (i32, i32) {
    %c0_i32 = arith.constant 0 : i32
    %c0_i32_0 = arith.constant 0 : i32
    return %arg0, %c0_i32 : i32, i32
  }
  func.func @transform_4(%arg0: i32) -> (i32, i32, i32) {
    %c0_i32 = arith.constant 0 : i32
    %c0_i32_0 = arith.constant 0 : i32
    %c0_i32_1 = arith.constant 0 : i32
    return %arg0, %c0_i32, %c0_i32_0 : i32, i32, i32
  }
}

module attributes {stable_mosaic.version = 11 : i64} {
  func.func @_scale_shift_act_kernel(%arg0: i32, %arg1: memref<32x128xf32, #tpu.memory_space<vmem>>, %arg2: memref<1x128xf32, #tpu.memory_space<vmem>>, %arg3: memref<1x128xf32, #tpu.memory_space<vmem>>, %arg4: memref<32x128xbf16, #tpu.memory_space<vmem>>) attributes {dimension_semantics = [#tpu.dimension_semantics<parallel>], iteration_bounds = array<i64: 1>, scalar_prefetch = 0 : i64, scratch_operands = 0 : i64, tpu.core_type = #tpu.core_type<tc>, window_params = [{transform_indices = @transform_0, window_bounds = array<i64: 32, 128>}, {pipeline_mode = #tpu.pipeline_mode<synchronous>, transform_indices = @transform_1, window_bounds = array<i64: 1, 128>}, {pipeline_mode = #tpu.pipeline_mode<synchronous>, transform_indices = @transform_2, window_bounds = array<i64: 1, 128>}, {transform_indices = @transform_3, window_bounds = array<i64: 32, 128>}]} {
    %c0 = arith.constant 0 : index
    %c0_0 = arith.constant 0 : index
    %0 = vector.load %arg1[%c0, %c0_0] : memref<32x128xf32, #tpu.memory_space<vmem>>, vector<32x128xf32>
    %c0_1 = arith.constant 0 : index
    %c0_2 = arith.constant 0 : index
    %1 = vector.load %arg2[%c0_1, %c0_2] : memref<1x128xf32, #tpu.memory_space<vmem>>, vector<1x128xf32>
    %2 = vector.broadcast %1 : vector<1x128xf32> to vector<32x128xf32>
    %3 = arith.mulf %0, %2 : vector<32x128xf32>
    %c0_3 = arith.constant 0 : index
    %c0_4 = arith.constant 0 : index
    %4 = vector.load %arg3[%c0_3, %c0_4] : memref<1x128xf32, #tpu.memory_space<vmem>>, vector<1x128xf32>
    %5 = vector.broadcast %4 : vector<1x128xf32> to vector<32x128xf32>
    %6 = arith.addf %3, %5 : vector<32x128xf32>
    %cst = arith.constant 0.000000e+00 : f32
    %7 = vector.broadcast %cst : f32 to vector<32x128xf32>
    %8 = arith.cmpf oge, %6, %7 : vector<32x128xf32>
    %cst_5 = arith.constant 0.00999999977 : f32
    %9 = vector.broadcast %cst_5 : f32 to vector<32x128xf32>
    %10 = arith.mulf %9, %6 : vector<32x128xf32>
    %11 = arith.select %8, %6, %10 : vector<32x128xi1>, vector<32x128xf32>
    %12 = arith.truncf %11 : vector<32x128xf32> to vector<32x128xbf16>
    %c0_6 = arith.constant 0 : index
    %c0_7 = arith.constant 0 : index
    %13 = vector.load %arg4[%c0_6, %c0_7] : memref<32x128xbf16, #tpu.memory_space<vmem>>, vector<32x128xbf16>
    tpu.vector_store %arg4[%c0_6, %c0_7], %12 {strides = array<i32>} : memref<32x128xbf16, #tpu.memory_space<vmem>>, vector<32x128xbf16>,
    return
  }
  func.func @transform_0(%arg0: i32) -> (i32, i32) {
    %c0_i32 = arith.constant 0 : i32
    %c0_i32_0 = arith.constant 0 : i32
    return %arg0, %c0_i32 : i32, i32
  }
  func.func @transform_1(%arg0: i32) -> (i32, i32) {
    %c0_i32 = arith.constant 0 : i32
    %c0_i32_0 = arith.constant 0 : i32
    %c0_i32_1 = arith.constant 0 : i32
    return %c0_i32, %c0_i32_0 : i32, i32
  }
  func.func @transform_2(%arg0: i32) -> (i32, i32) {
    %c0_i32 = arith.constant 0 : i32
    %c0_i32_0 = arith.constant 0 : i32
    %c0_i32_1 = arith.constant 0 : i32
    return %c0_i32, %c0_i32_0 : i32, i32
  }
  func.func @transform_3(%arg0: i32) -> (i32, i32) {
    %c0_i32 = arith.constant 0 : i32
    %c0_i32_0 = arith.constant 0 : i32
    return %arg0, %c0_i32 : i32, i32
  }
}

module attributes {stable_mosaic.version = 11 : i64} {
  func.func @_mm_bias_stats_kernel(%arg0: i32, %arg1: memref<32x64xbf16, #tpu.memory_space<vmem>>, %arg2: memref<64x128xbf16, #tpu.memory_space<vmem>>, %arg3: memref<1x128xf32, #tpu.memory_space<vmem>>, %arg4: memref<32x128xf32, #tpu.memory_space<vmem>>, %arg5: memref<1x2x128xf32, #tpu.memory_space<vmem>>) attributes {dimension_semantics = [#tpu.dimension_semantics<parallel>], iteration_bounds = array<i64: 1>, scalar_prefetch = 0 : i64, scratch_operands = 0 : i64, tpu.core_type = #tpu.core_type<tc>, window_params = [{transform_indices = @transform_0, window_bounds = array<i64: 32, 64>}, {pipeline_mode = #tpu.pipeline_mode<synchronous>, transform_indices = @transform_1, window_bounds = array<i64: 64, 128>}, {pipeline_mode = #tpu.pipeline_mode<synchronous>, transform_indices = @transform_2, window_bounds = array<i64: 1, 128>}, {transform_indices = @transform_3, window_bounds = array<i64: 32, 128>}, {transform_indices = @transform_4, window_bounds = array<i64: 1, 2, 128>}]} {
    %c0 = arith.constant 0 : index
    %c0_0 = arith.constant 0 : index
    %0 = vector.load %arg1[%c0, %c0_0] : memref<32x64xbf16, #tpu.memory_space<vmem>>, vector<32x64xbf16>
    %c0_1 = arith.constant 0 : index
    %c0_2 = arith.constant 0 : index
    %1 = vector.load %arg2[%c0_1, %c0_2] : memref<64x128xbf16, #tpu.memory_space<vmem>>, vector<64x128xbf16>
    %cst = arith.constant dense<0.000000e+00> : vector<32x128xf32>
    %2 = tpu.matmul %0, %1, %cst {dimension_numbers = #tpu.dot_dimension_numbers<[1], [0], [0], [1], [0, 0, 1, 1], [], []>} : vector<32x64xbf16>, vector<64x128xbf16>, vector<32x128xf32> -> vector<32x128xf32>
    %c0_3 = arith.constant 0 : index
    %c0_4 = arith.constant 0 : index
    %3 = vector.load %arg3[%c0_3, %c0_4] : memref<1x128xf32, #tpu.memory_space<vmem>>, vector<1x128xf32>
    %4 = vector.broadcast %3 : vector<1x128xf32> to vector<32x128xf32>
    %5 = arith.addf %2, %4 : vector<32x128xf32>
    %c0_5 = arith.constant 0 : index
    %c0_6 = arith.constant 0 : index
    %6 = vector.load %arg4[%c0_5, %c0_6] : memref<32x128xf32, #tpu.memory_space<vmem>>, vector<32x128xf32>
    tpu.vector_store %arg4[%c0_5, %c0_6], %5 {strides = array<i32>} : memref<32x128xf32, #tpu.memory_space<vmem>>, vector<32x128xf32>,
    %c32_i32 = arith.constant 32 : i32
    %7 = arith.muli %arg0, %c32_i32 : i32
    %8 = tpu.iota {dimensions = array<i32: 0>} : vector<32x1xi32>
    %9 = vector.broadcast %7 : i32 to vector<32x1xi32>
    %10 = arith.addi %9, %8 : vector<32x1xi32>
    %c32_i32_7 = arith.constant 32 : i32
    %11 = vector.broadcast %c32_i32_7 : i32 to vector<32x1xi32>
    %12 = arith.cmpi slt, %10, %11 : vector<32x1xi32>
    %13 = arith.extui %12 : vector<32x1xi1> to vector<32x1xi32>
    %14 = arith.sitofp %13 : vector<32x1xi32> to vector<32x1xf32>
    %15 = vector.broadcast %14 : vector<32x1xf32> to vector<32x128xf32>
    %16 = arith.mulf %5, %15 : vector<32x128xf32>
    %cst_8 = arith.constant dense<0.000000e+00> : vector<128xf32>
    %17 = vector.multi_reduction <add>, %16, %cst_8 [0] : vector<32x128xf32> to vector<128xf32>
    %18 = vector.shape_cast %17 : vector<128xf32> to vector<1x128xf32>
    %19 = arith.mulf %16, %16 : vector<32x128xf32>
    %cst_9 = arith.constant dense<0.000000e+00> : vector<128xf32>
    %20 = vector.multi_reduction <add>, %19, %cst_9 [0] : vector<32x128xf32> to vector<128xf32>
    %21 = vector.shape_cast %20 : vector<128xf32> to vector<1x128xf32>
    %22 = tpu.concatenate %18, %21 in 0 : vector<1x128xf32>, vector<1x128xf32> -> vector<2x128xf32>
    %23 = vector.shape_cast %22 : vector<2x128xf32> to vector<1x2x128xf32>
    %c0_10 = arith.constant 0 : index
    %c0_11 = arith.constant 0 : index
    %c0_12 = arith.constant 0 : index
    %24 = vector.load %arg5[%c0_10, %c0_11, %c0_12] : memref<1x2x128xf32, #tpu.memory_space<vmem>>, vector<1x2x128xf32>
    tpu.vector_store %arg5[%c0_10, %c0_11, %c0_12], %23 {strides = array<i32>} : memref<1x2x128xf32, #tpu.memory_space<vmem>>, vector<1x2x128xf32>,
    return
  }
  func.func @transform_0(%arg0: i32) -> (i32, i32) {
    %c0_i32 = arith.constant 0 : i32
    %c0_i32_0 = arith.constant 0 : i32
    return %arg0, %c0_i32 : i32, i32
  }
  func.func @transform_1(%arg0: i32) -> (i32, i32) {
    %c0_i32 = arith.constant 0 : i32
    %c0_i32_0 = arith.constant 0 : i32
    %c0_i32_1 = arith.constant 0 : i32
    return %c0_i32, %c0_i32_0 : i32, i32
  }
  func.func @transform_2(%arg0: i32) -> (i32, i32) {
    %c0_i32 = arith.constant 0 : i32
    %c0_i32_0 = arith.constant 0 : i32
    %c0_i32_1 = arith.constant 0 : i32
    return %c0_i32, %c0_i32_0 : i32, i32
  }
  func.func @transform_3(%arg0: i32) -> (i32, i32) {
    %c0_i32 = arith.constant 0 : i32
    %c0_i32_0 = arith.constant 0 : i32
    return %arg0, %c0_i32 : i32, i32
  }
  func.func @transform_4(%arg0: i32) -> (i32, i32, i32) {
    %c0_i32 = arith.constant 0 : i32
    %c0_i32_0 = arith.constant 0 : i32
    %c0_i32_1 = arith.constant 0 : i32
    return %arg0, %c0_i32, %c0_i32_0 : i32, i32, i32
  }
}

module attributes {stable_mosaic.version = 11 : i64} {
  func.func @_scale_shift_act_kernel(%arg0: i32, %arg1: memref<32x128xf32, #tpu.memory_space<vmem>>, %arg2: memref<1x128xf32, #tpu.memory_space<vmem>>, %arg3: memref<1x128xf32, #tpu.memory_space<vmem>>, %arg4: memref<32x128xf32, #tpu.memory_space<vmem>>) attributes {dimension_semantics = [#tpu.dimension_semantics<parallel>], iteration_bounds = array<i64: 1>, scalar_prefetch = 0 : i64, scratch_operands = 0 : i64, tpu.core_type = #tpu.core_type<tc>, window_params = [{transform_indices = @transform_0, window_bounds = array<i64: 32, 128>}, {pipeline_mode = #tpu.pipeline_mode<synchronous>, transform_indices = @transform_1, window_bounds = array<i64: 1, 128>}, {pipeline_mode = #tpu.pipeline_mode<synchronous>, transform_indices = @transform_2, window_bounds = array<i64: 1, 128>}, {transform_indices = @transform_3, window_bounds = array<i64: 32, 128>}]} {
    %c0 = arith.constant 0 : index
    %c0_0 = arith.constant 0 : index
    %0 = vector.load %arg1[%c0, %c0_0] : memref<32x128xf32, #tpu.memory_space<vmem>>, vector<32x128xf32>
    %c0_1 = arith.constant 0 : index
    %c0_2 = arith.constant 0 : index
    %1 = vector.load %arg2[%c0_1, %c0_2] : memref<1x128xf32, #tpu.memory_space<vmem>>, vector<1x128xf32>
    %2 = vector.broadcast %1 : vector<1x128xf32> to vector<32x128xf32>
    %3 = arith.mulf %0, %2 : vector<32x128xf32>
    %c0_3 = arith.constant 0 : index
    %c0_4 = arith.constant 0 : index
    %4 = vector.load %arg3[%c0_3, %c0_4] : memref<1x128xf32, #tpu.memory_space<vmem>>, vector<1x128xf32>
    %5 = vector.broadcast %4 : vector<1x128xf32> to vector<32x128xf32>
    %6 = arith.addf %3, %5 : vector<32x128xf32>
    %cst = arith.constant 0.000000e+00 : f32
    %7 = vector.broadcast %cst : f32 to vector<32x128xf32>
    %8 = arith.cmpf oge, %6, %7 : vector<32x128xf32>
    %cst_5 = arith.constant 0.00999999977 : f32
    %9 = vector.broadcast %cst_5 : f32 to vector<32x128xf32>
    %10 = arith.mulf %9, %6 : vector<32x128xf32>
    %11 = arith.select %8, %6, %10 : vector<32x128xi1>, vector<32x128xf32>
    %c0_6 = arith.constant 0 : index
    %c0_7 = arith.constant 0 : index
    %12 = vector.load %arg4[%c0_6, %c0_7] : memref<32x128xf32, #tpu.memory_space<vmem>>, vector<32x128xf32>
    tpu.vector_store %arg4[%c0_6, %c0_7], %11 {strides = array<i32>} : memref<32x128xf32, #tpu.memory_space<vmem>>, vector<32x128xf32>,
    return
  }
  func.func @transform_0(%arg0: i32) -> (i32, i32) {
    %c0_i32 = arith.constant 0 : i32
    %c0_i32_0 = arith.constant 0 : i32
    return %arg0, %c0_i32 : i32, i32
  }
  func.func @transform_1(%arg0: i32) -> (i32, i32) {
    %c0_i32 = arith.constant 0 : i32
    %c0_i32_0 = arith.constant 0 : i32
    %c0_i32_1 = arith.constant 0 : i32
    return %c0_i32, %c0_i32_0 : i32, i32
  }
  func.func @transform_2(%arg0: i32) -> (i32, i32) {
    %c0_i32 = arith.constant 0 : i32
    %c0_i32_0 = arith.constant 0 : i32
    %c0_i32_1 = arith.constant 0 : i32
    return %c0_i32, %c0_i32_0 : i32, i32
  }
  func.func @transform_3(%arg0: i32) -> (i32, i32) {
    %c0_i32 = arith.constant 0 : i32
    %c0_i32_0 = arith.constant 0 : i32
    return %arg0, %c0_i32 : i32, i32
  }
}

module attributes {stable_mosaic.version = 11 : i64} {
  func.func @_vq_kernel(%arg0: i32, %arg1: memref<32x128xf32, #tpu.memory_space<vmem>>, %arg2: memref<128x128xf32, #tpu.memory_space<vmem>>, %arg3: memref<1x128xf32, #tpu.memory_space<vmem>>, %arg4: memref<32x128xf32, #tpu.memory_space<vmem>>, %arg5: memref<1x1x128xf32, #tpu.memory_space<vmem>>) attributes {dimension_semantics = [#tpu.dimension_semantics<parallel>], iteration_bounds = array<i64: 1>, scalar_prefetch = 0 : i64, scratch_operands = 0 : i64, tpu.core_type = #tpu.core_type<tc>, window_params = [{transform_indices = @transform_0, window_bounds = array<i64: 32, 128>}, {pipeline_mode = #tpu.pipeline_mode<synchronous>, transform_indices = @transform_1, window_bounds = array<i64: 128, 128>}, {pipeline_mode = #tpu.pipeline_mode<synchronous>, transform_indices = @transform_2, window_bounds = array<i64: 1, 128>}, {transform_indices = @transform_3, window_bounds = array<i64: 32, 128>}, {transform_indices = @transform_4, window_bounds = array<i64: 1, 1, 128>}]} {
    %c0 = arith.constant 0 : index
    %c0_0 = arith.constant 0 : index
    %0 = vector.load %arg1[%c0, %c0_0] : memref<32x128xf32, #tpu.memory_space<vmem>>, vector<32x128xf32>
    %c0_1 = arith.constant 0 : index
    %c0_2 = arith.constant 0 : index
    %1 = vector.load %arg2[%c0_1, %c0_2] : memref<128x128xf32, #tpu.memory_space<vmem>>, vector<128x128xf32>
    %2 = arith.mulf %0, %0 : vector<32x128xf32>
    %cst = arith.constant dense<0.000000e+00> : vector<32xf32>
    %3 = vector.multi_reduction <add>, %2, %cst [1] : vector<32x128xf32> to vector<32xf32>
    %4 = vector.shape_cast %3 : vector<32xf32> to vector<32x1xf32>
    %cst_3 = arith.constant dense<0.000000e+00> : vector<32x128xf32>
    %5 = tpu.matmul %0, %1, %cst_3 {dimension_numbers = #tpu.dot_dimension_numbers<[1], [1], [0], [0], [0, 0, 1, 0], [], []>} : vector<32x128xf32>, vector<128x128xf32>, vector<32x128xf32> -> vector<32x128xf32>
    %cst_4 = arith.constant 2.000000e+00 : f32
    %6 = vector.broadcast %cst_4 : f32 to vector<32x128xf32>
    %7 = arith.mulf %6, %5 : vector<32x128xf32>
    %8 = vector.broadcast %4 : vector<32x1xf32> to vector<32x128xf32>
    %9 = arith.subf %8, %7 : vector<32x128xf32>
    %c0_5 = arith.constant 0 : index
    %c0_6 = arith.constant 0 : index
    %10 = vector.load %arg3[%c0_5, %c0_6] : memref<1x128xf32, #tpu.memory_space<vmem>>, vector<1x128xf32>
    %11 = vector.broadcast %10 : vector<1x128xf32> to vector<32x128xf32>
    %12 = arith.addf %9, %11 : vector<32x128xf32>
    %cst_7 = arith.constant dense<0x7F800000> : vector<32xf32>
    %13 = vector.multi_reduction <minimumf>, %12, %cst_7 [1] : vector<32x128xf32> to vector<32xf32>
    %14 = vector.shape_cast %13 : vector<32xf32> to vector<32x1xf32>
    %15 = tpu.iota {dimensions = array<i32: 1>} : vector<32x128xi32>
    %16 = vector.broadcast %14 : vector<32x1xf32> to vector<32x128xf32>
    %17 = arith.cmpf ole, %12, %16 : vector<32x128xf32>
    %c128_i32 = arith.constant 128 : i32
    %18 = vector.broadcast %c128_i32 : i32 to vector<32x128xi32>
    %19 = arith.select %17, %15, %18 : vector<32x128xi1>, vector<32x128xi32>
    %cst_8 = arith.constant dense<2147483647> : vector<32xi32>
    %20 = vector.multi_reduction <minsi>, %19, %cst_8 [1] : vector<32x128xi32> to vector<32xi32>
    %21 = vector.shape_cast %20 : vector<32xi32> to vector<32x1xi32>
    %22 = vector.broadcast %21 : vector<32x1xi32> to vector<32x128xi32>
    %23 = arith.cmpi eq, %15, %22 : vector<32x128xi32>
    %24 = arith.extui %23 : vector<32x128xi1> to vector<32x128xi32>
    %25 = arith.sitofp %24 : vector<32x128xi32> to vector<32x128xf32>
    %cst_9 = arith.constant dense<0.000000e+00> : vector<32x128xf32>
    %26 = tpu.matmul %25, %1, %cst_9 {dimension_numbers = #tpu.dot_dimension_numbers<[1], [0], [0], [1], [0, 0, 1, 1], [], []>} : vector<32x128xf32>, vector<128x128xf32>, vector<32x128xf32> -> vector<32x128xf32>
    %c0_10 = arith.constant 0 : index
    %c0_11 = arith.constant 0 : index
    %27 = vector.load %arg4[%c0_10, %c0_11] : memref<32x128xf32, #tpu.memory_space<vmem>>, vector<32x128xf32>
    tpu.vector_store %arg4[%c0_10, %c0_11], %26 {strides = array<i32>} : memref<32x128xf32, #tpu.memory_space<vmem>>, vector<32x128xf32>,
    %c32_i32 = arith.constant 32 : i32
    %28 = arith.muli %arg0, %c32_i32 : i32
    %29 = tpu.iota {dimensions = array<i32: 0>} : vector<32x1xi32>
    %30 = vector.broadcast %28 : i32 to vector<32x1xi32>
    %31 = arith.addi %30, %29 : vector<32x1xi32>
    %c32_i32_12 = arith.constant 32 : i32
    %32 = vector.broadcast %c32_i32_12 : i32 to vector<32x1xi32>
    %33 = arith.cmpi slt, %31, %32 : vector<32x1xi32>
    %34 = arith.extui %33 : vector<32x1xi1> to vector<32x1xi32>
    %35 = arith.sitofp %34 : vector<32x1xi32> to vector<32x1xf32>
    %36 = arith.subf %26, %0 : vector<32x128xf32>
    %37 = vector.broadcast %35 : vector<32x1xf32> to vector<32x128xf32>
    %38 = arith.mulf %36, %37 : vector<32x128xf32>
    %39 = arith.mulf %38, %38 : vector<32x128xf32>
    %40 = vector.shape_cast %39 : vector<32x128xf32> to vector<1x32x128xf32>
    %cst_13 = arith.constant dense<0.000000e+00> : vector<1xf32>
    %41 = vector.multi_reduction <add>, %40, %cst_13 [1, 2] : vector<1x32x128xf32> to vector<1xf32>
    %42 = vector.shape_cast %41 : vector<1xf32> to vector<1x1x1xf32>
    %43 = vector.extract %42[0, 0, 0] : f32 from vector<1x1x1xf32>
    %44 = vector.broadcast %43 : f32 to vector<1x1x128xf32>
    %c0_14 = arith.constant 0 : index
    %c0_15 = arith.constant 0 : index
    %c0_16 = arith.constant 0 : index
    %45 = vector.load %arg5[%c0_14, %c0_15, %c0_16] : memref<1x1x128xf32, #tpu.memory_space<vmem>>, vector<1x1x128xf32>
    tpu.vector_store %arg5[%c0_14, %c0_15, %c0_16], %44 {strides = array<i32>} : memref<1x1x128xf32, #tpu.memory_space<vmem>>, vector<1x1x128xf32>,
    return
  }
  func.func @transform_0(%arg0: i32) -> (i32, i32) {
    %c0_i32 = arith.constant 0 : i32
    %c0_i32_0 = arith.constant 0 : i32
    return %arg0, %c0_i32 : i32, i32
  }
  func.func @transform_1(%arg0: i32) -> (i32, i32) {
    %c0_i32 = arith.constant 0 : i32
    %c0_i32_0 = arith.constant 0 : i32
    %c0_i32_1 = arith.constant 0 : i32
    return %c0_i32, %c0_i32_0 : i32, i32
  }
  func.func @transform_2(%arg0: i32) -> (i32, i32) {
    %c0_i32 = arith.constant 0 : i32
    %c0_i32_0 = arith.constant 0 : i32
    %c0_i32_1 = arith.constant 0 : i32
    return %c0_i32, %c0_i32_0 : i32, i32
  }
  func.func @transform_3(%arg0: i32) -> (i32, i32) {
    %c0_i32 = arith.constant 0 : i32
    %c0_i32_0 = arith.constant 0 : i32
    return %arg0, %c0_i32 : i32, i32
  }
  func.func @transform_4(%arg0: i32) -> (i32, i32, i32) {
    %c0_i32 = arith.constant 0 : i32
    %c0_i32_0 = arith.constant 0 : i32
    %c0_i32_1 = arith.constant 0 : i32
    return %arg0, %c0_i32, %c0_i32_0 : i32, i32, i32
  }
}

module attributes {stable_mosaic.version = 11 : i64} {
  func.func @_mm_bias_stats_kernel(%arg0: i32, %arg1: memref<64x256xbf16, #tpu.memory_space<vmem>>, %arg2: memref<256x256xbf16, #tpu.memory_space<vmem>>, %arg3: memref<1x256xf32, #tpu.memory_space<vmem>>, %arg4: memref<64x256xf32, #tpu.memory_space<vmem>>, %arg5: memref<1x2x256xf32, #tpu.memory_space<vmem>>) attributes {dimension_semantics = [#tpu.dimension_semantics<parallel>], iteration_bounds = array<i64: 1>, scalar_prefetch = 0 : i64, scratch_operands = 0 : i64, tpu.core_type = #tpu.core_type<tc>, window_params = [{transform_indices = @transform_0, window_bounds = array<i64: 64, 256>}, {pipeline_mode = #tpu.pipeline_mode<synchronous>, transform_indices = @transform_1, window_bounds = array<i64: 256, 256>}, {pipeline_mode = #tpu.pipeline_mode<synchronous>, transform_indices = @transform_2, window_bounds = array<i64: 1, 256>}, {transform_indices = @transform_3, window_bounds = array<i64: 64, 256>}, {transform_indices = @transform_4, window_bounds = array<i64: 1, 2, 256>}]} {
    %c0 = arith.constant 0 : index
    %c0_0 = arith.constant 0 : index
    %0 = vector.load %arg1[%c0, %c0_0] : memref<64x256xbf16, #tpu.memory_space<vmem>>, vector<64x256xbf16>
    %c0_1 = arith.constant 0 : index
    %c0_2 = arith.constant 0 : index
    %1 = vector.load %arg2[%c0_1, %c0_2] : memref<256x256xbf16, #tpu.memory_space<vmem>>, vector<256x256xbf16>
    %cst = arith.constant dense<0.000000e+00> : vector<64x256xf32>
    %2 = tpu.matmul %0, %1, %cst {dimension_numbers = #tpu.dot_dimension_numbers<[1], [0], [0], [1], [0, 0, 1, 1], [], []>} : vector<64x256xbf16>, vector<256x256xbf16>, vector<64x256xf32> -> vector<64x256xf32>
    %c0_3 = arith.constant 0 : index
    %c0_4 = arith.constant 0 : index
    %3 = vector.load %arg3[%c0_3, %c0_4] : memref<1x256xf32, #tpu.memory_space<vmem>>, vector<1x256xf32>
    %4 = vector.broadcast %3 : vector<1x256xf32> to vector<64x256xf32>
    %5 = arith.addf %2, %4 : vector<64x256xf32>
    %c0_5 = arith.constant 0 : index
    %c0_6 = arith.constant 0 : index
    %6 = vector.load %arg4[%c0_5, %c0_6] : memref<64x256xf32, #tpu.memory_space<vmem>>, vector<64x256xf32>
    tpu.vector_store %arg4[%c0_5, %c0_6], %5 {strides = array<i32>} : memref<64x256xf32, #tpu.memory_space<vmem>>, vector<64x256xf32>,
    %c64_i32 = arith.constant 64 : i32
    %7 = arith.muli %arg0, %c64_i32 : i32
    %8 = tpu.iota {dimensions = array<i32: 0>} : vector<64x1xi32>
    %9 = vector.broadcast %7 : i32 to vector<64x1xi32>
    %10 = arith.addi %9, %8 : vector<64x1xi32>
    %c50_i32 = arith.constant 50 : i32
    %11 = vector.broadcast %c50_i32 : i32 to vector<64x1xi32>
    %12 = arith.cmpi slt, %10, %11 : vector<64x1xi32>
    %13 = arith.extui %12 : vector<64x1xi1> to vector<64x1xi32>
    %14 = arith.sitofp %13 : vector<64x1xi32> to vector<64x1xf32>
    %15 = vector.broadcast %14 : vector<64x1xf32> to vector<64x256xf32>
    %16 = arith.mulf %5, %15 : vector<64x256xf32>
    %cst_7 = arith.constant dense<0.000000e+00> : vector<256xf32>
    %17 = vector.multi_reduction <add>, %16, %cst_7 [0] : vector<64x256xf32> to vector<256xf32>
    %18 = vector.shape_cast %17 : vector<256xf32> to vector<1x256xf32>
    %19 = arith.mulf %16, %16 : vector<64x256xf32>
    %cst_8 = arith.constant dense<0.000000e+00> : vector<256xf32>
    %20 = vector.multi_reduction <add>, %19, %cst_8 [0] : vector<64x256xf32> to vector<256xf32>
    %21 = vector.shape_cast %20 : vector<256xf32> to vector<1x256xf32>
    %22 = tpu.concatenate %18, %21 in 0 : vector<1x256xf32>, vector<1x256xf32> -> vector<2x256xf32>
    %23 = vector.shape_cast %22 : vector<2x256xf32> to vector<1x2x256xf32>
    %c0_9 = arith.constant 0 : index
    %c0_10 = arith.constant 0 : index
    %c0_11 = arith.constant 0 : index
    %24 = vector.load %arg5[%c0_9, %c0_10, %c0_11] : memref<1x2x256xf32, #tpu.memory_space<vmem>>, vector<1x2x256xf32>
    tpu.vector_store %arg5[%c0_9, %c0_10, %c0_11], %23 {strides = array<i32>} : memref<1x2x256xf32, #tpu.memory_space<vmem>>, vector<1x2x256xf32>,
    return
  }
  func.func @transform_0(%arg0: i32) -> (i32, i32) {
    %c0_i32 = arith.constant 0 : i32
    %c0_i32_0 = arith.constant 0 : i32
    return %arg0, %c0_i32 : i32, i32
  }
  func.func @transform_1(%arg0: i32) -> (i32, i32) {
    %c0_i32 = arith.constant 0 : i32
    %c0_i32_0 = arith.constant 0 : i32
    %c0_i32_1 = arith.constant 0 : i32
    return %c0_i32, %c0_i32_0 : i32, i32
  }
  func.func @transform_2(%arg0: i32) -> (i32, i32) {
    %c0_i32 = arith.constant 0 : i32
    %c0_i32_0 = arith.constant 0 : i32
    %c0_i32_1 = arith.constant 0 : i32
    return %c0_i32, %c0_i32_0 : i32, i32
  }
  func.func @transform_3(%arg0: i32) -> (i32, i32) {
    %c0_i32 = arith.constant 0 : i32
    %c0_i32_0 = arith.constant 0 : i32
    return %arg0, %c0_i32 : i32, i32
  }
  func.func @transform_4(%arg0: i32) -> (i32, i32, i32) {
    %c0_i32 = arith.constant 0 : i32
    %c0_i32_0 = arith.constant 0 : i32
    %c0_i32_1 = arith.constant 0 : i32
    return %arg0, %c0_i32, %c0_i32_0 : i32, i32, i32
  }
}

module attributes {stable_mosaic.version = 11 : i64} {
  func.func @_scale_shift_act_kernel(%arg0: i32, %arg1: memref<64x256xf32, #tpu.memory_space<vmem>>, %arg2: memref<1x256xf32, #tpu.memory_space<vmem>>, %arg3: memref<1x256xf32, #tpu.memory_space<vmem>>, %arg4: memref<64x256xbf16, #tpu.memory_space<vmem>>) attributes {dimension_semantics = [#tpu.dimension_semantics<parallel>], iteration_bounds = array<i64: 1>, scalar_prefetch = 0 : i64, scratch_operands = 0 : i64, tpu.core_type = #tpu.core_type<tc>, window_params = [{transform_indices = @transform_0, window_bounds = array<i64: 64, 256>}, {pipeline_mode = #tpu.pipeline_mode<synchronous>, transform_indices = @transform_1, window_bounds = array<i64: 1, 256>}, {pipeline_mode = #tpu.pipeline_mode<synchronous>, transform_indices = @transform_2, window_bounds = array<i64: 1, 256>}, {transform_indices = @transform_3, window_bounds = array<i64: 64, 256>}]} {
    %c0 = arith.constant 0 : index
    %c0_0 = arith.constant 0 : index
    %0 = vector.load %arg1[%c0, %c0_0] : memref<64x256xf32, #tpu.memory_space<vmem>>, vector<64x256xf32>
    %c0_1 = arith.constant 0 : index
    %c0_2 = arith.constant 0 : index
    %1 = vector.load %arg2[%c0_1, %c0_2] : memref<1x256xf32, #tpu.memory_space<vmem>>, vector<1x256xf32>
    %2 = vector.broadcast %1 : vector<1x256xf32> to vector<64x256xf32>
    %3 = arith.mulf %0, %2 : vector<64x256xf32>
    %c0_3 = arith.constant 0 : index
    %c0_4 = arith.constant 0 : index
    %4 = vector.load %arg3[%c0_3, %c0_4] : memref<1x256xf32, #tpu.memory_space<vmem>>, vector<1x256xf32>
    %5 = vector.broadcast %4 : vector<1x256xf32> to vector<64x256xf32>
    %6 = arith.addf %3, %5 : vector<64x256xf32>
    %cst = arith.constant 0.000000e+00 : f32
    %7 = vector.broadcast %cst : f32 to vector<64x256xf32>
    %8 = arith.cmpf oge, %6, %7 : vector<64x256xf32>
    %cst_5 = arith.constant 0.00999999977 : f32
    %9 = vector.broadcast %cst_5 : f32 to vector<64x256xf32>
    %10 = arith.mulf %9, %6 : vector<64x256xf32>
    %11 = arith.select %8, %6, %10 : vector<64x256xi1>, vector<64x256xf32>
    %12 = arith.truncf %11 : vector<64x256xf32> to vector<64x256xbf16>
    %c0_6 = arith.constant 0 : index
    %c0_7 = arith.constant 0 : index
    %13 = vector.load %arg4[%c0_6, %c0_7] : memref<64x256xbf16, #tpu.memory_space<vmem>>, vector<64x256xbf16>
    tpu.vector_store %arg4[%c0_6, %c0_7], %12 {strides = array<i32>} : memref<64x256xbf16, #tpu.memory_space<vmem>>, vector<64x256xbf16>,
    return
  }
  func.func @transform_0(%arg0: i32) -> (i32, i32) {
    %c0_i32 = arith.constant 0 : i32
    %c0_i32_0 = arith.constant 0 : i32
    return %arg0, %c0_i32 : i32, i32
  }
  func.func @transform_1(%arg0: i32) -> (i32, i32) {
    %c0_i32 = arith.constant 0 : i32
    %c0_i32_0 = arith.constant 0 : i32
    %c0_i32_1 = arith.constant 0 : i32
    return %c0_i32, %c0_i32_0 : i32, i32
  }
  func.func @transform_2(%arg0: i32) -> (i32, i32) {
    %c0_i32 = arith.constant 0 : i32
    %c0_i32_0 = arith.constant 0 : i32
    %c0_i32_1 = arith.constant 0 : i32
    return %c0_i32, %c0_i32_0 : i32, i32
  }
  func.func @transform_3(%arg0: i32) -> (i32, i32) {
    %c0_i32 = arith.constant 0 : i32
    %c0_i32_0 = arith.constant 0 : i32
    return %arg0, %c0_i32 : i32, i32
  }
}

module attributes {stable_mosaic.version = 11 : i64} {
  func.func @_mm_bias_stats_kernel(%arg0: i32, %arg1: memref<176x256xbf16, #tpu.memory_space<vmem>>, %arg2: memref<256x128xbf16, #tpu.memory_space<vmem>>, %arg3: memref<1x128xf32, #tpu.memory_space<vmem>>, %arg4: memref<176x128xf32, #tpu.memory_space<vmem>>, %arg5: memref<1x2x128xf32, #tpu.memory_space<vmem>>) attributes {dimension_semantics = [#tpu.dimension_semantics<parallel>], iteration_bounds = array<i64: 1>, scalar_prefetch = 0 : i64, scratch_operands = 0 : i64, tpu.core_type = #tpu.core_type<tc>, window_params = [{transform_indices = @transform_0, window_bounds = array<i64: 176, 256>}, {pipeline_mode = #tpu.pipeline_mode<synchronous>, transform_indices = @transform_1, window_bounds = array<i64: 256, 128>}, {pipeline_mode = #tpu.pipeline_mode<synchronous>, transform_indices = @transform_2, window_bounds = array<i64: 1, 128>}, {transform_indices = @transform_3, window_bounds = array<i64: 176, 128>}, {transform_indices = @transform_4, window_bounds = array<i64: 1, 2, 128>}]} {
    %c0 = arith.constant 0 : index
    %c0_0 = arith.constant 0 : index
    %0 = vector.load %arg1[%c0, %c0_0] : memref<176x256xbf16, #tpu.memory_space<vmem>>, vector<176x256xbf16>
    %c0_1 = arith.constant 0 : index
    %c0_2 = arith.constant 0 : index
    %1 = vector.load %arg2[%c0_1, %c0_2] : memref<256x128xbf16, #tpu.memory_space<vmem>>, vector<256x128xbf16>
    %cst = arith.constant dense<0.000000e+00> : vector<176x128xf32>
    %2 = tpu.matmul %0, %1, %cst {dimension_numbers = #tpu.dot_dimension_numbers<[1], [0], [0], [1], [0, 0, 1, 1], [], []>} : vector<176x256xbf16>, vector<256x128xbf16>, vector<176x128xf32> -> vector<176x128xf32>
    %c0_3 = arith.constant 0 : index
    %c0_4 = arith.constant 0 : index
    %3 = vector.load %arg3[%c0_3, %c0_4] : memref<1x128xf32, #tpu.memory_space<vmem>>, vector<1x128xf32>
    %4 = vector.broadcast %3 : vector<1x128xf32> to vector<176x128xf32>
    %5 = arith.addf %2, %4 : vector<176x128xf32>
    %c0_5 = arith.constant 0 : index
    %c0_6 = arith.constant 0 : index
    %6 = vector.load %arg4[%c0_5, %c0_6] : memref<176x128xf32, #tpu.memory_space<vmem>>, vector<176x128xf32>
    tpu.vector_store %arg4[%c0_5, %c0_6], %5 {strides = array<i32>} : memref<176x128xf32, #tpu.memory_space<vmem>>, vector<176x128xf32>,
    %c176_i32 = arith.constant 176 : i32
    %7 = arith.muli %arg0, %c176_i32 : i32
    %8 = tpu.iota {dimensions = array<i32: 0>} : vector<176x1xi32>
    %9 = vector.broadcast %7 : i32 to vector<176x1xi32>
    %10 = arith.addi %9, %8 : vector<176x1xi32>
    %c162_i32 = arith.constant 162 : i32
    %11 = vector.broadcast %c162_i32 : i32 to vector<176x1xi32>
    %12 = arith.cmpi slt, %10, %11 : vector<176x1xi32>
    %13 = arith.extui %12 : vector<176x1xi1> to vector<176x1xi32>
    %14 = arith.sitofp %13 : vector<176x1xi32> to vector<176x1xf32>
    %15 = vector.broadcast %14 : vector<176x1xf32> to vector<176x128xf32>
    %16 = arith.mulf %5, %15 : vector<176x128xf32>
    %cst_7 = arith.constant dense<0.000000e+00> : vector<128xf32>
    %17 = vector.multi_reduction <add>, %16, %cst_7 [0] : vector<176x128xf32> to vector<128xf32>
    %18 = vector.shape_cast %17 : vector<128xf32> to vector<1x128xf32>
    %19 = arith.mulf %16, %16 : vector<176x128xf32>
    %cst_8 = arith.constant dense<0.000000e+00> : vector<128xf32>
    %20 = vector.multi_reduction <add>, %19, %cst_8 [0] : vector<176x128xf32> to vector<128xf32>
    %21 = vector.shape_cast %20 : vector<128xf32> to vector<1x128xf32>
    %22 = tpu.concatenate %18, %21 in 0 : vector<1x128xf32>, vector<1x128xf32> -> vector<2x128xf32>
    %23 = vector.shape_cast %22 : vector<2x128xf32> to vector<1x2x128xf32>
    %c0_9 = arith.constant 0 : index
    %c0_10 = arith.constant 0 : index
    %c0_11 = arith.constant 0 : index
    %24 = vector.load %arg5[%c0_9, %c0_10, %c0_11] : memref<1x2x128xf32, #tpu.memory_space<vmem>>, vector<1x2x128xf32>
    tpu.vector_store %arg5[%c0_9, %c0_10, %c0_11], %23 {strides = array<i32>} : memref<1x2x128xf32, #tpu.memory_space<vmem>>, vector<1x2x128xf32>,
    return
  }
  func.func @transform_0(%arg0: i32) -> (i32, i32) {
    %c0_i32 = arith.constant 0 : i32
    %c0_i32_0 = arith.constant 0 : i32
    return %arg0, %c0_i32 : i32, i32
  }
  func.func @transform_1(%arg0: i32) -> (i32, i32) {
    %c0_i32 = arith.constant 0 : i32
    %c0_i32_0 = arith.constant 0 : i32
    %c0_i32_1 = arith.constant 0 : i32
    return %c0_i32, %c0_i32_0 : i32, i32
  }
  func.func @transform_2(%arg0: i32) -> (i32, i32) {
    %c0_i32 = arith.constant 0 : i32
    %c0_i32_0 = arith.constant 0 : i32
    %c0_i32_1 = arith.constant 0 : i32
    return %c0_i32, %c0_i32_0 : i32, i32
  }
  func.func @transform_3(%arg0: i32) -> (i32, i32) {
    %c0_i32 = arith.constant 0 : i32
    %c0_i32_0 = arith.constant 0 : i32
    return %arg0, %c0_i32 : i32, i32
  }
  func.func @transform_4(%arg0: i32) -> (i32, i32, i32) {
    %c0_i32 = arith.constant 0 : i32
    %c0_i32_0 = arith.constant 0 : i32
    %c0_i32_1 = arith.constant 0 : i32
    return %arg0, %c0_i32, %c0_i32_0 : i32, i32, i32
  }
}

module attributes {stable_mosaic.version = 11 : i64} {
  func.func @_scale_shift_act_kernel(%arg0: i32, %arg1: memref<176x128xf32, #tpu.memory_space<vmem>>, %arg2: memref<1x128xf32, #tpu.memory_space<vmem>>, %arg3: memref<1x128xf32, #tpu.memory_space<vmem>>, %arg4: memref<176x128xbf16, #tpu.memory_space<vmem>>) attributes {dimension_semantics = [#tpu.dimension_semantics<parallel>], iteration_bounds = array<i64: 1>, scalar_prefetch = 0 : i64, scratch_operands = 0 : i64, tpu.core_type = #tpu.core_type<tc>, window_params = [{transform_indices = @transform_0, window_bounds = array<i64: 176, 128>}, {pipeline_mode = #tpu.pipeline_mode<synchronous>, transform_indices = @transform_1, window_bounds = array<i64: 1, 128>}, {pipeline_mode = #tpu.pipeline_mode<synchronous>, transform_indices = @transform_2, window_bounds = array<i64: 1, 128>}, {transform_indices = @transform_3, window_bounds = array<i64: 176, 128>}]} {
    %c0 = arith.constant 0 : index
    %c0_0 = arith.constant 0 : index
    %0 = vector.load %arg1[%c0, %c0_0] : memref<176x128xf32, #tpu.memory_space<vmem>>, vector<176x128xf32>
    %c0_1 = arith.constant 0 : index
    %c0_2 = arith.constant 0 : index
    %1 = vector.load %arg2[%c0_1, %c0_2] : memref<1x128xf32, #tpu.memory_space<vmem>>, vector<1x128xf32>
    %2 = vector.broadcast %1 : vector<1x128xf32> to vector<176x128xf32>
    %3 = arith.mulf %0, %2 : vector<176x128xf32>
    %c0_3 = arith.constant 0 : index
    %c0_4 = arith.constant 0 : index
    %4 = vector.load %arg3[%c0_3, %c0_4] : memref<1x128xf32, #tpu.memory_space<vmem>>, vector<1x128xf32>
    %5 = vector.broadcast %4 : vector<1x128xf32> to vector<176x128xf32>
    %6 = arith.addf %3, %5 : vector<176x128xf32>
    %cst = arith.constant 0.000000e+00 : f32
    %7 = vector.broadcast %cst : f32 to vector<176x128xf32>
    %8 = arith.cmpf oge, %6, %7 : vector<176x128xf32>
    %cst_5 = arith.constant 0.00999999977 : f32
    %9 = vector.broadcast %cst_5 : f32 to vector<176x128xf32>
    %10 = arith.mulf %9, %6 : vector<176x128xf32>
    %11 = arith.select %8, %6, %10 : vector<176x128xi1>, vector<176x128xf32>
    %12 = arith.truncf %11 : vector<176x128xf32> to vector<176x128xbf16>
    %c0_6 = arith.constant 0 : index
    %c0_7 = arith.constant 0 : index
    %13 = vector.load %arg4[%c0_6, %c0_7] : memref<176x128xbf16, #tpu.memory_space<vmem>>, vector<176x128xbf16>
    tpu.vector_store %arg4[%c0_6, %c0_7], %12 {strides = array<i32>} : memref<176x128xbf16, #tpu.memory_space<vmem>>, vector<176x128xbf16>,
    return
  }
  func.func @transform_0(%arg0: i32) -> (i32, i32) {
    %c0_i32 = arith.constant 0 : i32
    %c0_i32_0 = arith.constant 0 : i32
    return %arg0, %c0_i32 : i32, i32
  }
  func.func @transform_1(%arg0: i32) -> (i32, i32) {
    %c0_i32 = arith.constant 0 : i32
    %c0_i32_0 = arith.constant 0 : i32
    %c0_i32_1 = arith.constant 0 : i32
    return %c0_i32, %c0_i32_0 : i32, i32
  }
  func.func @transform_2(%arg0: i32) -> (i32, i32) {
    %c0_i32 = arith.constant 0 : i32
    %c0_i32_0 = arith.constant 0 : i32
    %c0_i32_1 = arith.constant 0 : i32
    return %c0_i32, %c0_i32_0 : i32, i32
  }
  func.func @transform_3(%arg0: i32) -> (i32, i32) {
    %c0_i32 = arith.constant 0 : i32
    %c0_i32_0 = arith.constant 0 : i32
    return %arg0, %c0_i32 : i32, i32
  }
}

module attributes {stable_mosaic.version = 11 : i64} {
  func.func @_mm_bias_tanh_kernel(%arg0: i32, %arg1: memref<512x288xbf16, #tpu.memory_space<vmem>>, %arg2: memref<288x128xbf16, #tpu.memory_space<vmem>>, %arg3: memref<1x128xf32, #tpu.memory_space<vmem>>, %arg4: memref<512x128xf32, #tpu.memory_space<vmem>>) attributes {dimension_semantics = [#tpu.dimension_semantics<parallel>], iteration_bounds = array<i64: 1>, scalar_prefetch = 0 : i64, scratch_operands = 0 : i64, tpu.core_type = #tpu.core_type<tc>, window_params = [{transform_indices = @transform_0, window_bounds = array<i64: 512, 288>}, {pipeline_mode = #tpu.pipeline_mode<synchronous>, transform_indices = @transform_1, window_bounds = array<i64: 288, 128>}, {pipeline_mode = #tpu.pipeline_mode<synchronous>, transform_indices = @transform_2, window_bounds = array<i64: 1, 128>}, {transform_indices = @transform_3, window_bounds = array<i64: 512, 128>}]} {
    %c0 = arith.constant 0 : index
    %c0_0 = arith.constant 0 : index
    %0 = vector.load %arg1[%c0, %c0_0] : memref<512x288xbf16, #tpu.memory_space<vmem>>, vector<512x288xbf16>
    %c0_1 = arith.constant 0 : index
    %c0_2 = arith.constant 0 : index
    %1 = vector.load %arg2[%c0_1, %c0_2] : memref<288x128xbf16, #tpu.memory_space<vmem>>, vector<288x128xbf16>
    %cst = arith.constant dense<0.000000e+00> : vector<512x128xf32>
    %2 = tpu.matmul %0, %1, %cst {dimension_numbers = #tpu.dot_dimension_numbers<[1], [0], [0], [1], [0, 0, 1, 1], [], []>} : vector<512x288xbf16>, vector<288x128xbf16>, vector<512x128xf32> -> vector<512x128xf32>
    %c0_3 = arith.constant 0 : index
    %c0_4 = arith.constant 0 : index
    %3 = vector.load %arg3[%c0_3, %c0_4] : memref<1x128xf32, #tpu.memory_space<vmem>>, vector<1x128xf32>
    %4 = vector.broadcast %3 : vector<1x128xf32> to vector<512x128xf32>
    %5 = arith.addf %2, %4 : vector<512x128xf32>
    %6 = math.tanh %5 : vector<512x128xf32>
    %c0_5 = arith.constant 0 : index
    %c0_6 = arith.constant 0 : index
    %7 = vector.load %arg4[%c0_5, %c0_6] : memref<512x128xf32, #tpu.memory_space<vmem>>, vector<512x128xf32>
    tpu.vector_store %arg4[%c0_5, %c0_6], %6 {strides = array<i32>} : memref<512x128xf32, #tpu.memory_space<vmem>>, vector<512x128xf32>,
    return
  }
  func.func @transform_0(%arg0: i32) -> (i32, i32) {
    %c0_i32 = arith.constant 0 : i32
    %c0_i32_0 = arith.constant 0 : i32
    return %arg0, %c0_i32 : i32, i32
  }
  func.func @transform_1(%arg0: i32) -> (i32, i32) {
    %c0_i32 = arith.constant 0 : i32
    %c0_i32_0 = arith.constant 0 : i32
    %c0_i32_1 = arith.constant 0 : i32
    return %c0_i32, %c0_i32_0 : i32, i32
  }
  func.func @transform_2(%arg0: i32) -> (i32, i32) {
    %c0_i32 = arith.constant 0 : i32
    %c0_i32_0 = arith.constant 0 : i32
    %c0_i32_1 = arith.constant 0 : i32
    return %c0_i32, %c0_i32_0 : i32, i32
  }
  func.func @transform_3(%arg0: i32) -> (i32, i32) {
    %c0_i32 = arith.constant 0 : i32
    %c0_i32_0 = arith.constant 0 : i32
    return %arg0, %c0_i32 : i32, i32
  }
}

</mosaic_0001>

<llo_original>
// kernel: vqvae_forward.13
$region0: #{vqvae_forward.13}
  #allocation0 [shape = 'u32[]', space=smem, size = 0x4, offset = 0x4, fixed_abs, tag = 'smem constant byte address 0x4 - core index']
  #allocation1 [shape = 'u32[144,128]{1,0:T(1,128)}', space=vmem, size = 0x12000, scoped, tag = 'internal scratch']
  %s0 = inlined_call_operand.vmem [shape: f32[128,128], index: 0, kind: input, shape index: {}]
  %s1 = inlined_call_operand.vmem [shape: f32[1,128], index: 1, kind: input, shape index: {}]
  %s2 = inlined_call_operand.vmem [shape: f32[1,128], index: 2, kind: input, shape index: {}]
  %s3 = inlined_call_operand.vmem [shape: bf16[128,128], index: 3, kind: output, shape index: {}]
  %s4 = sld [smem:[#allocation0]]
  $region22: #{vqvae_forward.13} parent=0
    _
  %s6 = ssub.s32 1, %s4
  %s7 = scalar_select 0, %s6, %s4
  // Predicated region
  $region2: #{vqvae_forward.13} parent=0 // pred_check
    _
  $region3: #{vqvae_forward.13} parent=0 // pred_check_branch
    %9 = sbr.rel (0) target = $region5
  $region4: #{vqvae_forward.13} parent=0 // pred_region
    _
  $region5: #{vqvae_forward.13} parent=0 // pred_fallthru
    _
  // Predicated region
  $region6: #{vqvae_forward.13} parent=0 // pred_check
    _
  $region7: #{vqvae_forward.13} parent=0 // pred_check_branch
    %11 = sbr.rel (0) target = $region9
  $region8: #{vqvae_forward.13} parent=0 // pred_region
    _
  $region9: #{vqvae_forward.13} parent=0 // pred_fallthru
    _
  // Predicated region
  $region10: #{vqvae_forward.13} parent=0 // pred_check
    _
  $region11: #{vqvae_forward.13} parent=0 // pred_check_branch
    %13 = sbr.rel (0) target = $region13
  $region12: #{vqvae_forward.13} parent=0 // pred_region
    _
  $region13: #{vqvae_forward.13} parent=0 // pred_fallthru
    _
  %v14 = vld [vmem:[%s0] sm:$0xff]
  %v15 = vld [vmem:[%s0 + $0x8] sm:$0xff]
  %v16 = vld [vmem:[%s0 + $0x10] sm:$0xff]
  %v17 = vld [vmem:[%s0 + $0x18] sm:$0xff]
  %v18 = vld [vmem:[%s0 + $0x20] sm:$0xff]
  %v19 = vld [vmem:[%s0 + $0x28] sm:$0xff]
  %v20 = vld [vmem:[%s0 + $0x30] sm:$0xff]
  %v21 = vld [vmem:[%s0 + $0x38] sm:$0xff]
  %v22 = vld [vmem:[%s0 + $0x40] sm:$0xff]
  %v23 = vld [vmem:[%s0 + $0x48] sm:$0xff]
  %v24 = vld [vmem:[%s0 + $0x50] sm:$0xff]
  %v25 = vld [vmem:[%s0 + $0x58] sm:$0xff]
  %v26 = vld [vmem:[%s0 + $0x60] sm:$0xff]
  %v27 = vld [vmem:[%s0 + $0x68] sm:$0xff]
  %v28 = vld [vmem:[%s0 + $0x70] sm:$0xff]
  %v29 = vld [vmem:[%s0 + $0x78] sm:$0xff]
  %v30 = vld [vmem:[%s1] sm:$0x1]
  %v32 = vlaneseq
  %v33 = vshrl.u32 %v32, 7
  %v34 = vsub.s32 0, %v33
  %v35 = vrot.slane %v30, %v34
  %v37 = vmul.f32 %v14, %v35
  %v38 = vmul.f32 %v15, %v35
  %v39 = vmul.f32 %v16, %v35
  %v40 = vmul.f32 %v17, %v35
  %v41 = vmul.f32 %v18, %v35
  %v42 = vmul.f32 %v19, %v35
  %v43 = vmul.f32 %v20, %v35
  %v44 = vmul.f32 %v21, %v35
  %v45 = vmul.f32 %v22, %v35
  %v46 = vmul.f32 %v23, %v35
  %v47 = vmul.f32 %v24, %v35
  %v48 = vmul.f32 %v25, %v35
  %v49 = vmul.f32 %v26, %v35
  %v50 = vmul.f32 %v27, %v35
  %v51 = vmul.f32 %v28, %v35
  %v52 = vmul.f32 %v29, %v35
  %v53 = vld [vmem:[%s2] sm:$0x1]
  %v55 = vlaneseq
  %v56 = vshrl.u32 %v55, 7
  %v57 = vsub.s32 0, %v56
  %v58 = vrot.slane %v53, %v57
  %v60 = vadd.f32 %v37, %v58
  %v61 = vadd.f32 %v38, %v58
  %v62 = vadd.f32 %v39, %v58
  %v63 = vadd.f32 %v40, %v58
  %v64 = vadd.f32 %v41, %v58
  %v65 = vadd.f32 %v42, %v58
  %v66 = vadd.f32 %v43, %v58
  %v67 = vadd.f32 %v44, %v58
  %v68 = vadd.f32 %v45, %v58
  %v69 = vadd.f32 %v46, %v58
  %v70 = vadd.f32 %v47, %v58
  %v71 = vadd.f32 %v48, %v58
  %v72 = vadd.f32 %v49, %v58
  %v73 = vadd.f32 %v50, %v58
  %v74 = vadd.f32 %v51, %v58
  %v75 = vadd.f32 %v52, %v58
  %vm76 = vcmp.ge.f32.partialorder %v60, 0.0
  %vm77 = vcmp.ge.f32.partialorder %v61, 0.0
  %vm78 = vcmp.ge.f32.partialorder %v62, 0.0
  %vm79 = vcmp.ge.f32.partialorder %v63, 0.0
  %vm80 = vcmp.ge.f32.partialorder %v64, 0.0
  %vm81 = vcmp.ge.f32.partialorder %v65, 0.0
  %vm82 = vcmp.ge.f32.partialorder %v66, 0.0
  %vm83 = vcmp.ge.f32.partialorder %v67, 0.0
  %vm84 = vcmp.ge.f32.partialorder %v68, 0.0
  %vm85 = vcmp.ge.f32.partialorder %v69, 0.0
  %vm86 = vcmp.ge.f32.partialorder %v70, 0.0
  %vm87 = vcmp.ge.f32.partialorder %v71, 0.0
  %vm88 = vcmp.ge.f32.partialorder %v72, 0.0
  %vm89 = vcmp.ge.f32.partialorder %v73, 0.0
  %vm90 = vcmp.ge.f32.partialorder %v74, 0.0
  %vm91 = vcmp.ge.f32.partialorder %v75, 0.0
  %v92 = vmul.f32 %v60, 0.01
  %v93 = vmul.f32 %v61, 0.01
  %v94 = vmul.f32 %v62, 0.01
  %v95 = vmul.f32 %v63, 0.01
  %v96 = vmul.f32 %v64, 0.01
  %v97 = vmul.f32 %v65, 0.01
  %v98 = vmul.f32 %v66, 0.01
  %v99 = vmul.f32 %v67, 0.01
  %v100 = vmul.f32 %v68, 0.01
  %v101 = vmul.f32 %v69, 0.01
  %v102 = vmul.f32 %v70, 0.01
  %v103 = vmul.f32 %v71, 0.01
  %v104 = vmul.f32 %v72, 0.01
  %v105 = vmul.f32 %v73, 0.01
  %v106 = vmul.f32 %v74, 0.01
  %v107 = vmul.f32 %v75, 0.01
  %v108 = vsel %vm76, %v60, %v92
  %v109 = vsel %vm77, %v61, %v93
  %v110 = vsel %vm78, %v62, %v94
  %v111 = vsel %vm79, %v63, %v95
  %v112 = vsel %vm80, %v64, %v96
  %v113 = vsel %vm81, %v65, %v97
  %v114 = vsel %vm82, %v66, %v98
  %v115 = vsel %vm83, %v67, %v99
  %v116 = vsel %vm84, %v68, %v100
  %v117 = vsel %vm85, %v69, %v101
  %v118 = vsel %vm86, %v70, %v102
  %v119 = vsel %vm87, %v71, %v103
  %v120 = vsel %vm88, %v72, %v104
  %v121 = vsel %vm89, %v73, %v105
  %v122 = vsel %vm90, %v74, %v106
  %v123 = vsel %vm91, %v75, %v107
  %v124 = vpack.c.bf16 %v109, %v108
  %v125 = vpack.c.bf16 %v111, %v110
  %v126 = vpack.c.bf16 %v113, %v112
  %v127 = vpack.c.bf16 %v115, %v114
  %v128 = vpack.c.bf16 %v117, %v116
  %v129 = vpack.c.bf16 %v119, %v118
  %v130 = vpack.c.bf16 %v121, %v120
  %v131 = vpack.c.bf16 %v123, %v122
  %v140 = vunpack.c.l.b16 %v124
  %v141 = vunpack.c.h.b16 %v124
  %v142 = vunpack.c.l.b16 %v125
  %v143 = vunpack.c.h.b16 %v125
  %v144 = vunpack.c.l.b16 %v126
  %v145 = vunpack.c.h.b16 %v126
  %v146 = vunpack.c.l.b16 %v127
  %v147 = vunpack.c.h.b16 %v127
  %v148 = vunpack.c.l.b16 %v128
  %v149 = vunpack.c.h.b16 %v128
  %v150 = vunpack.c.l.b16 %v129
  %v151 = vunpack.c.h.b16 %v129
  %v152 = vunpack.c.l.b16 %v130
  %v153 = vunpack.c.h.b16 %v130
  %v154 = vunpack.c.l.b16 %v131
  %v155 = vunpack.c.h.b16 %v131
  %v156 = vpack.c.b16 %v140, %v140
  %v157 = vpack.c.b16 %v141, %v141
  %v158 = vpack.c.b16 %v142, %v142
  %v159 = vpack.c.b16 %v143, %v143
  %v160 = vpack.c.b16 %v144, %v144
  %v161 = vpack.c.b16 %v145, %v145
  %v162 = vpack.c.b16 %v146, %v146
  %v163 = vpack.c.b16 %v147, %v147
  %v164 = vpack.c.b16 %v148, %v148
  %v165 = vpack.c.b16 %v149, %v149
  %v166 = vpack.c.b16 %v150, %v150
  %v167 = vpack.c.b16 %v151, %v151
  %v168 = vpack.c.b16 %v152, %v152
  %v169 = vpack.c.b16 %v153, %v153
  %v170 = vpack.c.b16 %v154, %v154
  %v171 = vpack.c.b16 %v155, %v155
  %188 = vst [vmem:[%s3] sm:$0xf] %v156
  %189 = vst [vmem:[%s3 + $0x4] sm:$0xf] %v157
  %190 = vst [vmem:[%s3 + $0x8] sm:$0xf] %v158
  %191 = vst [vmem:[%s3 + $0xc] sm:$0xf] %v159
  %192 = vst [vmem:[%s3 + $0x10] sm:$0xf] %v160
  %193 = vst [vmem:[%s3 + $0x14] sm:$0xf] %v161
  %194 = vst [vmem:[%s3 + $0x18] sm:$0xf] %v162
  %195 = vst [vmem:[%s3 + $0x1c] sm:$0xf] %v163
  %196 = vst [vmem:[%s3 + $0x20] sm:$0xf] %v164
  %197 = vst [vmem:[%s3 + $0x24] sm:$0xf] %v165
  %198 = vst [vmem:[%s3 + $0x28] sm:$0xf] %v166
  %199 = vst [vmem:[%s3 + $0x2c] sm:$0xf] %v167
  %200 = vst [vmem:[%s3 + $0x30] sm:$0xf] %v168
  %201 = vst [vmem:[%s3 + $0x34] sm:$0xf] %v169
  %202 = vst [vmem:[%s3 + $0x38] sm:$0xf] %v170
  %203 = vst [vmem:[%s3 + $0x3c] sm:$0xf] %v171
  // Predicated region
  $region14: #{vqvae_forward.13} parent=0 // pred_check
    _
  $region15: #{vqvae_forward.13} parent=0 // pred_check_branch
    %205 = sbr.rel (0) target = $region17
  $region16: #{vqvae_forward.13} parent=0 // pred_region
    _
  $region17: #{vqvae_forward.13} parent=0 // pred_fallthru
    _
  // Predicated region
  $region18: #{vqvae_forward.13} parent=0 // pred_check
    _
  $region19: #{vqvae_forward.13} parent=0 // pred_check_branch
    %207 = sbr.rel (0) target = $region21
  $region20: #{vqvae_forward.13} parent=0 // pred_region
    _
  $region21: #{vqvae_forward.13} parent=0 // pred_fallthru
    _

// kernel: vqvae_forward.12
$region0: #{vqvae_forward.12}
  #allocation0 [shape = 'u32[]', space=smem, size = 0x4, offset = 0x4, fixed_abs, tag = 'smem constant byte address 0x4 - core index']
  #allocation1 [shape = 'u32[144,128]{1,0:T(1,128)}', space=vmem, size = 0x12000, scoped, tag = 'internal scratch']
  %s0 = inlined_call_operand.vmem [shape: bf16[128,16], index: 0, kind: input, shape index: {}]
  %s1 = inlined_call_operand.hbm [shape: bf16[16,128], index: 1, kind: input, shape index: {}]
  %s2 = inlined_call_operand.hbm [shape: f32[1,128], index: 2, kind: input, shape index: {}]
  %s3 = inlined_call_operand.vmem [shape: f32[128,128], index: 3, kind: output, shape index: {0}]
  %s4 = inlined_call_operand.vmem [shape: f32[1,2,128], index: 4, kind: output, shape index: {1}]
  %5 = xla_tuple %s3, %s4
  %s6 = sld [smem:[#allocation0]]
  $region38: #{vqvae_forward.12} parent=0
    _
  %s8 = ssub.s32 1, %s6
  %s9 = scalar_select 0, %s8, %s6
  $region1: #{vqvae_forward.12} parent=0
    #allocation2 [shape = 'u8[4096]{0}', space=vmem, size = 0x1000, scoped, tag = 'input window, operand 1, single buffered']
    #allocation3 [shape = 's32[1]{0}', space=sflag, size = 0x4, scoped, tag = 'scoped memory for vqvae_forward.12']
    #allocation4 [shape = 'u8[512]{0}', space=vmem, size = 0x400, scoped, tag = 'input window, operand 2, single buffered']
    #allocation5 [shape = 's32[1]{0}', space=sflag, size = 0x4, scoped, tag = 'scoped memory for vqvae_forward.12']
    %10 = vsyncpa [#allocation3], 0
    %11 = vsyncpa [#allocation5], 0
    // Predicated region
    $region2: #{vqvae_forward.12} parent=1 // pred_check
      _
    $region3: #{vqvae_forward.12} parent=1 // pred_check_branch
      %13 = sbr.rel (0) target = $region5
    $region4: #{vqvae_forward.12} parent=1 // pred_region
      _
    $region5: #{vqvae_forward.12} parent=1 // pred_fallthru
      _
    // Predicated region
    $region6: #{vqvae_forward.12} parent=1 // pred_check
      _
    $region7: #{vqvae_forward.12} parent=1 // pred_check_branch
      %15 = sbr.rel (0) target = $region9
    $region8: #{vqvae_forward.12} parent=1 // pred_region
      %s17 = ssub.s32 128, 128
      %18 = vsyncadd [#allocation3], %s17
      %s19 = sshll.u32 [#allocation2], 4
      %s20 = int_to_ptr.vmem [resolvable:$true] %s19
      %25 = dma.hbm_to_vmem [thread:$0]  %s1, 128, %s20, [#allocation3], 64, 64, 4
    $region9: #{vqvae_forward.12} parent=1 // pred_fallthru
      _
    // Predicated region
    $region10: #{vqvae_forward.12} parent=1 // pred_check
      _
    $region11: #{vqvae_forward.12} parent=1 // pred_check_branch
      %27 = sbr.rel (0) target = $region13
    $region12: #{vqvae_forward.12} parent=1 // pred_region
      %s29 = ssub.s32 16, 16
      %30 = vsyncadd [#allocation5], %s29
      %s32 = sshll.u32 [#allocation4], 4
      %s33 = int_to_ptr.vmem [resolvable:$true] %s32
      %35 = dma.hbm_to_vmem [thread:$0]  %s2, 16, %s33, [#allocation5]
    $region13: #{vqvae_forward.12} parent=1 // pred_fallthru
      _
    // Predicated region
    $region14: #{vqvae_forward.12} parent=1 // pred_check
      _
    $region15: #{vqvae_forward.12} parent=1 // pred_check_branch
      %37 = sbr.rel (0) target = $region17
    $region16: #{vqvae_forward.12} parent=1 // pred_region
      %38 = dma.done [#allocation3], 128
    $region17: #{vqvae_forward.12} parent=1 // pred_fallthru
      _
    // Predicated region
    $region18: #{vqvae_forward.12} parent=1 // pred_check
      _
    $region19: #{vqvae_forward.12} parent=1 // pred_check_branch
      %40 = sbr.rel (0) target = $region21
    $region20: #{vqvae_forward.12} parent=1 // pred_region
      %41 = dma.done [#allocation5], 16
    $region21: #{vqvae_forward.12} parent=1 // pred_fallthru
      _
    %v43 = vld [vmem:[%s0] sm:$0xf]
    %v44 = vld [vmem:[%s0 + $0x4] sm:$0xf]
    %v45 = vld [vmem:[%s0 + $0x8] sm:$0xf]
    %v46 = vld [vmem:[%s0 + $0xc] sm:$0xf]
    %v47 = vld [vmem:[%s0 + $0x10] sm:$0xf]
    %v48 = vld [vmem:[%s0 + $0x14] sm:$0xf]
    %v49 = vld [vmem:[%s0 + $0x18] sm:$0xf]
    %v50 = vld [vmem:[%s0 + $0x1c] sm:$0xf]
    %v51 = vld [vmem:[%s0 + $0x20] sm:$0xf]
    %v52 = vld [vmem:[%s0 + $0x24] sm:$0xf]
    %v53 = vld [vmem:[%s0 + $0x28] sm:$0xf]
    %v54 = vld [vmem:[%s0 + $0x2c] sm:$0xf]
    %v55 = vld [vmem:[%s0 + $0x30] sm:$0xf]
    %v56 = vld [vmem:[%s0 + $0x34] sm:$0xf]
    %v57 = vld [vmem:[%s0 + $0x38] sm:$0xf]
    %v58 = vld [vmem:[%s0 + $0x3c] sm:$0xf]
    %v59 = vld [vmem:[#allocation2] sm:$0xf]
    %v60 = vld [vmem:[#allocation2 + $0x4] sm:$0xf]
    %v61 = vld [vmem:[#allocation4] sm:$0x1]
    %v63 = vlaneseq
    %v64 = vshrl.u32 %v63, 7
    %v65 = vsub.s32 0, %v64
    %v66 = vrot.slane %v61, %v65
    %v84 = vunpack.c.l.b16 %v43
    %v85 = vunpack.c.l.b16 %v44
    %v86 = vunpack.c.l.b16 %v45
    %v87 = vunpack.c.l.b16 %v46
    %v88 = vunpack.c.l.b16 %v47
    %v89 = vunpack.c.l.b16 %v48
    %v90 = vunpack.c.l.b16 %v49
    %v91 = vunpack.c.l.b16 %v50
    %v92 = vunpack.c.l.b16 %v51
    %v93 = vunpack.c.l.b16 %v52
    %v94 = vunpack.c.l.b16 %v53
    %v95 = vunpack.c.l.b16 %v54
    %v96 = vunpack.c.l.b16 %v55
    %v97 = vunpack.c.l.b16 %v56
    %v98 = vunpack.c.l.b16 %v57
    %v99 = vunpack.c.l.b16 %v58
    %v100 = vpack.c.b16 %v85, %v84
    %v101 = vpack.c.b16 %v87, %v86
    %v102 = vpack.c.b16 %v89, %v88
    %v103 = vpack.c.b16 %v91, %v90
    %v104 = vpack.c.b16 %v93, %v92
    %v105 = vpack.c.b16 %v95, %v94
    %v106 = vpack.c.b16 %v97, %v96
    %v107 = vpack.c.b16 %v99, %v98
    %v110 = vunpack.c.l.b16 %v59
    %v111 = vunpack.c.l.b16 %v60
    %v112 = vpack.c.b16 %v111, %v110
    %vm114 = vcmask 130048
    %v116 = vsel %vm114, %v100, 0
    %v119 = vsel %vm114, %v101, 0
    %v122 = vsel %vm114, %v102, 0
    %v125 = vsel %vm114, %v103, 0
    %v128 = vsel %vm114, %v104, 0
    %v131 = vsel %vm114, %v105, 0
    %v134 = vsel %vm114, %v106, 0
    %v137 = vsel %vm114, %v107, 0
    %139 = vmatprep.subr.bf16.mxu0 0
    %140 = vmatpush1.bf16.msra.mxu0 %v112
    %141 = vmatprep.subr.bf16.mxu0 0
    %142 = vmatpush1.bf16.msra.mxu0 0
    %143 = vmatprep.subr.bf16.mxu0 0
    %144 = vmatpush1.bf16.msra.mxu0 0
    %145 = vmatprep.subr.bf16.mxu0 0
    %146 = vmatpush1.bf16.msra.mxu0 0
    %147 = vmatprep.subr.bf16.mxu0 0
    %148 = vmatpush1.bf16.msra.mxu0 0
    %149 = vmatprep.subr.bf16.mxu0 0
    %150 = vmatpush1.bf16.msra.mxu0 0
    %151 = vmatprep.subr.bf16.mxu0 0
    %152 = vmatpush1.bf16.msra.mxu0 0
    %153 = vmatprep.subr.bf16.mxu0 0
    %154 = vmatpush1.bf16.msra.mxu0 0
    %155 = vmatprep.subr.bf16.mxu0 0
    %156 = vmatpush1.bf16.msra.mxu0 0
    %157 = vmatprep.subr.bf16.mxu0 0
    %158 = vmatpush1.bf16.msra.mxu0 0
    %159 = vmatprep.subr.bf16.mxu0 0
    %160 = vmatpush1.bf16.msra.mxu0 0
    %161 = vmatprep.subr.bf16.mxu0 0
    %162 = vmatpush1.bf16.msra.mxu0 0
    %163 = vmatprep.subr.bf16.mxu0 0
    %164 = vmatpush1.bf16.msra.mxu0 0
    %165 = vmatprep.subr.bf16.mxu0 0
    %166 = vmatpush1.bf16.msra.mxu0 0
    %167 = vmatprep.subr.bf16.mxu0 0
    %168 = vmatpush1.bf16.msra.mxu0 0
    %169 = vmatprep.subr.bf16.mxu0 0
    %170 = vmatpush1.bf16.msra.mxu0 0
    %171 = vmatprep.mubr.bf16.mxu0 0
    %172 = vmatmul.mubr.bf16.gmra.mrb[0].mxu0 %v116
    %v173 = vpop.f32.mrb[0].mxu0
    %v174 = vadd.f32 %v66, %v173
    %v175 = vpop.f32.mrb[0].mxu0
    %v176 = vpop.f32.mrb[0].mxu0
    %v177 = vadd.f32 %v66, %v176
    %v178 = vpop.f32.mrb[0].mxu0
    %179 = vmatprep.mubr.bf16.mxu0 0
    %180 = vmatmul.mubr.bf16.gmra.mrb[0].mxu0 %v119
    %v181 = vpop.f32.mrb[0].mxu0
    %v182 = vadd.f32 %v66, %v181
    %v183 = vpop.f32.mrb[0].mxu0
    %v184 = vpop.f32.mrb[0].mxu0
    %v185 = vadd.f32 %v66, %v184
    %v186 = vpop.f32.mrb[0].mxu0
    %187 = vmatprep.mubr.bf16.mxu0 0
    %188 = vmatmul.mubr.bf16.gmra.mrb[0].mxu0 %v122
    %v189 = vpop.f32.mrb[0].mxu0
    %v190 = vadd.f32 %v66, %v189
    %v191 = vpop.f32.mrb[0].mxu0
    %v192 = vpop.f32.mrb[0].mxu0
    %v193 = vadd.f32 %v66, %v192
    %v194 = vpop.f32.mrb[0].mxu0
    %195 = vmatprep.mubr.bf16.mxu0 0
    %196 = vmatmul.mubr.bf16.gmra.mrb[0].mxu0 %v125
    %v197 = vpop.f32.mrb[0].mxu0
    %v198 = vadd.f32 %v66, %v197
    %v199 = vpop.f32.mrb[0].mxu0
    %v200 = vpop.f32.mrb[0].mxu0
    %v201 = vadd.f32 %v66, %v200
    %v202 = vpop.f32.mrb[0].mxu0
    %203 = vmatprep.mubr.bf16.mxu0 0
    %204 = vmatmul.mubr.bf16.gmra.mrb[0].mxu0 %v128
    %v205 = vpop.f32.mrb[0].mxu0
    %v206 = vadd.f32 %v66, %v205
    %v207 = vpop.f32.mrb[0].mxu0
    %v208 = vpop.f32.mrb[0].mxu0
    %v209 = vadd.f32 %v66, %v208
    %v210 = vpop.f32.mrb[0].mxu0
    %211 = vmatprep.mubr.bf16.mxu0 0
    %212 = vmatmul.mubr.bf16.gmra.mrb[0].mxu0 %v131
    %v213 = vpop.f32.mrb[0].mxu0
    %v214 = vadd.f32 %v66, %v213
    %v215 = vpop.f32.mrb[0].mxu0
    %v216 = vpop.f32.mrb[0].mxu0
    %v217 = vadd.f32 %v66, %v216
    %v218 = vpop.f32.mrb[0].mxu0
    %219 = vmatprep.mubr.bf16.mxu0 0
    %220 = vmatmul.mubr.bf16.gmra.mrb[0].mxu0 %v134
    %v221 = vpop.f32.mrb[0].mxu0
    %v222 = vadd.f32 %v66, %v221
    %v223 = vpop.f32.mrb[0].mxu0
    %v224 = vpop.f32.mrb[0].mxu0
    %v225 = vadd.f32 %v66, %v224
    %v226 = vpop.f32.mrb[0].mxu0
    %227 = vmatprep.mubr.bf16.mxu0 0
    %228 = vmatmul.mubr.bf16.gmra.mrb[0].mxu0 %v137
    %v229 = vpop.f32.mrb[0].mxu0
    %v230 = vadd.f32 %v66, %v229
    %v231 = vpop.f32.mrb[0].mxu0
    %v232 = vpop.f32.mrb[0].mxu0
    %v233 = vadd.f32 %v66, %v232
    %v234 = vpop.f32.mrb[0].mxu0
    %235 = vdwg.mxu0
    %236 = vst [vmem:[%s3] sm:$0xff] %v174
    %237 = vst [vmem:[%s3 + $0x8] sm:$0xff] %v177
    %238 = vst [vmem:[%s3 + $0x10] sm:$0xff] %v182
    %239 = vst [vmem:[%s3 + $0x18] sm:$0xff] %v185
    %240 = vst [vmem:[%s3 + $0x20] sm:$0xff] %v190
    %241 = vst [vmem:[%s3 + $0x28] sm:$0xff] %v193
    %242 = vst [vmem:[%s3 + $0x30] sm:$0xff] %v198
    %243 = vst [vmem:[%s3 + $0x38] sm:$0xff] %v201
    %244 = vst [vmem:[%s3 + $0x40] sm:$0xff] %v206
    %245 = vst [vmem:[%s3 + $0x48] sm:$0xff] %v209
    %246 = vst [vmem:[%s3 + $0x50] sm:$0xff] %v214
    %247 = vst [vmem:[%s3 + $0x58] sm:$0xff] %v217
    %248 = vst [vmem:[%s3 + $0x60] sm:$0xff] %v222
    %249 = vst [vmem:[%s3 + $0x68] sm:$0xff] %v225
    %250 = vst [vmem:[%s3 + $0x70] sm:$0xff] %v230
    %251 = vst [vmem:[%s3 + $0x78] sm:$0xff] %v233
    %s252 = smul.u32 0, 128
    %v253 = vlaneseq
    %v254 = vshrl.u32 %v253, 7
    %v255 = vadd.s32 %v254, 8
    %v256 = vadd.s32 %v254, 16
    %v257 = vadd.s32 %v254, 24
    %v258 = vadd.s32 %v254, 32
    %v259 = vadd.s32 %v254, 40
    %v260 = vadd.s32 %v254, 48
    %v261 = vadd.s32 %v254, 56
    %v262 = vadd.s32 %v254, 64
    %v263 = vadd.s32 %v254, 72
    %v264 = vadd.s32 %v254, 80
    %v265 = vadd.s32 %v254, 88
    %v266 = vadd.s32 %v254, 96
    %v267 = vadd.s32 %v254, 104
    %v268 = vadd.s32 %v254, 112
    %v269 = vadd.s32 %v254, 120
    %v270 = vstv %s252
    %v271 = vadd.s32 %v270, %v254
    %v272 = vadd.s32 %v270, %v255
    %v273 = vadd.s32 %v270, %v256
    %v274 = vadd.s32 %v270, %v257
    %v275 = vadd.s32 %v270, %v258
    %v276 = vadd.s32 %v270, %v259
    %v277 = vadd.s32 %v270, %v260
    %v278 = vadd.s32 %v270, %v261
    %v279 = vadd.s32 %v270, %v262
    %v280 = vadd.s32 %v270, %v263
    %v281 = vadd.s32 %v270, %v264
    %v282 = vadd.s32 %v270, %v265
    %v283 = vadd.s32 %v270, %v266
    %v284 = vadd.s32 %v270, %v267
    %v285 = vadd.s32 %v270, %v268
    %v286 = vadd.s32 %v270, %v269
    %vm287 = vcmp.lt.s32.totalorder %v271, 128
    %vm288 = vcmp.lt.s32.totalorder %v272, 128
    %vm289 = vcmp.lt.s32.totalorder %v273, 128
    %vm290 = vcmp.lt.s32.totalorder %v274, 128
    %vm291 = vcmp.lt.s32.totalorder %v275, 128
    %vm292 = vcmp.lt.s32.totalorder %v276, 128
    %vm293 = vcmp.lt.s32.totalorder %v277, 128
    %vm294 = vcmp.lt.s32.totalorder %v278, 128
    %vm295 = vcmp.lt.s32.totalorder %v279, 128
    %vm296 = vcmp.lt.s32.totalorder %v280, 128
    %vm297 = vcmp.lt.s32.totalorder %v281, 128
    %vm298 = vcmp.lt.s32.totalorder %v282, 128
    %vm299 = vcmp.lt.s32.totalorder %v283, 128
    %vm300 = vcmp.lt.s32.totalorder %v284, 128
    %vm301 = vcmp.lt.s32.totalorder %v285, 128
    %vm302 = vcmp.lt.s32.totalorder %v286, 128
    %v303 = vsel %vm287, 1, 0
    %v304 = vsel %vm288, 1, 0
    %v305 = vsel %vm289, 1, 0
    %v306 = vsel %vm290, 1, 0
    %v307 = vsel %vm291, 1, 0
    %v308 = vsel %vm292, 1, 0
    %v309 = vsel %vm293, 1, 0
    %v310 = vsel %vm294, 1, 0
    %v311 = vsel %vm295, 1, 0
    %v312 = vsel %vm296, 1, 0
    %v313 = vsel %vm297, 1, 0
    %v314 = vsel %vm298, 1, 0
    %v315 = vsel %vm299, 1, 0
    %v316 = vsel %vm300, 1, 0
    %v317 = vsel %vm301, 1, 0
    %v318 = vsel %vm302, 1, 0
    %v319 = vcvt.s32.f32 %v303
    %v320 = vcvt.s32.f32 %v304
    %v321 = vcvt.s32.f32 %v305
    %v322 = vcvt.s32.f32 %v306
    %v323 = vcvt.s32.f32 %v307
    %v324 = vcvt.s32.f32 %v308
    %v325 = vcvt.s32.f32 %v309
    %v326 = vcvt.s32.f32 %v310
    %v327 = vcvt.s32.f32 %v311
    %v328 = vcvt.s32.f32 %v312
    %v329 = vcvt.s32.f32 %v313
    %v330 = vcvt.s32.f32 %v314
    %v331 = vcvt.s32.f32 %v315
    %v332 = vcvt.s32.f32 %v316
    %v333 = vcvt.s32.f32 %v317
    %v334 = vcvt.s32.f32 %v318
    %v335 = vmul.f32 %v174, %v319
    %v336 = vmul.f32 %v177, %v320
    %v337 = vmul.f32 %v182, %v321
    %v338 = vmul.f32 %v185, %v322
    %v339 = vmul.f32 %v190, %v323
    %v340 = vmul.f32 %v193, %v324
    %v341 = vmul.f32 %v198, %v325
    %v342 = vmul.f32 %v201, %v326
    %v343 = vmul.f32 %v206, %v327
    %v344 = vmul.f32 %v209, %v328
    %v345 = vmul.f32 %v214, %v329
    %v346 = vmul.f32 %v217, %v330
    %v347 = vmul.f32 %v222, %v331
    %v348 = vmul.f32 %v225, %v332
    %v349 = vmul.f32 %v230, %v333
    %v350 = vmul.f32 %v233, %v334
    %v351 = vadd.f32 %v335, %v336
    %v352 = vadd.f32 %v351, %v337
    %v353 = vadd.f32 %v352, %v338
    %v354 = vadd.f32 %v353, %v339
    %v355 = vadd.f32 %v354, %v340
    %v356 = vadd.f32 %v355, %v341
    %v357 = vadd.f32 %v356, %v342
    %v358 = vadd.f32 %v357, %v343
    %v359 = vadd.f32 %v358, %v344
    %v360 = vadd.f32 %v359, %v345
    %v361 = vadd.f32 %v360, %v346
    %v362 = vadd.f32 %v361, %v347
    %v363 = vadd.f32 %v362, %v348
    %v364 = vadd.f32 %v363, %v349
    %v365 = vadd.f32 %v364, %v350
    %v366 = vrot.slane %v365, 4
    %v367 = vadd.f32 %v365, %v366
    %v368 = vrot.slane %v367, 2
    %v369 = vadd.f32 %v367, %v368
    %v370 = vrot.slane %v369, 1
    %v371 = vadd.f32 %v369, %v370
    %v372 = vmul.f32 %v335, %v335
    %v373 = vmul.f32 %v336, %v336
    %v374 = vmul.f32 %v337, %v337
    %v375 = vmul.f32 %v338, %v338
    %v376 = vmul.f32 %v339, %v339
    %v377 = vmul.f32 %v340, %v340
    %v378 = vmul.f32 %v341, %v341
    %v379 = vmul.f32 %v342, %v342
    %v380 = vmul.f32 %v343, %v343
    %v381 = vmul.f32 %v344, %v344
    %v382 = vmul.f32 %v345, %v345
    %v383 = vmul.f32 %v346, %v346
    %v384 = vmul.f32 %v347, %v347
    %v385 = vmul.f32 %v348, %v348
    %v386 = vmul.f32 %v349, %v349
    %v387 = vmul.f32 %v350, %v350
    %v388 = vadd.f32 %v372, %v373
    %v389 = vadd.f32 %v388, %v374
    %v390 = vadd.f32 %v389, %v375
    %v391 = vadd.f32 %v390, %v376
    %v392 = vadd.f32 %v391, %v377
    %v393 = vadd.f32 %v392, %v378
    %v394 = vadd.f32 %v393, %v379
    %v395 = vadd.f32 %v394, %v380
    %v396 = vadd.f32 %v395, %v381
    %v397 = vadd.f32 %v396, %v382
    %v398 = vadd.f32 %v397, %v383
    %v399 = vadd.f32 %v398, %v384
    %v400 = vadd.f32 %v399, %v385
    %v401 = vadd.f32 %v400, %v386
    %v402 = vadd.f32 %v401, %v387
    %v403 = vrot.slane %v402, 4
    %v404 = vadd.f32 %v402, %v403
    %v405 = vrot.slane %v404, 2
    %v406 = vadd.f32 %v404, %v405
    %v407 = vrot.slane %v406, 1
    %v408 = vadd.f32 %v406, %v407
    %vm409 = vcmask 1040384
    %v410 = vsel %vm409, %v371, %v408
    %411 = vst [vmem:[%s4] sm:$0x3] %v410
    // Predicated region
    $region22: #{vqvae_forward.12} parent=1 // pred_check
      _
    $region23: #{vqvae_forward.12} parent=1 // pred_check_branch
      %413 = sbr.rel (0) target = $region25
    $region24: #{vqvae_forward.12} parent=1 // pred_region
      _
    $region25: #{vqvae_forward.12} parent=1 // pred_fallthru
      _
    // Predicated region
    $region26: #{vqvae_forward.12} parent=1 // pred_check
      _
    $region27: #{vqvae_forward.12} parent=1 // pred_check_branch
      %415 = sbr.rel (0) target = $region29
    $region28: #{vqvae_forward.12} parent=1 // pred_region
      _
    $region29: #{vqvae_forward.12} parent=1 // pred_fallthru
      _
    // Predicated region
    $region30: #{vqvae_forward.12} parent=1 // pred_check
      _
    $region31: #{vqvae_forward.12} parent=1 // pred_check_branch
      %417 = sbr.rel (0) target = $region33
    $region32: #{vqvae_forward.12} parent=1 // pred_region
      _
    $region33: #{vqvae_forward.12} parent=1 // pred_fallthru
      _
    // Predicated region
    $region34: #{vqvae_forward.12} parent=1 // pred_check
      _
    $region35: #{vqvae_forward.12} parent=1 // pred_check_branch
      %419 = sbr.rel (0) target = $region37
    $region36: #{vqvae_forward.12} parent=1 // pred_region
      _
    $region37: #{vqvae_forward.12} parent=1 // pred_fallthru
      _
    %420 = vsyncpa [#allocation3], 1
    %421 = vsyncpa [#allocation5], 1

// kernel: vqvae_forward.15
$region0: #{vqvae_forward.15}
  #allocation0 [shape = 'u32[]', space=smem, size = 0x4, offset = 0x4, fixed_abs, tag = 'smem constant byte address 0x4 - core index']
  #allocation1 [shape = 'u32[144,128]{1,0:T(1,128)}', space=vmem, size = 0x12000, scoped, tag = 'internal scratch']
  %s0 = inlined_call_operand.vmem [shape: f32[32,128], index: 0, kind: input, shape index: {}]
  %s1 = inlined_call_operand.vmem [shape: f32[1,128], index: 1, kind: input, shape index: {}]
  %s2 = inlined_call_operand.vmem [shape: f32[1,128], index: 2, kind: input, shape index: {}]
  %s3 = inlined_call_operand.vmem [shape: bf16[32,128], index: 3, kind: output, shape index: {}]
  %s4 = sld [smem:[#allocation0]]
  $region22: #{vqvae_forward.15} parent=0
    _
  %s6 = ssub.s32 1, %s4
  %s7 = scalar_select 0, %s6, %s4
  // Predicated region
  $region2: #{vqvae_forward.15} parent=0 // pred_check
    _
  $region3: #{vqvae_forward.15} parent=0 // pred_check_branch
    %9 = sbr.rel (0) target = $region5
  $region4: #{vqvae_forward.15} parent=0 // pred_region
    _
  $region5: #{vqvae_forward.15} parent=0 // pred_fallthru
    _
  // Predicated region
  $region6: #{vqvae_forward.15} parent=0 // pred_check
    _
  $region7: #{vqvae_forward.15} parent=0 // pred_check_branch
    %11 = sbr.rel (0) target = $region9
  $region8: #{vqvae_forward.15} parent=0 // pred_region
    _
  $region9: #{vqvae_forward.15} parent=0 // pred_fallthru
    _
  // Predicated region
  $region10: #{vqvae_forward.15} parent=0 // pred_check
    _
  $region11: #{vqvae_forward.15} parent=0 // pred_check_branch
    %13 = sbr.rel (0) target = $region13
  $region12: #{vqvae_forward.15} parent=0 // pred_region
    _
  $region13: #{vqvae_forward.15} parent=0 // pred_fallthru
    _
  %v14 = vld [vmem:[%s0] sm:$0xff]
  %v15 = vld [vmem:[%s0 + $0x8] sm:$0xff]
  %v16 = vld [vmem:[%s0 + $0x10] sm:$0xff]
  %v17 = vld [vmem:[%s0 + $0x18] sm:$0xff]
  %v18 = vld [vmem:[%s1] sm:$0x1]
  %v20 = vlaneseq
  %v21 = vshrl.u32 %v20, 7
  %v22 = vsub.s32 0, %v21
  %v23 = vrot.slane %v18, %v22
  %v25 = vmul.f32 %v14, %v23
  %v26 = vmul.f32 %v15, %v23
  %v27 = vmul.f32 %v16, %v23
  %v28 = vmul.f32 %v17, %v23
  %v29 = vld [vmem:[%s2] sm:$0x1]
  %v31 = vlaneseq
  %v32 = vshrl.u32 %v31, 7
  %v33 = vsub.s32 0, %v32
  %v34 = vrot.slane %v29, %v33
  %v36 = vadd.f32 %v25, %v34
  %v37 = vadd.f32 %v26, %v34
  %v38 = vadd.f32 %v27, %v34
  %v39 = vadd.f32 %v28, %v34
  %vm40 = vcmp.ge.f32.partialorder %v36, 0.0
  %vm41 = vcmp.ge.f32.partialorder %v37, 0.0
  %vm42 = vcmp.ge.f32.partialorder %v38, 0.0
  %vm43 = vcmp.ge.f32.partialorder %v39, 0.0
  %v44 = vmul.f32 %v36, 0.01
  %v45 = vmul.f32 %v37, 0.01
  %v46 = vmul.f32 %v38, 0.01
  %v47 = vmul.f32 %v39, 0.01
  %v48 = vsel %vm40, %v36, %v44
  %v49 = vsel %vm41, %v37, %v45
  %v50 = vsel %vm42, %v38, %v46
  %v51 = vsel %vm43, %v39, %v47
  %v52 = vpack.c.bf16 %v49, %v48
  %v53 = vpack.c.bf16 %v51, %v50
  %v56 = vunpack.c.l.b16 %v52
  %v57 = vunpack.c.h.b16 %v52
  %v58 = vunpack.c.l.b16 %v53
  %v59 = vunpack.c.h.b16 %v53
  %v60 = vpack.c.b16 %v56, %v56
  %v61 = vpack.c.b16 %v57, %v57
  %v62 = vpack.c.b16 %v58, %v58
  %v63 = vpack.c.b16 %v59, %v59
  %68 = vst [vmem:[%s3] sm:$0xf] %v60
  %69 = vst [vmem:[%s3 + $0x4] sm:$0xf] %v61
  %70 = vst [vmem:[%s3 + $0x8] sm:$0xf] %v62
  %71 = vst [vmem:[%s3 + $0xc] sm:$0xf] %v63
  // Predicated region
  $region14: #{vqvae_forward.15} parent=0 // pred_check
    _
  $region15: #{vqvae_forward.15} parent=0 // pred_check_branch
    %73 = sbr.rel (0) target = $region17
  $region16: #{vqvae_forward.15} parent=0 // pred_region
    _
  $region17: #{vqvae_forward.15} parent=0 // pred_fallthru
    _
  // Predicated region
  $region18: #{vqvae_forward.15} parent=0 // pred_check
    _
  $region19: #{vqvae_forward.15} parent=0 // pred_check_branch
    %75 = sbr.rel (0) target = $region21
  $region20: #{vqvae_forward.15} parent=0 // pred_region
    _
  $region21: #{vqvae_forward.15} parent=0 // pred_fallthru
    _

// kernel: vqvae_forward.14
$region0: #{vqvae_forward.14}
  #allocation0 [shape = 'u32[]', space=smem, size = 0x4, offset = 0x4, fixed_abs, tag = 'smem constant byte address 0x4 - core index']
  #allocation1 [shape = 'u32[144,128]{1,0:T(1,128)}', space=vmem, size = 0x12000, scoped, tag = 'internal scratch']
  %s0 = inlined_call_operand.vmem [shape: bf16[32,512], index: 0, kind: input, shape index: {}]
  %s1 = inlined_call_operand.vmem [shape: bf16[512,128], index: 1, kind: input, shape index: {}]
  %s2 = inlined_call_operand.vmem [shape: f32[1,128], index: 2, kind: input, shape index: {}]
  %s3 = inlined_call_operand.vmem [shape: f32[32,128], index: 3, kind: output, shape index: {0}]
  %s4 = inlined_call_operand.vmem [shape: f32[1,2,128], index: 4, kind: output, shape index: {1}]
  %5 = xla_tuple %s3, %s4
  %s6 = sld [smem:[#allocation0]]
  $region30: #{vqvae_forward.14} parent=0
    _
  %s8 = ssub.s32 1, %s6
  %s9 = scalar_select 0, %s8, %s6
  // Predicated region
  $region2: #{vqvae_forward.14} parent=0 // pred_check
    _
  $region3: #{vqvae_forward.14} parent=0 // pred_check_branch
    %11 = sbr.rel (0) target = $region5
  $region4: #{vqvae_forward.14} parent=0 // pred_region
    _
  $region5: #{vqvae_forward.14} parent=0 // pred_fallthru
    _
  // Predicated region
  $region6: #{vqvae_forward.14} parent=0 // pred_check
    _
  $region7: #{vqvae_forward.14} parent=0 // pred_check_branch
    %13 = sbr.rel (0) target = $region9
  $region8: #{vqvae_forward.14} parent=0 // pred_region
    _
  $region9: #{vqvae_forward.14} parent=0 // pred_fallthru
    _
  // Predicated region
  $region10: #{vqvae_forward.14} parent=0 // pred_check
    _
  $region11: #{vqvae_forward.14} parent=0 // pred_check_branch
    %15 = sbr.rel (0) target = $region13
  $region12: #{vqvae_forward.14} parent=0 // pred_region
    _
  $region13: #{vqvae_forward.14} parent=0 // pred_fallthru
    _
  %v17 = vld [vmem:[%s0] sm:$0xff]
  %v18 = vld [vmem:[%s0 + $0x8] sm:$0xff]
  %v19 = vld [vmem:[%s0 + $0x10] sm:$0xff]
  %v20 = vld [vmem:[%s0 + $0x18] sm:$0xff]
  %v21 = vld [vmem:[%s0 + $0x20] sm:$0xff]
  %v22 = vld [vmem:[%s0 + $0x28] sm:$0xff]
  %v23 = vld [vmem:[%s0 + $0x30] sm:$0xff]
  %v24 = vld [vmem:[%s0 + $0x38] sm:$0xff]
  %v25 = vld [vmem:[%s1] sm:$0xf]
  %v26 = vld [vmem:[%s1 + $0x4] sm:$0xf]
  %v27 = vld [vmem:[%s1 + $0x8] sm:$0xf]
  %v28 = vld [vmem:[%s1 + $0xc] sm:$0xf]
  %v29 = vld [vmem:[%s1 + $0x10] sm:$0xf]
  %v30 = vld [vmem:[%s1 + $0x14] sm:$0xf]
  %v31 = vld [vmem:[%s1 + $0x18] sm:$0xf]
  %v32 = vld [vmem:[%s1 + $0x1c] sm:$0xf]
  %v33 = vld [vmem:[%s1 + $0x20] sm:$0xf]
  %v34 = vld [vmem:[%s1 + $0x24] sm:$0xf]
  %v35 = vld [vmem:[%s1 + $0x28] sm:$0xf]
  %v36 = vld [vmem:[%s1 + $0x2c] sm:$0xf]
  %v37 = vld [vmem:[%s1 + $0x30] sm:$0xf]
  %v38 = vld [vmem:[%s1 + $0x34] sm:$0xf]
  %v39 = vld [vmem:[%s1 + $0x38] sm:$0xf]
  %v40 = vld [vmem:[%s1 + $0x3c] sm:$0xf]
  %v41 = vld [vmem:[%s1 + $0x40] sm:$0xf]
  %v42 = vld [vmem:[%s1 + $0x44] sm:$0xf]
  %v43 = vld [vmem:[%s1 + $0x48] sm:$0xf]
  %v44 = vld [vmem:[%s1 + $0x4c] sm:$0xf]
  %v45 = vld [vmem:[%s1 + $0x50] sm:$0xf]
  %v46 = vld [vmem:[%s1 + $0x54] sm:$0xf]
  %v47 = vld [vmem:[%s1 + $0x58] sm:$0xf]
  %v48 = vld [vmem:[%s1 + $0x5c] sm:$0xf]
  %v49 = vld [vmem:[%s1 + $0x60] sm:$0xf]
  %v50 = vld [vmem:[%s1 + $0x64] sm:$0xf]
  %v51 = vld [vmem:[%s1 + $0x68] sm:$0xf]
  %v52 = vld [vmem:[%s1 + $0x6c] sm:$0xf]
  %v53 = vld [vmem:[%s1 + $0x70] sm:$0xf]
  %v54 = vld [vmem:[%s1 + $0x74] sm:$0xf]
  %v55 = vld [vmem:[%s1 + $0x78] sm:$0xf]
  %v56 = vld [vmem:[%s1 + $0x7c] sm:$0xf]
  %v57 = vld [vmem:[%s1 + $0x80] sm:$0xf]
  %v58 = vld [vmem:[%s1 + $0x84] sm:$0xf]
  %v59 = vld [vmem:[%s1 + $0x88] sm:$0xf]
  %v60 = vld [vmem:[%s1 + $0x8c] sm:$0xf]
  %v61 = vld [vmem:[%s1 + $0x90] sm:$0xf]
  %v62 = vld [vmem:[%s1 + $0x94] sm:$0xf]
  %v63 = vld [vmem:[%s1 + $0x98] sm:$0xf]
  %v64 = vld [vmem:[%s1 + $0x9c] sm:$0xf]
  %v65 = vld [vmem:[%s1 + $0xa0] sm:$0xf]
  %v66 = vld [vmem:[%s1 + $0xa4] sm:$0xf]
  %v67 = vld [vmem:[%s1 + $0xa8] sm:$0xf]
  %v68 = vld [vmem:[%s1 + $0xac] sm:$0xf]
  %v69 = vld [vmem:[%s1 + $0xb0] sm:$0xf]
  %v70 = vld [vmem:[%s1 + $0xb4] sm:$0xf]
  %v71 = vld [vmem:[%s1 + $0xb8] sm:$0xf]
  %v72 = vld [vmem:[%s1 + $0xbc] sm:$0xf]
  %v73 = vld [vmem:[%s1 + $0xc0] sm:$0xf]
  %v74 = vld [vmem:[%s1 + $0xc4] sm:$0xf]
  %v75 = vld [vmem:[%s1 + $0xc8] sm:$0xf]
  %v76 = vld [vmem:[%s1 + $0xcc] sm:$0xf]
  %v77 = vld [vmem:[%s1 + $0xd0] sm:$0xf]
  %v78 = vld [vmem:[%s1 + $0xd4] sm:$0xf]
  %v79 = vld [vmem:[%s1 + $0xd8] sm:$0xf]
  %v80 = vld [vmem:[%s1 + $0xdc] sm:$0xf]
  %v81 = vld [vmem:[%s1 + $0xe0] sm:$0xf]
  %v82 = vld [vmem:[%s1 + $0xe4] sm:$0xf]
  %v83 = vld [vmem:[%s1 + $0xe8] sm:$0xf]
  %v84 = vld [vmem:[%s1 + $0xec] sm:$0xf]
  %v85 = vld [vmem:[%s1 + $0xf0] sm:$0xf]
  %v86 = vld [vmem:[%s1 + $0xf4] sm:$0xf]
  %v87 = vld [vmem:[%s1 + $0xf8] sm:$0xf]
  %v88 = vld [vmem:[%s1 + $0xfc] sm:$0xf]
  %v89 = vld [vmem:[%s2] sm:$0x1]
  %v91 = vlaneseq
  %v92 = vshrl.u32 %v91, 7
  %v93 = vsub.s32 0, %v92
  %v94 = vrot.slane %v89, %v93
  %v104 = vunpack.c.l.b16 %v17
  %v105 = vunpack.c.h.b16 %v17
  %v106 = vunpack.c.l.b16 %v18
  %v107 = vunpack.c.h.b16 %v18
  %v108 = vunpack.c.l.b16 %v19
  %v109 = vunpack.c.h.b16 %v19
  %v110 = vunpack.c.l.b16 %v20
  %v111 = vunpack.c.h.b16 %v20
  %v112 = vunpack.c.l.b16 %v21
  %v113 = vunpack.c.h.b16 %v21
  %v114 = vunpack.c.l.b16 %v22
  %v115 = vunpack.c.h.b16 %v22
  %v116 = vunpack.c.l.b16 %v23
  %v117 = vunpack.c.h.b16 %v23
  %v118 = vunpack.c.l.b16 %v24
  %v119 = vunpack.c.h.b16 %v24
  %v120 = vpack.c.b16 %v108, %v104
  %v121 = vpack.c.b16 %v109, %v105
  %v122 = vpack.c.b16 %v110, %v106
  %v123 = vpack.c.b16 %v111, %v107
  %v124 = vpack.c.b16 %v116, %v112
  %v125 = vpack.c.b16 %v117, %v113
  %v126 = vpack.c.b16 %v118, %v114
  %v127 = vpack.c.b16 %v119, %v115
  %v200 = vunpack.c.l.b16 %v25
  %v201 = vunpack.c.l.b16 %v26
  %v202 = vunpack.c.l.b16 %v27
  %v203 = vunpack.c.l.b16 %v28
  %v204 = vunpack.c.l.b16 %v29
  %v205 = vunpack.c.l.b16 %v30
  %v206 = vunpack.c.l.b16 %v31
  %v207 = vunpack.c.l.b16 %v32
  %v208 = vunpack.c.l.b16 %v33
  %v209 = vunpack.c.l.b16 %v34
  %v210 = vunpack.c.l.b16 %v35
  %v211 = vunpack.c.l.b16 %v36
  %v212 = vunpack.c.l.b16 %v37
  %v213 = vunpack.c.l.b16 %v38
  %v214 = vunpack.c.l.b16 %v39
  %v215 = vunpack.c.l.b16 %v40
  %v216 = vunpack.c.l.b16 %v41
  %v217 = vunpack.c.l.b16 %v42
  %v218 = vunpack.c.l.b16 %v43
  %v219 = vunpack.c.l.b16 %v44
  %v220 = vunpack.c.l.b16 %v45
  %v221 = vunpack.c.l.b16 %v46
  %v222 = vunpack.c.l.b16 %v47
  %v223 = vunpack.c.l.b16 %v48
  %v224 = vunpack.c.l.b16 %v49
  %v225 = vunpack.c.l.b16 %v50
  %v226 = vunpack.c.l.b16 %v51
  %v227 = vunpack.c.l.b16 %v52
  %v228 = vunpack.c.l.b16 %v53
  %v229 = vunpack.c.l.b16 %v54
  %v230 = vunpack.c.l.b16 %v55
  %v231 = vunpack.c.l.b16 %v56
  %v232 = vunpack.c.l.b16 %v57
  %v233 = vunpack.c.l.b16 %v58
  %v234 = vunpack.c.l.b16 %v59
  %v235 = vunpack.c.l.b16 %v60
  %v236 = vunpack.c.l.b16 %v61
  %v237 = vunpack.c.l.b16 %v62
  %v238 = vunpack.c.l.b16 %v63
  %v239 = vunpack.c.l.b16 %v64
  %v240 = vunpack.c.l.b16 %v65
  %v241 = vunpack.c.l.b16 %v66
  %v242 = vunpack.c.l.b16 %v67
  %v243 = vunpack.c.l.b16 %v68
  %v244 = vunpack.c.l.b16 %v69
  %v245 = vunpack.c.l.b16 %v70
  %v246 = vunpack.c.l.b16 %v71
  %v247 = vunpack.c.l.b16 %v72
  %v248 = vunpack.c.l.b16 %v73
  %v249 = vunpack.c.l.b16 %v74
  %v250 = vunpack.c.l.b16 %v75
  %v251 = vunpack.c.l.b16 %v76
  %v252 = vunpack.c.l.b16 %v77
  %v253 = vunpack.c.l.b16 %v78
  %v254 = vunpack.c.l.b16 %v79
  %v255 = vunpack.c.l.b16 %v80
  %v256 = vunpack.c.l.b16 %v81
  %v257 = vunpack.c.l.b16 %v82
  %v258 = vunpack.c.l.b16 %v83
  %v259 = vunpack.c.l.b16 %v84
  %v260 = vunpack.c.l.b16 %v85
  %v261 = vunpack.c.l.b16 %v86
  %v262 = vunpack.c.l.b16 %v87
  %v263 = vunpack.c.l.b16 %v88
  %v264 = vpack.c.b16 %v201, %v200
  %v265 = vpack.c.b16 %v203, %v202
  %v266 = vpack.c.b16 %v205, %v204
  %v267 = vpack.c.b16 %v207, %v206
  %v268 = vpack.c.b16 %v209, %v208
  %v269 = vpack.c.b16 %v211, %v210
  %v270 = vpack.c.b16 %v213, %v212
  %v271 = vpack.c.b16 %v215, %v214
  %v272 = vpack.c.b16 %v217, %v216
  %v273 = vpack.c.b16 %v219, %v218
  %v274 = vpack.c.b16 %v221, %v220
  %v275 = vpack.c.b16 %v223, %v222
  %v276 = vpack.c.b16 %v225, %v224
  %v277 = vpack.c.b16 %v227, %v226
  %v278 = vpack.c.b16 %v229, %v228
  %v279 = vpack.c.b16 %v231, %v230
  %v280 = vpack.c.b16 %v233, %v232
  %v281 = vpack.c.b16 %v235, %v234
  %v282 = vpack.c.b16 %v237, %v236
  %v283 = vpack.c.b16 %v239, %v238
  %v284 = vpack.c.b16 %v241, %v240
  %v285 = vpack.c.b16 %v243, %v242
  %v286 = vpack.c.b16 %v245, %v244
  %v287 = vpack.c.b16 %v247, %v246
  %v288 = vpack.c.b16 %v249, %v248
  %v289 = vpack.c.b16 %v251, %v250
  %v290 = vpack.c.b16 %v253, %v252
  %v291 = vpack.c.b16 %v255, %v254
  %v292 = vpack.c.b16 %v257, %v256
  %v293 = vpack.c.b16 %v259, %v258
  %v294 = vpack.c.b16 %v261, %v260
  %v295 = vpack.c.b16 %v263, %v262
  %328 = vmatprep.subr.bf16.mxu0 0
  %329 = vmatpush1.bf16.msra.mxu0 %v264
  %330 = vmatprep.subr.bf16.mxu0 0
  %331 = vmatpush1.bf16.msra.mxu0 %v265
  %332 = vmatprep.subr.bf16.mxu0 0
  %333 = vmatpush1.bf16.msra.mxu0 %v266
  %334 = vmatprep.subr.bf16.mxu0 0
  %335 = vmatpush1.bf16.msra.mxu0 %v267
  %336 = vmatprep.subr.bf16.mxu0 0
  %337 = vmatpush1.bf16.msra.mxu0 %v268
  %338 = vmatprep.subr.bf16.mxu0 0
  %339 = vmatpush1.bf16.msra.mxu0 %v269
  %340 = vmatprep.subr.bf16.mxu0 0
  %341 = vmatpush1.bf16.msra.mxu0 %v270
  %342 = vmatprep.subr.bf16.mxu0 0
  %343 = vmatpush1.bf16.msra.mxu0 %v271
  %344 = vmatprep.subr.bf16.mxu0 0
  %345 = vmatpush1.bf16.msra.mxu0 %v272
  %346 = vmatprep.subr.bf16.mxu0 0
  %347 = vmatpush1.bf16.msra.mxu0 %v273
  %348 = vmatprep.subr.bf16.mxu0 0
  %349 = vmatpush1.bf16.msra.mxu0 %v274
  %350 = vmatprep.subr.bf16.mxu0 0
  %351 = vmatpush1.bf16.msra.mxu0 %v275
  %352 = vmatprep.subr.bf16.mxu0 0
  %353 = vmatpush1.bf16.msra.mxu0 %v276
  %354 = vmatprep.subr.bf16.mxu0 0
  %355 = vmatpush1.bf16.msra.mxu0 %v277
  %356 = vmatprep.subr.bf16.mxu0 0
  %357 = vmatpush1.bf16.msra.mxu0 %v278
  %358 = vmatprep.subr.bf16.mxu0 0
  %359 = vmatpush1.bf16.msra.mxu0 %v279
  %360 = vmatprep.mubr.bf16.mxu0 %v121
  %361 = vmatmul.mubr.bf16.gmra.mrb[0].mxu0 %v120
  %v362 = vpop.f32.mrb[0].mxu0
  %v363 = vadd.f32 %v94, %v362
  %v364 = vpop.f32.mrb[0].mxu0
  %v365 = vpop.f32.mrb[0].mxu0
  %v366 = vadd.f32 %v94, %v365
  %v367 = vpop.f32.mrb[0].mxu0
  %368 = vmatprep.mubr.bf16.mxu0 %v125
  %369 = vmatmul.mubr.bf16.gmra.mrb[0].mxu0 %v124
  %v370 = vpop.f32.mrb[0].mxu0
  %v371 = vadd.f32 %v94, %v370
  %v372 = vpop.f32.mrb[0].mxu0
  %v373 = vpop.f32.mrb[0].mxu0
  %v374 = vadd.f32 %v94, %v373
  %v375 = vpop.f32.mrb[0].mxu0
  %376 = vdwg.mxu0
  %377 = vmatprep.subr.bf16.mxu0 0
  %378 = vmatpush1.bf16.msra.mxu0 %v280
  %379 = vmatprep.subr.bf16.mxu0 0
  %380 = vmatpush1.bf16.msra.mxu0 %v281
  %381 = vmatprep.subr.bf16.mxu0 0
  %382 = vmatpush1.bf16.msra.mxu0 %v282
  %383 = vmatprep.subr.bf16.mxu0 0
  %384 = vmatpush1.bf16.msra.mxu0 %v283
  %385 = vmatprep.subr.bf16.mxu0 0
  %386 = vmatpush1.bf16.msra.mxu0 %v284
  %387 = vmatprep.subr.bf16.mxu0 0
  %388 = vmatpush1.bf16.msra.mxu0 %v285
  %389 = vmatprep.subr.bf16.mxu0 0
  %390 = vmatpush1.bf16.msra.mxu0 %v286
  %391 = vmatprep.subr.bf16.mxu0 0
  %392 = vmatpush1.bf16.msra.mxu0 %v287
  %393 = vmatprep.subr.bf16.mxu0 0
  %394 = vmatpush1.bf16.msra.mxu0 %v288
  %395 = vmatprep.subr.bf16.mxu0 0
  %396 = vmatpush1.bf16.msra.mxu0 %v289
  %397 = vmatprep.subr.bf16.mxu0 0
  %398 = vmatpush1.bf16.msra.mxu0 %v290
  %399 = vmatprep.subr.bf16.mxu0 0
  %400 = vmatpush1.bf16.msra.mxu0 %v291
  %401 = vmatprep.subr.bf16.mxu0 0
  %402 = vmatpush1.bf16.msra.mxu0 %v292
  %403 = vmatprep.subr.bf16.mxu0 0
  %404 = vmatpush1.bf16.msra.mxu0 %v293
  %405 = vmatprep.subr.bf16.mxu0 0
  %406 = vmatpush1.bf16.msra.mxu0 %v294
  %407 = vmatprep.subr.bf16.mxu0 0
  %408 = vmatpush1.bf16.msra.mxu0 %v295
  %409 = vmatprep.mubr.bf16.mxu0 %v123
  %410 = vmatmul.mubr.bf16.gmra.mrb[0].mxu0 %v122
  %v411 = vpop.f32.mrb[0].mxu0
  %v412 = vadd.f32 %v363, %v411
  %v413 = vpop.f32.mrb[0].mxu0
  %v414 = vpop.f32.mrb[0].mxu0
  %v415 = vadd.f32 %v366, %v414
  %v416 = vpop.f32.mrb[0].mxu0
  %417 = vmatprep.mubr.bf16.mxu0 %v127
  %418 = vmatmul.mubr.bf16.gmra.mrb[0].mxu0 %v126
  %v419 = vpop.f32.mrb[0].mxu0
  %v420 = vadd.f32 %v371, %v419
  %v421 = vpop.f32.mrb[0].mxu0
  %v422 = vpop.f32.mrb[0].mxu0
  %v423 = vadd.f32 %v374, %v422
  %v424 = vpop.f32.mrb[0].mxu0
  %425 = vdwg.mxu0
  %426 = vst [vmem:[%s3] sm:$0xff] %v412
  %427 = vst [vmem:[%s3 + $0x8] sm:$0xff] %v415
  %428 = vst [vmem:[%s3 + $0x10] sm:$0xff] %v420
  %429 = vst [vmem:[%s3 + $0x18] sm:$0xff] %v423
  %s430 = smul.u32 0, 32
  %v431 = vlaneseq
  %v432 = vshrl.u32 %v431, 7
  %v433 = vadd.s32 %v432, 8
  %v434 = vadd.s32 %v432, 16
  %v435 = vadd.s32 %v432, 24
  %v436 = vstv %s430
  %v437 = vadd.s32 %v436, %v432
  %v438 = vadd.s32 %v436, %v433
  %v439 = vadd.s32 %v436, %v434
  %v440 = vadd.s32 %v436, %v435
  %vm441 = vcmp.lt.s32.totalorder %v437, 32
  %vm442 = vcmp.lt.s32.totalorder %v438, 32
  %vm443 = vcmp.lt.s32.totalorder %v439, 32
  %vm444 = vcmp.lt.s32.totalorder %v440, 32
  %v445 = vsel %vm441, 1, 0
  %v446 = vsel %vm442, 1, 0
  %v447 = vsel %vm443, 1, 0
  %v448 = vsel %vm444, 1, 0
  %v449 = vcvt.s32.f32 %v445
  %v450 = vcvt.s32.f32 %v446
  %v451 = vcvt.s32.f32 %v447
  %v452 = vcvt.s32.f32 %v448
  %v453 = vmul.f32 %v412, %v449
  %v454 = vmul.f32 %v415, %v450
  %v455 = vmul.f32 %v420, %v451
  %v456 = vmul.f32 %v423, %v452
  %v457 = vadd.f32 %v453, %v454
  %v458 = vadd.f32 %v457, %v455
  %v459 = vadd.f32 %v458, %v456
  %v460 = vrot.slane %v459, 4
  %v461 = vadd.f32 %v459, %v460
  %v462 = vrot.slane %v461, 2
  %v463 = vadd.f32 %v461, %v462
  %v464 = vrot.slane %v463, 1
  %v465 = vadd.f32 %v463, %v464
  %v466 = vmul.f32 %v453, %v453
  %v467 = vmul.f32 %v454, %v454
  %v468 = vmul.f32 %v455, %v455
  %v469 = vmul.f32 %v456, %v456
  %v470 = vadd.f32 %v466, %v467
  %v471 = vadd.f32 %v470, %v468
  %v472 = vadd.f32 %v471, %v469
  %v473 = vrot.slane %v472, 4
  %v474 = vadd.f32 %v472, %v473
  %v475 = vrot.slane %v474, 2
  %v476 = vadd.f32 %v474, %v475
  %v477 = vrot.slane %v476, 1
  %v478 = vadd.f32 %v476, %v477
  %vm479 = vcmask 1040384
  %v480 = vsel %vm479, %v465, %v478
  %481 = vst [vmem:[%s4] sm:$0x3] %v480
  // Predicated region
  $region14: #{vqvae_forward.14} parent=0 // pred_check
    _
  $region15: #{vqvae_forward.14} parent=0 // pred_check_branch
    %483 = sbr.rel (0) target = $region17
  $region16: #{vqvae_forward.14} parent=0 // pred_region
    _
  $region17: #{vqvae_forward.14} parent=0 // pred_fallthru
    _
  // Predicated region
  $region18: #{vqvae_forward.14} parent=0 // pred_check
    _
  $region19: #{vqvae_forward.14} parent=0 // pred_check_branch
    %485 = sbr.rel (0) target = $region21
  $region20: #{vqvae_forward.14} parent=0 // pred_region
    _
  $region21: #{vqvae_forward.14} parent=0 // pred_fallthru
    _
  // Predicated region
  $region22: #{vqvae_forward.14} parent=0 // pred_check
    _
  $region23: #{vqvae_forward.14} parent=0 // pred_check_branch
    %487 = sbr.rel (0) target = $region25
  $region24: #{vqvae_forward.14} parent=0 // pred_region
    _
  $region25: #{vqvae_forward.14} parent=0 // pred_fallthru
    _
  // Predicated region
  $region26: #{vqvae_forward.14} parent=0 // pred_check
    _
  $region27: #{vqvae_forward.14} parent=0 // pred_check_branch
    %489 = sbr.rel (0) target = $region29
  $region28: #{vqvae_forward.14} parent=0 // pred_region
    _
  $region29: #{vqvae_forward.14} parent=0 // pred_fallthru
    _

// kernel: vqvae_forward.16
$region0: #{vqvae_forward.16}
  #allocation0 [shape = 'u32[]', space=smem, size = 0x4, offset = 0x4, fixed_abs, tag = 'smem constant byte address 0x4 - core index']
  #allocation1 [shape = 'u32[144,128]{1,0:T(1,128)}', space=vmem, size = 0x12000, scoped, tag = 'internal scratch']
  %s0 = inlined_call_operand.vmem [shape: bf16[32,64], index: 0, kind: input, shape index: {}]
  %s1 = inlined_call_operand.vmem [shape: bf16[64,128], index: 1, kind: input, shape index: {}]
  %s2 = inlined_call_operand.vmem [shape: f32[1,128], index: 2, kind: input, shape index: {}]
  %s3 = inlined_call_operand.vmem [shape: f32[32,128], index: 3, kind: output, shape index: {0}]
  %s4 = inlined_call_operand.vmem [shape: f32[1,2,128], index: 4, kind: output, shape index: {1}]
  %5 = xla_tuple %s3, %s4
  %s6 = sld [smem:[#allocation0]]
  $region30: #{vqvae_forward.16} parent=0
    _
  %s8 = ssub.s32 1, %s6
  %s9 = scalar_select 0, %s8, %s6
  // Predicated region
  $region2: #{vqvae_forward.16} parent=0 // pred_check
    _
  $region3: #{vqvae_forward.16} parent=0 // pred_check_branch
    %11 = sbr.rel (0) target = $region5
  $region4: #{vqvae_forward.16} parent=0 // pred_region
    _
  $region5: #{vqvae_forward.16} parent=0 // pred_fallthru
    _
  // Predicated region
  $region6: #{vqvae_forward.16} parent=0 // pred_check
    _
  $region7: #{vqvae_forward.16} parent=0 // pred_check_branch
    %13 = sbr.rel (0) target = $region9
  $region8: #{vqvae_forward.16} parent=0 // pred_region
    _
  $region9: #{vqvae_forward.16} parent=0 // pred_fallthru
    _
  // Predicated region
  $region10: #{vqvae_forward.16} parent=0 // pred_check
    _
  $region11: #{vqvae_forward.16} parent=0 // pred_check_branch
    %15 = sbr.rel (0) target = $region13
  $region12: #{vqvae_forward.16} parent=0 // pred_region
    _
  $region13: #{vqvae_forward.16} parent=0 // pred_fallthru
    _
  %v17 = vld [vmem:[%s0] sm:$0xf]
  %v18 = vld [vmem:[%s0 + $0x4] sm:$0xf]
  %v19 = vld [vmem:[%s0 + $0x8] sm:$0xf]
  %v20 = vld [vmem:[%s0 + $0xc] sm:$0xf]
  %v21 = vld [vmem:[%s1] sm:$0xf]
  %v22 = vld [vmem:[%s1 + $0x4] sm:$0xf]
  %v23 = vld [vmem:[%s1 + $0x8] sm:$0xf]
  %v24 = vld [vmem:[%s1 + $0xc] sm:$0xf]
  %v25 = vld [vmem:[%s1 + $0x10] sm:$0xf]
  %v26 = vld [vmem:[%s1 + $0x14] sm:$0xf]
  %v27 = vld [vmem:[%s1 + $0x18] sm:$0xf]
  %v28 = vld [vmem:[%s1 + $0x1c] sm:$0xf]
  %v29 = vld [vmem:[%s2] sm:$0x1]
  %v31 = vlaneseq
  %v32 = vshrl.u32 %v31, 7
  %v33 = vsub.s32 0, %v32
  %v34 = vrot.slane %v29, %v33
  %v40 = vunpack.c.l.b16 %v17
  %v41 = vunpack.c.l.b16 %v18
  %v42 = vunpack.c.l.b16 %v19
  %v43 = vunpack.c.l.b16 %v20
  %v44 = vpack.c.b16 %v41, %v40
  %v45 = vpack.c.b16 %v43, %v42
  %v54 = vunpack.c.l.b16 %v21
  %v55 = vunpack.c.l.b16 %v22
  %v56 = vunpack.c.l.b16 %v23
  %v57 = vunpack.c.l.b16 %v24
  %v58 = vunpack.c.l.b16 %v25
  %v59 = vunpack.c.l.b16 %v26
  %v60 = vunpack.c.l.b16 %v27
  %v61 = vunpack.c.l.b16 %v28
  %v62 = vpack.c.b16 %v55, %v54
  %v63 = vpack.c.b16 %v57, %v56
  %v64 = vpack.c.b16 %v59, %v58
  %v65 = vpack.c.b16 %v61, %v60
  %vm70 = vcmask 523264
  %v72 = vsel %vm70, %v44, 0
  %v75 = vsel %vm70, %v45, 0
  %77 = vmatprep.subr.bf16.mxu0 0
  %78 = vmatpush1.bf16.msra.mxu0 %v62
  %79 = vmatprep.subr.bf16.mxu0 0
  %80 = vmatpush1.bf16.msra.mxu0 %v63
  %81 = vmatprep.subr.bf16.mxu0 0
  %82 = vmatpush1.bf16.msra.mxu0 %v64
  %83 = vmatprep.subr.bf16.mxu0 0
  %84 = vmatpush1.bf16.msra.mxu0 %v65
  %85 = vmatprep.subr.bf16.mxu0 0
  %86 = vmatpush1.bf16.msra.mxu0 0
  %87 = vmatprep.subr.bf16.mxu0 0
  %88 = vmatpush1.bf16.msra.mxu0 0
  %89 = vmatprep.subr.bf16.mxu0 0
  %90 = vmatpush1.bf16.msra.mxu0 0
  %91 = vmatprep.subr.bf16.mxu0 0
  %92 = vmatpush1.bf16.msra.mxu0 0
  %93 = vmatprep.subr.bf16.mxu0 0
  %94 = vmatpush1.bf16.msra.mxu0 0
  %95 = vmatprep.subr.bf16.mxu0 0
  %96 = vmatpush1.bf16.msra.mxu0 0
  %97 = vmatprep.subr.bf16.mxu0 0
  %98 = vmatpush1.bf16.msra.mxu0 0
  %99 = vmatprep.subr.bf16.mxu0 0
  %100 = vmatpush1.bf16.msra.mxu0 0
  %101 = vmatprep.subr.bf16.mxu0 0
  %102 = vmatpush1.bf16.msra.mxu0 0
  %103 = vmatprep.subr.bf16.mxu0 0
  %104 = vmatpush1.bf16.msra.mxu0 0
  %105 = vmatprep.subr.bf16.mxu0 0
  %106 = vmatpush1.bf16.msra.mxu0 0
  %107 = vmatprep.subr.bf16.mxu0 0
  %108 = vmatpush1.bf16.msra.mxu0 0
  %109 = vmatprep.mubr.bf16.mxu0 0
  %110 = vmatmul.mubr.bf16.gmra.mrb[0].mxu0 %v72
  %v111 = vpop.f32.mrb[0].mxu0
  %v112 = vadd.f32 %v34, %v111
  %v113 = vpop.f32.mrb[0].mxu0
  %v114 = vpop.f32.mrb[0].mxu0
  %v115 = vadd.f32 %v34, %v114
  %v116 = vpop.f32.mrb[0].mxu0
  %117 = vmatprep.mubr.bf16.mxu0 0
  %118 = vmatmul.mubr.bf16.gmra.mrb[0].mxu0 %v75
  %v119 = vpop.f32.mrb[0].mxu0
  %v120 = vadd.f32 %v34, %v119
  %v121 = vpop.f32.mrb[0].mxu0
  %v122 = vpop.f32.mrb[0].mxu0
  %v123 = vadd.f32 %v34, %v122
  %v124 = vpop.f32.mrb[0].mxu0
  %125 = vdwg.mxu0
  %126 = vst [vmem:[%s3] sm:$0xff] %v112
  %127 = vst [vmem:[%s3 + $0x8] sm:$0xff] %v115
  %128 = vst [vmem:[%s3 + $0x10] sm:$0xff] %v120
  %129 = vst [vmem:[%s3 + $0x18] sm:$0xff] %v123
  %s130 = smul.u32 0, 32
  %v131 = vlaneseq
  %v132 = vshrl.u32 %v131, 7
  %v133 = vadd.s32 %v132, 8
  %v134 = vadd.s32 %v132, 16
  %v135 = vadd.s32 %v132, 24
  %v136 = vstv %s130
  %v137 = vadd.s32 %v136, %v132
  %v138 = vadd.s32 %v136, %v133
  %v139 = vadd.s32 %v136, %v134
  %v140 = vadd.s32 %v136, %v135
  %vm141 = vcmp.lt.s32.totalorder %v137, 32
  %vm142 = vcmp.lt.s32.totalorder %v138, 32
  %vm143 = vcmp.lt.s32.totalorder %v139, 32
  %vm144 = vcmp.lt.s32.totalorder %v140, 32
  %v145 = vsel %vm141, 1, 0
  %v146 = vsel %vm142, 1, 0
  %v147 = vsel %vm143, 1, 0
  %v148 = vsel %vm144, 1, 0
  %v149 = vcvt.s32.f32 %v145
  %v150 = vcvt.s32.f32 %v146
  %v151 = vcvt.s32.f32 %v147
  %v152 = vcvt.s32.f32 %v148
  %v153 = vmul.f32 %v112, %v149
  %v154 = vmul.f32 %v115, %v150
  %v155 = vmul.f32 %v120, %v151
  %v156 = vmul.f32 %v123, %v152
  %v157 = vadd.f32 %v153, %v154
  %v158 = vadd.f32 %v157, %v155
  %v159 = vadd.f32 %v158, %v156
  %v160 = vrot.slane %v159, 4
  %v161 = vadd.f32 %v159, %v160
  %v162 = vrot.slane %v161, 2
  %v163 = vadd.f32 %v161, %v162
  %v164 = vrot.slane %v163, 1
  %v165 = vadd.f32 %v163, %v164
  %v166 = vmul.f32 %v153, %v153
  %v167 = vmul.f32 %v154, %v154
  %v168 = vmul.f32 %v155, %v155
  %v169 = vmul.f32 %v156, %v156
  %v170 = vadd.f32 %v166, %v167
  %v171 = vadd.f32 %v170, %v168
  %v172 = vadd.f32 %v171, %v169
  %v173 = vrot.slane %v172, 4
  %v174 = vadd.f32 %v172, %v173
  %v175 = vrot.slane %v174, 2
  %v176 = vadd.f32 %v174, %v175
  %v177 = vrot.slane %v176, 1
  %v178 = vadd.f32 %v176, %v177
  %vm179 = vcmask 1040384
  %v180 = vsel %vm179, %v165, %v178
  %181 = vst [vmem:[%s4] sm:$0x3] %v180
  // Predicated region
  $region14: #{vqvae_forward.16} parent=0 // pred_check
    _
  $region15: #{vqvae_forward.16} parent=0 // pred_check_branch
    %183 = sbr.rel (0) target = $region17
  $region16: #{vqvae_forward.16} parent=0 // pred_region
    _
  $region17: #{vqvae_forward.16} parent=0 // pred_fallthru
    _
  // Predicated region
  $region18: #{vqvae_forward.16} parent=0 // pred_check
    _
  $region19: #{vqvae_forward.16} parent=0 // pred_check_branch
    %185 = sbr.rel (0) target = $region21
  $region20: #{vqvae_forward.16} parent=0 // pred_region
    _
  $region21: #{vqvae_forward.16} parent=0 // pred_fallthru
    _
  // Predicated region
  $region22: #{vqvae_forward.16} parent=0 // pred_check
    _
  $region23: #{vqvae_forward.16} parent=0 // pred_check_branch
    %187 = sbr.rel (0) target = $region25
  $region24: #{vqvae_forward.16} parent=0 // pred_region
    _
  $region25: #{vqvae_forward.16} parent=0 // pred_fallthru
    _
  // Predicated region
  $region26: #{vqvae_forward.16} parent=0 // pred_check
    _
  $region27: #{vqvae_forward.16} parent=0 // pred_check_branch
    %189 = sbr.rel (0) target = $region29
  $region28: #{vqvae_forward.16} parent=0 // pred_region
    _
  $region29: #{vqvae_forward.16} parent=0 // pred_fallthru
    _

// kernel: vqvae_forward.17
$region0: #{vqvae_forward.17}
  #allocation0 [shape = 'u32[]', space=smem, size = 0x4, offset = 0x4, fixed_abs, tag = 'smem constant byte address 0x4 - core index']
  #allocation1 [shape = 'u32[144,128]{1,0:T(1,128)}', space=vmem, size = 0x12000, scoped, tag = 'internal scratch']
  %s0 = inlined_call_operand.vmem [shape: f32[32,128], index: 0, kind: input, shape index: {}]
  %s1 = inlined_call_operand.vmem [shape: f32[1,128], index: 1, kind: input, shape index: {}]
  %s2 = inlined_call_operand.vmem [shape: f32[1,128], index: 2, kind: input, shape index: {}]
  %s3 = inlined_call_operand.vmem [shape: f32[32,128], index: 3, kind: output, shape index: {}]
  %s4 = sld [smem:[#allocation0]]
  $region22: #{vqvae_forward.17} parent=0
    _
  %s6 = ssub.s32 1, %s4
  %s7 = scalar_select 0, %s6, %s4
  // Predicated region
  $region2: #{vqvae_forward.17} parent=0 // pred_check
    _
  $region3: #{vqvae_forward.17} parent=0 // pred_check_branch
    %9 = sbr.rel (0) target = $region5
  $region4: #{vqvae_forward.17} parent=0 // pred_region
    _
  $region5: #{vqvae_forward.17} parent=0 // pred_fallthru
    _
  // Predicated region
  $region6: #{vqvae_forward.17} parent=0 // pred_check
    _
  $region7: #{vqvae_forward.17} parent=0 // pred_check_branch
    %11 = sbr.rel (0) target = $region9
  $region8: #{vqvae_forward.17} parent=0 // pred_region
    _
  $region9: #{vqvae_forward.17} parent=0 // pred_fallthru
    _
  // Predicated region
  $region10: #{vqvae_forward.17} parent=0 // pred_check
    _
  $region11: #{vqvae_forward.17} parent=0 // pred_check_branch
    %13 = sbr.rel (0) target = $region13
  $region12: #{vqvae_forward.17} parent=0 // pred_region
    _
  $region13: #{vqvae_forward.17} parent=0 // pred_fallthru
    _
  %v14 = vld [vmem:[%s0] sm:$0xff]
  %v15 = vld [vmem:[%s0 + $0x8] sm:$0xff]
  %v16 = vld [vmem:[%s0 + $0x10] sm:$0xff]
  %v17 = vld [vmem:[%s0 + $0x18] sm:$0xff]
  %v18 = vld [vmem:[%s1] sm:$0x1]
  %v20 = vlaneseq
  %v21 = vshrl.u32 %v20, 7
  %v22 = vsub.s32 0, %v21
  %v23 = vrot.slane %v18, %v22
  %v25 = vmul.f32 %v14, %v23
  %v26 = vmul.f32 %v15, %v23
  %v27 = vmul.f32 %v16, %v23
  %v28 = vmul.f32 %v17, %v23
  %v29 = vld [vmem:[%s2] sm:$0x1]
  %v31 = vlaneseq
  %v32 = vshrl.u32 %v31, 7
  %v33 = vsub.s32 0, %v32
  %v34 = vrot.slane %v29, %v33
  %v36 = vadd.f32 %v25, %v34
  %v37 = vadd.f32 %v26, %v34
  %v38 = vadd.f32 %v27, %v34
  %v39 = vadd.f32 %v28, %v34
  %vm40 = vcmp.ge.f32.partialorder %v36, 0.0
  %vm41 = vcmp.ge.f32.partialorder %v37, 0.0
  %vm42 = vcmp.ge.f32.partialorder %v38, 0.0
  %vm43 = vcmp.ge.f32.partialorder %v39, 0.0
  %v44 = vmul.f32 %v36, 0.01
  %v45 = vmul.f32 %v37, 0.01
  %v46 = vmul.f32 %v38, 0.01
  %v47 = vmul.f32 %v39, 0.01
  %v48 = vsel %vm40, %v36, %v44
  %v49 = vsel %vm41, %v37, %v45
  %v50 = vsel %vm42, %v38, %v46
  %v51 = vsel %vm43, %v39, %v47
  %52 = vst [vmem:[%s3] sm:$0xff] %v48
  %53 = vst [vmem:[%s3 + $0x8] sm:$0xff] %v49
  %54 = vst [vmem:[%s3 + $0x10] sm:$0xff] %v50
  %55 = vst [vmem:[%s3 + $0x18] sm:$0xff] %v51
  // Predicated region
  $region14: #{vqvae_forward.17} parent=0 // pred_check
    _
  $region15: #{vqvae_forward.17} parent=0 // pred_check_branch
    %57 = sbr.rel (0) target = $region17
  $region16: #{vqvae_forward.17} parent=0 // pred_region
    _
  $region17: #{vqvae_forward.17} parent=0 // pred_fallthru
    _
  // Predicated region
  $region18: #{vqvae_forward.17} parent=0 // pred_check
    _
  $region19: #{vqvae_forward.17} parent=0 // pred_check_branch
    %59 = sbr.rel (0) target = $region21
  $region20: #{vqvae_forward.17} parent=0 // pred_region
    _
  $region21: #{vqvae_forward.17} parent=0 // pred_fallthru
    _

// kernel: vqvae_forward.18
$region0: #{vqvae_forward.18}
  #allocation0 [shape = 'u32[]', space=smem, size = 0x4, offset = 0x4, fixed_abs, tag = 'smem constant byte address 0x4 - core index']
  #allocation1 [shape = 'u32[144,128]{1,0:T(1,128)}', space=vmem, size = 0x12000, scoped, tag = 'internal scratch']
  %s0 = inlined_call_operand.vmem [shape: f32[32,128], index: 0, kind: input, shape index: {}]
  %s1 = inlined_call_operand.vmem [shape: f32[128,128], index: 1, kind: input, shape index: {}]
  %s2 = inlined_call_operand.vmem [shape: f32[1,128], index: 2, kind: input, shape index: {}]
  %s3 = inlined_call_operand.vmem [shape: f32[32,128], index: 3, kind: output, shape index: {0}]
  %s4 = inlined_call_operand.vmem [shape: f32[1,1,128], index: 4, kind: output, shape index: {1}]
  %5 = xla_tuple %s3, %s4
  %s6 = sld [smem:[#allocation0]]
  $region30: #{vqvae_forward.18} parent=0
    _
  %s8 = ssub.s32 1, %s6
  %s9 = scalar_select 0, %s8, %s6
  // Predicated region
  $region2: #{vqvae_forward.18} parent=0 // pred_check
    _
  $region3: #{vqvae_forward.18} parent=0 // pred_check_branch
    %11 = sbr.rel (0) target = $region5
  $region4: #{vqvae_forward.18} parent=0 // pred_region
    _
  $region5: #{vqvae_forward.18} parent=0 // pred_fallthru
    _
  // Predicated region
  $region6: #{vqvae_forward.18} parent=0 // pred_check
    _
  $region7: #{vqvae_forward.18} parent=0 // pred_check_branch
    %13 = sbr.rel (0) target = $region9
  $region8: #{vqvae_forward.18} parent=0 // pred_region
    _
  $region9: #{vqvae_forward.18} parent=0 // pred_fallthru
    _
  // Predicated region
  $region10: #{vqvae_forward.18} parent=0 // pred_check
    _
  $region11: #{vqvae_forward.18} parent=0 // pred_check_branch
    %15 = sbr.rel (0) target = $region13
  $region12: #{vqvae_forward.18} parent=0 // pred_region
    _
  $region13: #{vqvae_forward.18} parent=0 // pred_fallthru
    _
  %v16 = vld [vmem:[%s0] sm:$0xff]
  %v17 = vld [vmem:[%s0 + $0x8] sm:$0xff]
  %v18 = vld [vmem:[%s0 + $0x10] sm:$0xff]
  %v19 = vld [vmem:[%s0 + $0x18] sm:$0xff]
  %v20 = vld [vmem:[%s1] sm:$0xff]
  %v21 = vld [vmem:[%s1 + $0x8] sm:$0xff]
  %v22 = vld [vmem:[%s1 + $0x10] sm:$0xff]
  %v23 = vld [vmem:[%s1 + $0x18] sm:$0xff]
  %v24 = vld [vmem:[%s1 + $0x20] sm:$0xff]
  %v25 = vld [vmem:[%s1 + $0x28] sm:$0xff]
  %v26 = vld [vmem:[%s1 + $0x30] sm:$0xff]
  %v27 = vld [vmem:[%s1 + $0x38] sm:$0xff]
  %v28 = vld [vmem:[%s1 + $0x40] sm:$0xff]
  %v29 = vld [vmem:[%s1 + $0x48] sm:$0xff]
  %v30 = vld [vmem:[%s1 + $0x50] sm:$0xff]
  %v31 = vld [vmem:[%s1 + $0x58] sm:$0xff]
  %v32 = vld [vmem:[%s1 + $0x60] sm:$0xff]
  %v33 = vld [vmem:[%s1 + $0x68] sm:$0xff]
  %v34 = vld [vmem:[%s1 + $0x70] sm:$0xff]
  %v35 = vld [vmem:[%s1 + $0x78] sm:$0xff]
  %v36 = vmul.f32 %v16, %v16
  %v37 = vmul.f32 %v17, %v17
  %v38 = vmul.f32 %v18, %v18
  %v39 = vmul.f32 %v19, %v19
  %40 = vadd.xlane.f32.xlu0 %v36
  %v41 = vpop.xlane.xlu0 %40
  %42 = vadd.xlane.f32.xlu0 %v37
  %v43 = vpop.xlane.xlu0 %42
  %44 = vadd.xlane.f32.xlu0 %v38
  %v45 = vpop.xlane.xlu0 %44
  %46 = vadd.xlane.f32.xlu0 %v39
  %v47 = vpop.xlane.xlu0 %46
  %48 = vmatprep.subr.mxu0 0.0
  %49 = vmatpush1.xpose.msra.mxu0 %v20
  %50 = vmatprep.subr.mxu0 0.0
  %51 = vmatpush1.xpose.msra.mxu0 %v21
  %52 = vmatprep.subr.mxu0 0.0
  %53 = vmatpush1.xpose.msra.mxu0 %v22
  %54 = vmatprep.subr.mxu0 0.0
  %55 = vmatpush1.xpose.msra.mxu0 %v23
  %56 = vmatprep.subr.mxu0 0.0
  %57 = vmatpush1.xpose.msra.mxu0 %v24
  %58 = vmatprep.subr.mxu0 0.0
  %59 = vmatpush1.xpose.msra.mxu0 %v25
  %60 = vmatprep.subr.mxu0 0.0
  %61 = vmatpush1.xpose.msra.mxu0 %v26
  %62 = vmatprep.subr.mxu0 0.0
  %63 = vmatpush1.xpose.msra.mxu0 %v27
  %64 = vmatprep.subr.mxu0 0.0
  %65 = vmatpush1.xpose.msra.mxu0 %v28
  %66 = vmatprep.subr.mxu0 0.0
  %67 = vmatpush1.xpose.msra.mxu0 %v29
  %68 = vmatprep.subr.mxu0 0.0
  %69 = vmatpush1.xpose.msra.mxu0 %v30
  %70 = vmatprep.subr.mxu0 0.0
  %71 = vmatpush1.xpose.msra.mxu0 %v31
  %72 = vmatprep.subr.mxu0 0.0
  %73 = vmatpush1.xpose.msra.mxu0 %v32
  %74 = vmatprep.subr.mxu0 0.0
  %75 = vmatpush1.xpose.msra.mxu0 %v33
  %76 = vmatprep.subr.mxu0 0.0
  %77 = vmatpush1.xpose.msra.mxu0 %v34
  %78 = vmatprep.subr.mxu0 0.0
  %79 = vmatpush1.xpose.msra.mxu0 %v35
  %80 = vmatprep.subr.mxu0 0.0
  %81 = vmatpush1.xpose.msra.mxu0 0.0
  %82 = vmatprep.subr.mxu0 0.0
  %83 = vmatpush1.xpose.msra.mxu0 0.0
  %84 = vmatprep.subr.mxu0 0.0
  %85 = vmatpush1.xpose.msra.mxu0 0.0
  %86 = vmatprep.subr.mxu0 0.0
  %87 = vmatpush1.xpose.msra.mxu0 0.0
  %88 = vmatprep.subr.mxu0 0.0
  %89 = vmatpush1.xpose.msra.mxu0 0.0
  %90 = vmatprep.subr.mxu0 0.0
  %91 = vmatpush1.xpose.msra.mxu0 0.0
  %92 = vmatprep.subr.mxu0 0.0
  %93 = vmatpush1.xpose.msra.mxu0 0.0
  %94 = vmatprep.subr.mxu0 0.0
  %95 = vmatpush1.xpose.msra.mxu0 0.0
  %96 = vmatprep.subr.mxu0 0.0
  %97 = vmatpush1.xpose.msra.mxu0 0.0
  %98 = vmatprep.subr.mxu0 0.0
  %99 = vmatpush1.xpose.msra.mxu0 0.0
  %100 = vmatprep.subr.mxu0 0.0
  %101 = vmatpush1.xpose.msra.mxu0 0.0
  %102 = vmatprep.subr.mxu0 0.0
  %103 = vmatpush1.xpose.msra.mxu0 0.0
  %104 = vmatprep.subr.mxu0 0.0
  %105 = vmatpush1.xpose.msra.mxu0 0.0
  %106 = vmatprep.subr.mxu0 0.0
  %107 = vmatpush1.xpose.msra.mxu0 0.0
  %108 = vmatprep.subr.mxu0 0.0
  %109 = vmatpush1.xpose.msra.mxu0 0.0
  %110 = vmatprep.subr.mxu0 0.0
  %111 = vmatpush1.xpose.msra.mxu0 0.0
  %112 = vmatprep.mubr.f32.mxu0 0.0
  %113 = vmatmul.mubr.f32.gmra.mrb[0].mxu0 %v16
  %v114 = vpop.f32.mrb[0].mxu0
  %v115 = vadd.f32 0.0, %v114
  %v116 = vpop.f32.mrb[0].mxu0
  %117 = vmatprep.mubr.f32.mxu0 0.0
  %118 = vmatmul.mubr.f32.gmra.mrb[0].mxu0 %v17
  %v119 = vpop.f32.mrb[0].mxu0
  %v120 = vadd.f32 0.0, %v119
  %v121 = vpop.f32.mrb[0].mxu0
  %122 = vmatprep.mubr.f32.mxu0 0.0
  %123 = vmatmul.mubr.f32.gmra.mrb[0].mxu0 %v18
  %v124 = vpop.f32.mrb[0].mxu0
  %v125 = vadd.f32 0.0, %v124
  %v126 = vpop.f32.mrb[0].mxu0
  %127 = vmatprep.mubr.f32.mxu0 0.0
  %128 = vmatmul.mubr.f32.gmra.mrb[0].mxu0 %v19
  %v129 = vpop.f32.mrb[0].mxu0
  %v130 = vadd.f32 0.0, %v129
  %v131 = vpop.f32.mrb[0].mxu0
  %132 = vdwg.mxu0
  %v133 = vmul.f32 %v115, 2.0
  %v134 = vmul.f32 %v120, 2.0
  %v135 = vmul.f32 %v125, 2.0
  %v136 = vmul.f32 %v130, 2.0
  %v137 = vsub.f32 %v41, %v133
  %v138 = vsub.f32 %v43, %v134
  %v139 = vsub.f32 %v45, %v135
  %v140 = vsub.f32 %v47, %v136
  %v141 = vld [vmem:[%s2] sm:$0x1]
  %v143 = vlaneseq
  %v144 = vshrl.u32 %v143, 7
  %v145 = vsub.s32 0, %v144
  %v146 = vrot.slane %v141, %v145
  %v148 = vadd.f32 %v137, %v146
  %v149 = vadd.f32 %v138, %v146
  %v150 = vadd.f32 %v139, %v146
  %v151 = vadd.f32 %v140, %v146
  %152 = vmin.xlane.f32.xlu0 %v148
  %v153 = vpop.xlane.xlu0 %152
  %154 = vmin.xlane.f32.xlu0 %v149
  %v155 = vpop.xlane.xlu0 %154
  %156 = vmin.xlane.f32.xlu0 %v150
  %v157 = vpop.xlane.xlu0 %156
  %158 = vmin.xlane.f32.xlu0 %v151
  %v159 = vpop.xlane.xlu0 %158
  %v160 = vlaneseq
  %v161 = vand.u32 %v160, 127
  %vm162 = vcmp.le.f32.partialorder %v148, %v153
  %vm163 = vcmp.le.f32.partialorder %v149, %v155
  %vm164 = vcmp.le.f32.partialorder %v150, %v157
  %vm165 = vcmp.le.f32.partialorder %v151, %v159
  %v166 = vsel %vm162, %v161, 128
  %v167 = vsel %vm163, %v161, 128
  %v168 = vsel %vm164, %v161, 128
  %v169 = vsel %vm165, %v161, 128
  %v170 = vand.u32 %v166, 65535
  %v171 = vshra.s32 %v166, 16
  %v172 = vcvt.s32.f32 %v170
  %v173 = vcvt.s32.f32 %v171
  %174 = vmin.xlane.f32.xlu0 %v173
  %v175 = vpop.xlane.xlu0 %174
  %vm176 = vcmp.eq.f32.partialorder %v173, %v175
  %v177 = vsel %vm176, %v172, inf
  %178 = vmin.xlane.f32.xlu0 %v177
  %v179 = vpop.xlane.xlu0 %178
  %v180 = vcvt.f32.s32 %v179
  %v181 = vcvt.f32.s32 %v175
  %v182 = vshll.u32 %v181, 16
  %v183 = vadd.s32 %v182, %v180
  %v184 = vand.u32 %v167, 65535
  %v185 = vshra.s32 %v167, 16
  %v186 = vcvt.s32.f32 %v184
  %v187 = vcvt.s32.f32 %v185
  %188 = vmin.xlane.f32.xlu0 %v187
  %v189 = vpop.xlane.xlu0 %188
  %vm190 = vcmp.eq.f32.partialorder %v187, %v189
  %v191 = vsel %vm190, %v186, inf
  %192 = vmin.xlane.f32.xlu0 %v191
  %v193 = vpop.xlane.xlu0 %192
  %v194 = vcvt.f32.s32 %v193
  %v195 = vcvt.f32.s32 %v189
  %v196 = vshll.u32 %v195, 16
  %v197 = vadd.s32 %v196, %v194
  %v198 = vand.u32 %v168, 65535
  %v199 = vshra.s32 %v168, 16
  %v200 = vcvt.s32.f32 %v198
  %v201 = vcvt.s32.f32 %v199
  %202 = vmin.xlane.f32.xlu0 %v201
  %v203 = vpop.xlane.xlu0 %202
  %vm204 = vcmp.eq.f32.partialorder %v201, %v203
  %v205 = vsel %vm204, %v200, inf
  %206 = vmin.xlane.f32.xlu0 %v205
  %v207 = vpop.xlane.xlu0 %206
  %v208 = vcvt.f32.s32 %v207
  %v209 = vcvt.f32.s32 %v203
  %v210 = vshll.u32 %v209, 16
  %v211 = vadd.s32 %v210, %v208
  %v212 = vand.u32 %v169, 65535
  %v213 = vshra.s32 %v169, 16
  %v214 = vcvt.s32.f32 %v212
  %v215 = vcvt.s32.f32 %v213
  %216 = vmin.xlane.f32.xlu0 %v215
  %v217 = vpop.xlane.xlu0 %216
  %vm218 = vcmp.eq.f32.partialorder %v215, %v217
  %v219 = vsel %vm218, %v214, inf
  %220 = vmin.xlane.f32.xlu0 %v219
  %v221 = vpop.xlane.xlu0 %220
  %v222 = vcvt.f32.s32 %v221
  %v223 = vcvt.f32.s32 %v217
  %v224 = vshll.u32 %v223, 16
  %v225 = vadd.s32 %v224, %v222
  %vm226 = vcmp.eq.s32.totalorder %v161, %v183
  %vm227 = vcmp.eq.s32.totalorder %v161, %v197
  %vm228 = vcmp.eq.s32.totalorder %v161, %v211
  %vm229 = vcmp.eq.s32.totalorder %v161, %v225
  %v230 = vsel %vm226, 1, 0
  %v231 = vsel %vm227, 1, 0
  %v232 = vsel %vm228, 1, 0
  %v233 = vsel %vm229, 1, 0
  %v234 = vcvt.s32.f32 %v230
  %v235 = vcvt.s32.f32 %v231
  %v236 = vcvt.s32.f32 %v232
  %v237 = vcvt.s32.f32 %v233
  %238 = vmatprep.subr.mxu0 0.0
  %239 = vmatpush1.msra.mxu0 %v20
  %240 = vmatprep.subr.mxu0 0.0
  %241 = vmatpush1.msra.mxu0 %v21
  %242 = vmatprep.subr.mxu0 0.0
  %243 = vmatpush1.msra.mxu0 %v22
  %244 = vmatprep.subr.mxu0 0.0
  %245 = vmatpush1.msra.mxu0 %v23
  %246 = vmatprep.subr.mxu0 0.0
  %247 = vmatpush1.msra.mxu0 %v24
  %248 = vmatprep.subr.mxu0 0.0
  %249 = vmatpush1.msra.mxu0 %v25
  %250 = vmatprep.subr.mxu0 0.0
  %251 = vmatpush1.msra.mxu0 %v26
  %252 = vmatprep.subr.mxu0 0.0
  %253 = vmatpush1.msra.mxu0 %v27
  %254 = vmatprep.subr.mxu0 0.0
  %255 = vmatpush1.msra.mxu0 %v28
  %256 = vmatprep.subr.mxu0 0.0
  %257 = vmatpush1.msra.mxu0 %v29
  %258 = vmatprep.subr.mxu0 0.0
  %259 = vmatpush1.msra.mxu0 %v30
  %260 = vmatprep.subr.mxu0 0.0
  %261 = vmatpush1.msra.mxu0 %v31
  %262 = vmatprep.subr.mxu0 0.0
  %263 = vmatpush1.msra.mxu0 %v32
  %264 = vmatprep.subr.mxu0 0.0
  %265 = vmatpush1.msra.mxu0 %v33
  %266 = vmatprep.subr.mxu0 0.0
  %267 = vmatpush1.msra.mxu0 %v34
  %268 = vmatprep.subr.mxu0 0.0
  %269 = vmatpush1.msra.mxu0 %v35
  %270 = vmatprep.subr.mxu0 0.0
  %271 = vmatpush1.msra.mxu0 0.0
  %272 = vmatprep.subr.mxu0 0.0
  %273 = vmatpush1.msra.mxu0 0.0
  %274 = vmatprep.subr.mxu0 0.0
  %275 = vmatpush1.msra.mxu0 0.0
  %276 = vmatprep.subr.mxu0 0.0
  %277 = vmatpush1.msra.mxu0 0.0
  %278 = vmatprep.subr.mxu0 0.0
  %279 = vmatpush1.msra.mxu0 0.0
  %280 = vmatprep.subr.mxu0 0.0
  %281 = vmatpush1.msra.mxu0 0.0
  %282 = vmatprep.subr.mxu0 0.0
  %283 = vmatpush1.msra.mxu0 0.0
  %284 = vmatprep.subr.mxu0 0.0
  %285 = vmatpush1.msra.mxu0 0.0
  %286 = vmatprep.subr.mxu0 0.0
  %287 = vmatpush1.msra.mxu0 0.0
  %288 = vmatprep.subr.mxu0 0.0
  %289 = vmatpush1.msra.mxu0 0.0
  %290 = vmatprep.subr.mxu0 0.0
  %291 = vmatpush1.msra.mxu0 0.0
  %292 = vmatprep.subr.mxu0 0.0
  %293 = vmatpush1.msra.mxu0 0.0
  %294 = vmatprep.subr.mxu0 0.0
  %295 = vmatpush1.msra.mxu0 0.0
  %296 = vmatprep.subr.mxu0 0.0
  %297 = vmatpush1.msra.mxu0 0.0
  %298 = vmatprep.subr.mxu0 0.0
  %299 = vmatpush1.msra.mxu0 0.0
  %300 = vmatprep.subr.mxu0 0.0
  %301 = vmatpush1.msra.mxu0 0.0
  %302 = vmatprep.mubr.f32.mxu0 0.0
  %303 = vmatmul.mubr.f32.gmra.mrb[0].mxu0 %v234
  %v304 = vpop.f32.mrb[0].mxu0
  %v305 = vadd.f32 0.0, %v304
  %v306 = vpop.f32.mrb[0].mxu0
  %307 = vmatprep.mubr.f32.mxu0 0.0
  %308 = vmatmul.mubr.f32.gmra.mrb[0].mxu0 %v235
  %v309 = vpop.f32.mrb[0].mxu0
  %v310 = vadd.f32 0.0, %v309
  %v311 = vpop.f32.mrb[0].mxu0
  %312 = vmatprep.mubr.f32.mxu0 0.0
  %313 = vmatmul.mubr.f32.gmra.mrb[0].mxu0 %v236
  %v314 = vpop.f32.mrb[0].mxu0
  %v315 = vadd.f32 0.0, %v314
  %v316 = vpop.f32.mrb[0].mxu0
  %317 = vmatprep.mubr.f32.mxu0 0.0
  %318 = vmatmul.mubr.f32.gmra.mrb[0].mxu0 %v237
  %v319 = vpop.f32.mrb[0].mxu0
  %v320 = vadd.f32 0.0, %v319
  %v321 = vpop.f32.mrb[0].mxu0
  %322 = vdwg.mxu0
  %323 = vst [vmem:[%s3] sm:$0xff] %v305
  %324 = vst [vmem:[%s3 + $0x8] sm:$0xff] %v310
  %325 = vst [vmem:[%s3 + $0x10] sm:$0xff] %v315
  %326 = vst [vmem:[%s3 + $0x18] sm:$0xff] %v320
  %s327 = smul.u32 0, 32
  %v328 = vlaneseq
  %v329 = vshrl.u32 %v328, 7
  %v330 = vadd.s32 %v329, 8
  %v331 = vadd.s32 %v329, 16
  %v332 = vadd.s32 %v329, 24
  %v333 = vstv %s327
  %v334 = vadd.s32 %v333, %v329
  %v335 = vadd.s32 %v333, %v330
  %v336 = vadd.s32 %v333, %v331
  %v337 = vadd.s32 %v333, %v332
  %vm338 = vcmp.lt.s32.totalorder %v334, 32
  %vm339 = vcmp.lt.s32.totalorder %v335, 32
  %vm340 = vcmp.lt.s32.totalorder %v336, 32
  %vm341 = vcmp.lt.s32.totalorder %v337, 32
  %v342 = vsel %vm338, 1, 0
  %v343 = vsel %vm339, 1, 0
  %v344 = vsel %vm340, 1, 0
  %v345 = vsel %vm341, 1, 0
  %v346 = vcvt.s32.f32 %v342
  %v347 = vcvt.s32.f32 %v343
  %v348 = vcvt.s32.f32 %v344
  %v349 = vcvt.s32.f32 %v345
  %v350 = vsub.f32 %v305, %v16
  %v351 = vsub.f32 %v310, %v17
  %v352 = vsub.f32 %v315, %v18
  %v353 = vsub.f32 %v320, %v19
  %v354 = vmul.f32 %v350, %v346
  %v355 = vmul.f32 %v351, %v347
  %v356 = vmul.f32 %v352, %v348
  %v357 = vmul.f32 %v353, %v349
  %v358 = vmul.f32 %v354, %v354
  %v359 = vmul.f32 %v355, %v355
  %v360 = vmul.f32 %v356, %v356
  %v361 = vmul.f32 %v357, %v357
  %v362 = vadd.f32 %v358, %v359
  %v363 = vadd.f32 %v362, %v360
  %v364 = vadd.f32 %v363, %v361
  %365 = vadd.xlane.f32.xlu0 %v364
  %v366 = vpop.xlane.xlu0 %365
  %v367 = vrot.slane %v366, 4
  %v368 = vadd.f32 %v366, %v367
  %v369 = vrot.slane %v368, 2
  %v370 = vadd.f32 %v368, %v369
  %v371 = vrot.slane %v370, 1
  %v372 = vadd.f32 %v370, %v371
  %s373 = vtos %v372
  %v374 = vstv %s373
  %375 = vst [vmem:[%s4] sm:$0x1] %v374
  // Predicated region
  $region14: #{vqvae_forward.18} parent=0 // pred_check
    _
  $region15: #{vqvae_forward.18} parent=0 // pred_check_branch
    %377 = sbr.rel (0) target = $region17
  $region16: #{vqvae_forward.18} parent=0 // pred_region
    _
  $region17: #{vqvae_forward.18} parent=0 // pred_fallthru
    _
  // Predicated region
  $region18: #{vqvae_forward.18} parent=0 // pred_check
    _
  $region19: #{vqvae_forward.18} parent=0 // pred_check_branch
    %379 = sbr.rel (0) target = $region21
  $region20: #{vqvae_forward.18} parent=0 // pred_region
    _
  $region21: #{vqvae_forward.18} parent=0 // pred_fallthru
    _
  // Predicated region
  $region22: #{vqvae_forward.18} parent=0 // pred_check
    _
  $region23: #{vqvae_forward.18} parent=0 // pred_check_branch
    %381 = sbr.rel (0) target = $region25
  $region24: #{vqvae_forward.18} parent=0 // pred_region
    _
  $region25: #{vqvae_forward.18} parent=0 // pred_fallthru
    _
  // Predicated region
  $region26: #{vqvae_forward.18} parent=0 // pred_check
    _
  $region27: #{vqvae_forward.18} parent=0 // pred_check_branch
    %383 = sbr.rel (0) target = $region29
  $region28: #{vqvae_forward.18} parent=0 // pred_region
    _
  $region29: #{vqvae_forward.18} parent=0 // pred_fallthru
    _

// kernel: tile.28
$region0: #{tile.28}
  #allocation0 [shape = 's32[1]{0}', space=sflag, size = 0x4, scoped, tag = 'scoped memory for tile.28']
  %s0 = inlined_call_operand.vmem [shape: f32[64], index: 0, kind: input, shape index: {}]
  %s1 = inlined_call_operand.vmem [shape: f32[4,64], index: 1, kind: output, shape index: {}]
  // Predicated region
  $region2: #{tile.28} parent=0 // pred_check
    _
  $region3: #{tile.28} parent=0 // pred_check_branch
    %3 = sbr.rel (0) target = $region5
  $region4: #{tile.28} parent=0 // pred_region
    _
  $region5: #{tile.28} parent=0 // pred_fallthru
    _
  %v4 = vld [vmem:[%s0] ss:$0 sm:$0xff]
  %5 = vst [vmem:[%s1] sm:$0xf] %v4

// kernel: vqvae_forward.19
$region0: #{vqvae_forward.19}
  #allocation0 [shape = 'u32[]', space=smem, size = 0x4, offset = 0x4, fixed_abs, tag = 'smem constant byte address 0x4 - core index']
  #allocation1 [shape = 'u32[144,128]{1,0:T(1,128)}', space=vmem, size = 0x12000, scoped, tag = 'internal scratch']
  %s0 = inlined_call_operand.vmem [shape: bf16[64,256], index: 0, kind: input, shape index: {}]
  %s1 = inlined_call_operand.vmem [shape: bf16[256,256], index: 1, kind: input, shape index: {}]
  %s2 = inlined_call_operand.vmem [shape: f32[1,256], index: 2, kind: input, shape index: {}]
  %s3 = inlined_call_operand.vmem [shape: f32[64,256], index: 3, kind: output, shape index: {0}]
  %s4 = inlined_call_operand.hbm [shape: f32[1,2,256], index: 4, kind: output, shape index: {1}]
  %5 = xla_tuple %s3, %s4
  %s6 = sld [smem:[#allocation0]]
  $region30: #{vqvae_forward.19} parent=0
    _
  %s8 = ssub.s32 1, %s6
  %s9 = scalar_select 0, %s8, %s6
  $region1: #{vqvae_forward.19} parent=0
    #allocation2 [shape = 'u8[2048]{0}', space=vmem, size = 0x800, scoped, tag = 'output window, operand 1, single buffered']
    #allocation3 [shape = 's32[1]{0}', space=sflag, size = 0x4, scoped, tag = 'scoped memory for vqvae_forward.19']
    %10 = vsyncpa [#allocation3], 0
    // Predicated region
    $region2: #{vqvae_forward.19} parent=1 // pred_check
      _
    $region3: #{vqvae_forward.19} parent=1 // pred_check_branch
      %12 = sbr.rel (0) target = $region5
    $region4: #{vqvae_forward.19} parent=1 // pred_region
      _
    $region5: #{vqvae_forward.19} parent=1 // pred_fallthru
      _
    // Predicated region
    $region6: #{vqvae_forward.19} parent=1 // pred_check
      _
    $region7: #{vqvae_forward.19} parent=1 // pred_check_branch
      %14 = sbr.rel (0) target = $region9
    $region8: #{vqvae_forward.19} parent=1 // pred_region
      _
    $region9: #{vqvae_forward.19} parent=1 // pred_fallthru
      _
    // Predicated region
    $region10: #{vqvae_forward.19} parent=1 // pred_check
      _
    $region11: #{vqvae_forward.19} parent=1 // pred_check_branch
      %16 = sbr.rel (0) target = $region13
    $region12: #{vqvae_forward.19} parent=1 // pred_region
      _
    $region13: #{vqvae_forward.19} parent=1 // pred_fallthru
      _
    %v17 = vld [vmem:[%s0] sm:$0xff]
    %v18 = vld [vmem:[%s0 + $0x8] sm:$0xff]
    %v19 = vld [vmem:[%s0 + $0x10] sm:$0xff]
    %v20 = vld [vmem:[%s0 + $0x18] sm:$0xff]
    %v21 = vld [vmem:[%s0 + $0x20] sm:$0xff]
    %v22 = vld [vmem:[%s0 + $0x28] sm:$0xff]
    %v23 = vld [vmem:[%s0 + $0x30] sm:$0xff]
    %v24 = vld [vmem:[%s0 + $0x38] sm:$0xff]
    %v25 = vld [vmem:[%s1] sm:$0xff]
    %v26 = vld [vmem:[%s1 + $0x8] sm:$0xff]
    %v27 = vld [vmem:[%s1 + $0x10] sm:$0xff]
    %v28 = vld [vmem:[%s1 + $0x18] sm:$0xff]
    %v29 = vld [vmem:[%s1 + $0x20] sm:$0xff]
    %v30 = vld [vmem:[%s1 + $0x28] sm:$0xff]
    %v31 = vld [vmem:[%s1 + $0x30] sm:$0xff]
    %v32 = vld [vmem:[%s1 + $0x38] sm:$0xff]
    %v33 = vld [vmem:[%s1 + $0x40] sm:$0xff]
    %v34 = vld [vmem:[%s1 + $0x48] sm:$0xff]
    %v35 = vld [vmem:[%s1 + $0x50] sm:$0xff]
    %v36 = vld [vmem:[%s1 + $0x58] sm:$0xff]
    %v37 = vld [vmem:[%s1 + $0x60] sm:$0xff]
    %v38 = vld [vmem:[%s1 + $0x68] sm:$0xff]
    %v39 = vld [vmem:[%s1 + $0x70] sm:$0xff]
    %v40 = vld [vmem:[%s1 + $0x78] sm:$0xff]
    %v41 = vld [vmem:[%s1 + $0x80] sm:$0xff]
    %v42 = vld [vmem:[%s1 + $0x88] sm:$0xff]
    %v43 = vld [vmem:[%s1 + $0x90] sm:$0xff]
    %v44 = vld [vmem:[%s1 + $0x98] sm:$0xff]
    %v45 = vld [vmem:[%s1 + $0xa0] sm:$0xff]
    %v46 = vld [vmem:[%s1 + $0xa8] sm:$0xff]
    %v47 = vld [vmem:[%s1 + $0xb0] sm:$0xff]
    %v48 = vld [vmem:[%s1 + $0xb8] sm:$0xff]
    %v49 = vld [vmem:[%s1 + $0xc0] sm:$0xff]
    %v50 = vld [vmem:[%s1 + $0xc8] sm:$0xff]
    %v51 = vld [vmem:[%s1 + $0xd0] sm:$0xff]
    %v52 = vld [vmem:[%s1 + $0xd8] sm:$0xff]
    %v53 = vld [vmem:[%s1 + $0xe0] sm:$0xff]
    %v54 = vld [vmem:[%s1 + $0xe8] sm:$0xff]
    %v55 = vld [vmem:[%s1 + $0xf0] sm:$0xff]
    %v56 = vld [vmem:[%s1 + $0xf8] sm:$0xff]
    %v57 = vld [vmem:[%s2] sm:$0x3]
    %v59 = vlaneseq
    %v60 = vshrl.u32 %v59, 7
    %v61 = vsub.s32 0, %v60
    %v62 = vrot.slane %v57, %v61
    %v63 = vlaneseq
    %v64 = vshrl.u32 %v63, 7
    %v65 = vsub.s32 1, %v64
    %v66 = vrot.slane %v57, %v65
    %v77 = vunpack.c.l.b16 %v17
    %v78 = vunpack.c.h.b16 %v17
    %v79 = vunpack.c.l.b16 %v18
    %v80 = vunpack.c.h.b16 %v18
    %v81 = vunpack.c.l.b16 %v19
    %v82 = vunpack.c.h.b16 %v19
    %v83 = vunpack.c.l.b16 %v20
    %v84 = vunpack.c.h.b16 %v20
    %v85 = vunpack.c.l.b16 %v21
    %v86 = vunpack.c.h.b16 %v21
    %v87 = vunpack.c.l.b16 %v22
    %v88 = vunpack.c.h.b16 %v22
    %v89 = vunpack.c.l.b16 %v23
    %v90 = vunpack.c.h.b16 %v23
    %v91 = vunpack.c.l.b16 %v24
    %v92 = vunpack.c.h.b16 %v24
    %v93 = vpack.c.b16 %v79, %v77
    %v94 = vpack.c.b16 %v80, %v78
    %v95 = vpack.c.b16 %v83, %v81
    %v96 = vpack.c.b16 %v84, %v82
    %v97 = vpack.c.b16 %v87, %v85
    %v98 = vpack.c.b16 %v88, %v86
    %v99 = vpack.c.b16 %v91, %v89
    %v100 = vpack.c.b16 %v92, %v90
    %v141 = vunpack.c.l.b16 %v25
    %v142 = vunpack.c.h.b16 %v25
    %v143 = vunpack.c.l.b16 %v26
    %v144 = vunpack.c.h.b16 %v26
    %v145 = vunpack.c.l.b16 %v27
    %v146 = vunpack.c.h.b16 %v27
    %v147 = vunpack.c.l.b16 %v28
    %v148 = vunpack.c.h.b16 %v28
    %v149 = vunpack.c.l.b16 %v29
    %v150 = vunpack.c.h.b16 %v29
    %v151 = vunpack.c.l.b16 %v30
    %v152 = vunpack.c.h.b16 %v30
    %v153 = vunpack.c.l.b16 %v31
    %v154 = vunpack.c.h.b16 %v31
    %v155 = vunpack.c.l.b16 %v32
    %v156 = vunpack.c.h.b16 %v32
    %v157 = vunpack.c.l.b16 %v33
    %v158 = vunpack.c.h.b16 %v33
    %v159 = vunpack.c.l.b16 %v34
    %v160 = vunpack.c.h.b16 %v34
    %v161 = vunpack.c.l.b16 %v35
    %v162 = vunpack.c.h.b16 %v35
    %v163 = vunpack.c.l.b16 %v36
    %v164 = vunpack.c.h.b16 %v36
    %v165 = vunpack.c.l.b16 %v37
    %v166 = vunpack.c.h.b16 %v37
    %v167 = vunpack.c.l.b16 %v38
    %v168 = vunpack.c.h.b16 %v38
    %v169 = vunpack.c.l.b16 %v39
    %v170 = vunpack.c.h.b16 %v39
    %v171 = vunpack.c.l.b16 %v40
    %v172 = vunpack.c.h.b16 %v40
    %v173 = vunpack.c.l.b16 %v41
    %v174 = vunpack.c.h.b16 %v41
    %v175 = vunpack.c.l.b16 %v42
    %v176 = vunpack.c.h.b16 %v42
    %v177 = vunpack.c.l.b16 %v43
    %v178 = vunpack.c.h.b16 %v43
    %v179 = vunpack.c.l.b16 %v44
    %v180 = vunpack.c.h.b16 %v44
    %v181 = vunpack.c.l.b16 %v45
    %v182 = vunpack.c.h.b16 %v45
    %v183 = vunpack.c.l.b16 %v46
    %v184 = vunpack.c.h.b16 %v46
    %v185 = vunpack.c.l.b16 %v47
    %v186 = vunpack.c.h.b16 %v47
    %v187 = vunpack.c.l.b16 %v48
    %v188 = vunpack.c.h.b16 %v48
    %v189 = vunpack.c.l.b16 %v49
    %v190 = vunpack.c.h.b16 %v49
    %v191 = vunpack.c.l.b16 %v50
    %v192 = vunpack.c.h.b16 %v50
    %v193 = vunpack.c.l.b16 %v51
    %v194 = vunpack.c.h.b16 %v51
    %v195 = vunpack.c.l.b16 %v52
    %v196 = vunpack.c.h.b16 %v52
    %v197 = vunpack.c.l.b16 %v53
    %v198 = vunpack.c.h.b16 %v53
    %v199 = vunpack.c.l.b16 %v54
    %v200 = vunpack.c.h.b16 %v54
    %v201 = vunpack.c.l.b16 %v55
    %v202 = vunpack.c.h.b16 %v55
    %v203 = vunpack.c.l.b16 %v56
    %v204 = vunpack.c.h.b16 %v56
    %v205 = vpack.c.b16 %v143, %v141
    %v206 = vpack.c.b16 %v144, %v142
    %v207 = vpack.c.b16 %v147, %v145
    %v208 = vpack.c.b16 %v148, %v146
    %v209 = vpack.c.b16 %v151, %v149
    %v210 = vpack.c.b16 %v152, %v150
    %v211 = vpack.c.b16 %v155, %v153
    %v212 = vpack.c.b16 %v156, %v154
    %v213 = vpack.c.b16 %v159, %v157
    %v214 = vpack.c.b16 %v160, %v158
    %v215 = vpack.c.b16 %v163, %v161
    %v216 = vpack.c.b16 %v164, %v162
    %v217 = vpack.c.b16 %v167, %v165
    %v218 = vpack.c.b16 %v168, %v166
    %v219 = vpack.c.b16 %v171, %v169
    %v220 = vpack.c.b16 %v172, %v170
    %v221 = vpack.c.b16 %v175, %v173
    %v222 = vpack.c.b16 %v176, %v174
    %v223 = vpack.c.b16 %v179, %v177
    %v224 = vpack.c.b16 %v180, %v178
    %v225 = vpack.c.b16 %v183, %v181
    %v226 = vpack.c.b16 %v184, %v182
    %v227 = vpack.c.b16 %v187, %v185
    %v228 = vpack.c.b16 %v188, %v186
    %v229 = vpack.c.b16 %v191, %v189
    %v230 = vpack.c.b16 %v192, %v190
    %v231 = vpack.c.b16 %v195, %v193
    %v232 = vpack.c.b16 %v196, %v194
    %v233 = vpack.c.b16 %v199, %v197
    %v234 = vpack.c.b16 %v200, %v198
    %v235 = vpack.c.b16 %v203, %v201
    %v236 = vpack.c.b16 %v204, %v202
    %269 = vmatprep.subr.bf16.mxu0 %v206
    %270 = vmatpush1.bf16.msra.mxu0 %v205
    %271 = vmatprep.subr.bf16.mxu0 %v208
    %272 = vmatpush1.bf16.msra.mxu0 %v207
    %273 = vmatprep.subr.bf16.mxu0 %v210
    %274 = vmatpush1.bf16.msra.mxu0 %v209
    %275 = vmatprep.subr.bf16.mxu0 %v212
    %276 = vmatpush1.bf16.msra.mxu0 %v211
    %277 = vmatprep.subr.bf16.mxu0 %v214
    %278 = vmatpush1.bf16.msra.mxu0 %v213
    %279 = vmatprep.subr.bf16.mxu0 %v216
    %280 = vmatpush1.bf16.msra.mxu0 %v215
    %281 = vmatprep.subr.bf16.mxu0 %v218
    %282 = vmatpush1.bf16.msra.mxu0 %v217
    %283 = vmatprep.subr.bf16.mxu0 %v220
    %284 = vmatpush1.bf16.msra.mxu0 %v219
    %285 = vmatprep.subr.bf16.mxu0 %v222
    %286 = vmatpush1.bf16.msra.mxu0 %v221
    %287 = vmatprep.subr.bf16.mxu0 %v224
    %288 = vmatpush1.bf16.msra.mxu0 %v223
    %289 = vmatprep.subr.bf16.mxu0 %v226
    %290 = vmatpush1.bf16.msra.mxu0 %v225
    %291 = vmatprep.subr.bf16.mxu0 %v228
    %292 = vmatpush1.bf16.msra.mxu0 %v227
    %293 = vmatprep.subr.bf16.mxu0 %v230
    %294 = vmatpush1.bf16.msra.mxu0 %v229
    %295 = vmatprep.subr.bf16.mxu0 %v232
    %296 = vmatpush1.bf16.msra.mxu0 %v231
    %297 = vmatprep.subr.bf16.mxu0 %v234
    %298 = vmatpush1.bf16.msra.mxu0 %v233
    %299 = vmatprep.subr.bf16.mxu0 %v236
    %300 = vmatpush1.bf16.msra.mxu0 %v235
    %301 = vmatprep.mubr.bf16.mxu0 %v94
    %302 = vmatmul.mubr.bf16.gmra.mrb[0].mxu0 %v93
    %v303 = vpop.f32.mrb[0].mxu0
    %v304 = vadd.f32 %v62, %v303
    %v305 = vpop.f32.mrb[0].mxu0
    %v306 = vadd.f32 %v66, %v305
    %v307 = vpop.f32.mrb[0].mxu0
    %v308 = vadd.f32 %v62, %v307
    %v309 = vpop.f32.mrb[0].mxu0
    %v310 = vadd.f32 %v66, %v309
    %311 = vmatprep.mubr.bf16.mxu0 %v96
    %312 = vmatmul.mubr.bf16.gmra.mrb[0].mxu0 %v95
    %v313 = vpop.f32.mrb[0].mxu0
    %v314 = vadd.f32 %v62, %v313
    %v315 = vpop.f32.mrb[0].mxu0
    %v316 = vadd.f32 %v66, %v315
    %v317 = vpop.f32.mrb[0].mxu0
    %v318 = vadd.f32 %v62, %v317
    %v319 = vpop.f32.mrb[0].mxu0
    %v320 = vadd.f32 %v66, %v319
    %321 = vmatprep.mubr.bf16.mxu0 %v98
    %322 = vmatmul.mubr.bf16.gmra.mrb[0].mxu0 %v97
    %v323 = vpop.f32.mrb[0].mxu0
    %v324 = vadd.f32 %v62, %v323
    %v325 = vpop.f32.mrb[0].mxu0
    %v326 = vadd.f32 %v66, %v325
    %v327 = vpop.f32.mrb[0].mxu0
    %v328 = vadd.f32 %v62, %v327
    %v329 = vpop.f32.mrb[0].mxu0
    %v330 = vadd.f32 %v66, %v329
    %331 = vmatprep.mubr.bf16.mxu0 %v100
    %332 = vmatmul.mubr.bf16.gmra.mrb[0].mxu0 %v99
    %v333 = vpop.f32.mrb[0].mxu0
    %v334 = vadd.f32 %v62, %v333
    %v335 = vpop.f32.mrb[0].mxu0
    %v336 = vadd.f32 %v66, %v335
    %v337 = vpop.f32.mrb[0].mxu0
    %v338 = vadd.f32 %v62, %v337
    %v339 = vpop.f32.mrb[0].mxu0
    %v340 = vadd.f32 %v66, %v339
    %341 = vdwg.mxu0
    %342 = vst [vmem:[%s3] sm:$0xff] %v304
    %343 = vst [vmem:[%s3 + $0x8] sm:$0xff] %v306
    %344 = vst [vmem:[%s3 + $0x10] sm:$0xff] %v308
    %345 = vst [vmem:[%s3 + $0x18] sm:$0xff] %v310
    %346 = vst [vmem:[%s3 + $0x20] sm:$0xff] %v314
    %347 = vst [vmem:[%s3 + $0x28] sm:$0xff] %v316
    %348 = vst [vmem:[%s3 + $0x30] sm:$0xff] %v318
    %349 = vst [vmem:[%s3 + $0x38] sm:$0xff] %v320
    %350 = vst [vmem:[%s3 + $0x40] sm:$0xff] %v324
    %351 = vst [vmem:[%s3 + $0x48] sm:$0xff] %v326
    %352 = vst [vmem:[%s3 + $0x50] sm:$0xff] %v328
    %353 = vst [vmem:[%s3 + $0x58] sm:$0xff] %v330
    %354 = vst [vmem:[%s3 + $0x60] sm:$0xff] %v334
    %355 = vst [vmem:[%s3 + $0x68] sm:$0xff] %v336
    %356 = vst [vmem:[%s3 + $0x70] sm:$0xff] %v338
    %357 = vst [vmem:[%s3 + $0x78] sm:$0xff] %v340
    %s358 = smul.u32 0, 64
    %v359 = vlaneseq
    %v360 = vshrl.u32 %v359, 7
    %v361 = vadd.s32 %v360, 8
    %v362 = vadd.s32 %v360, 16
    %v363 = vadd.s32 %v360, 24
    %v364 = vadd.s32 %v360, 32
    %v365 = vadd.s32 %v360, 40
    %v366 = vadd.s32 %v360, 48
    %v367 = vadd.s32 %v360, 56
    %v368 = vstv %s358
    %v369 = vadd.s32 %v368, %v360
    %v370 = vadd.s32 %v368, %v361
    %v371 = vadd.s32 %v368, %v362
    %v372 = vadd.s32 %v368, %v363
    %v373 = vadd.s32 %v368, %v364
    %v374 = vadd.s32 %v368, %v365
    %v375 = vadd.s32 %v368, %v366
    %v376 = vadd.s32 %v368, %v367
    %vm377 = vcmp.lt.s32.totalorder %v369, 50
    %vm378 = vcmp.lt.s32.totalorder %v370, 50
    %vm379 = vcmp.lt.s32.totalorder %v371, 50
    %vm380 = vcmp.lt.s32.totalorder %v372, 50
    %vm381 = vcmp.lt.s32.totalorder %v373, 50
    %vm382 = vcmp.lt.s32.totalorder %v374, 50
    %vm383 = vcmp.lt.s32.totalorder %v375, 50
    %vm384 = vcmp.lt.s32.totalorder %v376, 50
    %v385 = vsel %vm377, 1, 0
    %v386 = vsel %vm378, 1, 0
    %v387 = vsel %vm379, 1, 0
    %v388 = vsel %vm380, 1, 0
    %v389 = vsel %vm381, 1, 0
    %v390 = vsel %vm382, 1, 0
    %v391 = vsel %vm383, 1, 0
    %v392 = vsel %vm384, 1, 0
    %v393 = vcvt.s32.f32 %v385
    %v394 = vcvt.s32.f32 %v386
    %v395 = vcvt.s32.f32 %v387
    %v396 = vcvt.s32.f32 %v388
    %v397 = vcvt.s32.f32 %v389
    %v398 = vcvt.s32.f32 %v390
    %v399 = vcvt.s32.f32 %v391
    %v400 = vcvt.s32.f32 %v392
    %v401 = vmul.f32 %v304, %v393
    %v402 = vmul.f32 %v306, %v393
    %v403 = vmul.f32 %v308, %v394
    %v404 = vmul.f32 %v310, %v394
    %v405 = vmul.f32 %v314, %v395
    %v406 = vmul.f32 %v316, %v395
    %v407 = vmul.f32 %v318, %v396
    %v408 = vmul.f32 %v320, %v396
    %v409 = vmul.f32 %v324, %v397
    %v410 = vmul.f32 %v326, %v397
    %v411 = vmul.f32 %v328, %v398
    %v412 = vmul.f32 %v330, %v398
    %v413 = vmul.f32 %v334, %v399
    %v414 = vmul.f32 %v336, %v399
    %v415 = vmul.f32 %v338, %v400
    %v416 = vmul.f32 %v340, %v400
    %v417 = vadd.f32 %v401, %v403
    %v418 = vadd.f32 %v417, %v405
    %v419 = vadd.f32 %v418, %v407
    %v420 = vadd.f32 %v419, %v409
    %v421 = vadd.f32 %v420, %v411
    %v422 = vadd.f32 %v421, %v413
    %v423 = vadd.f32 %v422, %v415
    %v424 = vrot.slane %v423, 4
    %v425 = vadd.f32 %v423, %v424
    %v426 = vrot.slane %v425, 2
    %v427 = vadd.f32 %v425, %v426
    %v428 = vrot.slane %v427, 1
    %v429 = vadd.f32 %v427, %v428
    %v430 = vadd.f32 %v402, %v404
    %v431 = vadd.f32 %v430, %v406
    %v432 = vadd.f32 %v431, %v408
    %v433 = vadd.f32 %v432, %v410
    %v434 = vadd.f32 %v433, %v412
    %v435 = vadd.f32 %v434, %v414
    %v436 = vadd.f32 %v435, %v416
    %v437 = vrot.slane %v436, 4
    %v438 = vadd.f32 %v436, %v437
    %v439 = vrot.slane %v438, 2
    %v440 = vadd.f32 %v438, %v439
    %v441 = vrot.slane %v440, 1
    %v442 = vadd.f32 %v440, %v441
    %v443 = vmul.f32 %v401, %v401
    %v444 = vmul.f32 %v402, %v402
    %v445 = vmul.f32 %v403, %v403
    %v446 = vmul.f32 %v404, %v404
    %v447 = vmul.f32 %v405, %v405
    %v448 = vmul.f32 %v406, %v406
    %v449 = vmul.f32 %v407, %v407
    %v450 = vmul.f32 %v408, %v408
    %v451 = vmul.f32 %v409, %v409
    %v452 = vmul.f32 %v410, %v410
    %v453 = vmul.f32 %v411, %v411
    %v454 = vmul.f32 %v412, %v412
    %v455 = vmul.f32 %v413, %v413
    %v456 = vmul.f32 %v414, %v414
    %v457 = vmul.f32 %v415, %v415
    %v458 = vmul.f32 %v416, %v416
    %v459 = vadd.f32 %v443, %v445
    %v460 = vadd.f32 %v459, %v447
    %v461 = vadd.f32 %v460, %v449
    %v462 = vadd.f32 %v461, %v451
    %v463 = vadd.f32 %v462, %v453
    %v464 = vadd.f32 %v463, %v455
    %v465 = vadd.f32 %v464, %v457
    %v466 = vrot.slane %v465, 4
    %v467 = vadd.f32 %v465, %v466
    %v468 = vrot.slane %v467, 2
    %v469 = vadd.f32 %v467, %v468
    %v470 = vrot.slane %v469, 1
    %v471 = vadd.f32 %v469, %v470
    %v472 = vadd.f32 %v444, %v446
    %v473 = vadd.f32 %v472, %v448
    %v474 = vadd.f32 %v473, %v450
    %v475 = vadd.f32 %v474, %v452
    %v476 = vadd.f32 %v475, %v454
    %v477 = vadd.f32 %v476, %v456
    %v478 = vadd.f32 %v477, %v458
    %v479 = vrot.slane %v478, 4
    %v480 = vadd.f32 %v478, %v479
    %v481 = vrot.slane %v480, 2
    %v482 = vadd.f32 %v480, %v481
    %v483 = vrot.slane %v482, 1
    %v484 = vadd.f32 %v482, %v483
    %vm485 = vcmask 1040384
    %v486 = vsel %vm485, %v429, %v471
    %v487 = vsel %vm485, %v442, %v484
    %v490 = vcombine.low %v486, %v487
    %v492 = vunpack.c.l.s4 1983009808
    %v493 = vunpack.c.0.s8 %v492
    %v494 = vlaneseq
    %v495 = vshrl.u32 %v494, 7
    %v496 = vsub.s32 %v493, %v495
    %v497 = vrot.slane %v490, %v496
    %499 = vst [vmem:[#allocation2] sm:$0xf] %v497
    // Predicated region
    $region14: #{vqvae_forward.19} parent=1 // pred_check
      _
    $region15: #{vqvae_forward.19} parent=1 // pred_check_branch
      %501 = sbr.rel (0) target = $region17
    $region16: #{vqvae_forward.19} parent=1 // pred_region
      _
    $region17: #{vqvae_forward.19} parent=1 // pred_fallthru
      _
    // Predicated region
    $region18: #{vqvae_forward.19} parent=1 // pred_check
      _
    $region19: #{vqvae_forward.19} parent=1 // pred_check_branch
      %503 = sbr.rel (0) target = $region21
    $region20: #{vqvae_forward.19} parent=1 // pred_region
      %s505 = ssub.s32 64, 64
      %506 = vsyncadd [#allocation3], %s505
      %s508 = sshll.u32 [#allocation2], 4
      %s509 = int_to_ptr.vmem [resolvable:$true] %s508
      %511 = dma.vmem_to_hbm [thread:$0]  %s509, 64, %s4, [#allocation3]
    $region21: #{vqvae_forward.19} parent=1 // pred_fallthru
      _
    // Predicated region
    $region22: #{vqvae_forward.19} parent=1 // pred_check
      _
    $region23: #{vqvae_forward.19} parent=1 // pred_check_branch
      %513 = sbr.rel (0) target = $region25
    $region24: #{vqvae_forward.19} parent=1 // pred_region
      _
    $region25: #{vqvae_forward.19} parent=1 // pred_fallthru
      _
    // Predicated region
    $region26: #{vqvae_forward.19} parent=1 // pred_check
      _
    $region27: #{vqvae_forward.19} parent=1 // pred_check_branch
      %515 = sbr.rel (0) target = $region29
    $region28: #{vqvae_forward.19} parent=1 // pred_region
      %516 = dma.done [#allocation3], 64
    $region29: #{vqvae_forward.19} parent=1 // pred_fallthru
      _
    %517 = vsyncpa [#allocation3], 1

// kernel: vqvae_forward.20
$region0: #{vqvae_forward.20}
  #allocation0 [shape = 'u32[]', space=smem, size = 0x4, offset = 0x4, fixed_abs, tag = 'smem constant byte address 0x4 - core index']
  #allocation1 [shape = 'u32[144,128]{1,0:T(1,128)}', space=vmem, size = 0x12000, scoped, tag = 'internal scratch']
  %s0 = inlined_call_operand.vmem [shape: f32[64,256], index: 0, kind: input, shape index: {}]
  %s1 = inlined_call_operand.vmem [shape: f32[1,256], index: 1, kind: input, shape index: {}]
  %s2 = inlined_call_operand.vmem [shape: f32[1,256], index: 2, kind: input, shape index: {}]
  %s3 = inlined_call_operand.vmem [shape: bf16[64,256], index: 3, kind: output, shape index: {}]
  %s4 = sld [smem:[#allocation0]]
  $region22: #{vqvae_forward.20} parent=0
    _
  %s6 = ssub.s32 1, %s4
  %s7 = scalar_select 0, %s6, %s4
  // Predicated region
  $region2: #{vqvae_forward.20} parent=0 // pred_check
    _
  $region3: #{vqvae_forward.20} parent=0 // pred_check_branch
    %9 = sbr.rel (0) target = $region5
  $region4: #{vqvae_forward.20} parent=0 // pred_region
    _
  $region5: #{vqvae_forward.20} parent=0 // pred_fallthru
    _
  // Predicated region
  $region6: #{vqvae_forward.20} parent=0 // pred_check
    _
  $region7: #{vqvae_forward.20} parent=0 // pred_check_branch
    %11 = sbr.rel (0) target = $region9
  $region8: #{vqvae_forward.20} parent=0 // pred_region
    _
  $region9: #{vqvae_forward.20} parent=0 // pred_fallthru
    _
  // Predicated region
  $region10: #{vqvae_forward.20} parent=0 // pred_check
    _
  $region11: #{vqvae_forward.20} parent=0 // pred_check_branch
    %13 = sbr.rel (0) target = $region13
  $region12: #{vqvae_forward.20} parent=0 // pred_region
    _
  $region13: #{vqvae_forward.20} parent=0 // pred_fallthru
    _
  %v14 = vld [vmem:[%s0] sm:$0xff]
  %v15 = vld [vmem:[%s0 + $0x8] sm:$0xff]
  %v16 = vld [vmem:[%s0 + $0x10] sm:$0xff]
  %v17 = vld [vmem:[%s0 + $0x18] sm:$0xff]
  %v18 = vld [vmem:[%s0 + $0x20] sm:$0xff]
  %v19 = vld [vmem:[%s0 + $0x28] sm:$0xff]
  %v20 = vld [vmem:[%s0 + $0x30] sm:$0xff]
  %v21 = vld [vmem:[%s0 + $0x38] sm:$0xff]
  %v22 = vld [vmem:[%s0 + $0x40] sm:$0xff]
  %v23 = vld [vmem:[%s0 + $0x48] sm:$0xff]
  %v24 = vld [vmem:[%s0 + $0x50] sm:$0xff]
  %v25 = vld [vmem:[%s0 + $0x58] sm:$0xff]
  %v26 = vld [vmem:[%s0 + $0x60] sm:$0xff]
  %v27 = vld [vmem:[%s0 + $0x68] sm:$0xff]
  %v28 = vld [vmem:[%s0 + $0x70] sm:$0xff]
  %v29 = vld [vmem:[%s0 + $0x78] sm:$0xff]
  %v30 = vld [vmem:[%s1] sm:$0x3]
  %v32 = vlaneseq
  %v33 = vshrl.u32 %v32, 7
  %v34 = vsub.s32 0, %v33
  %v35 = vrot.slane %v30, %v34
  %v36 = vlaneseq
  %v37 = vshrl.u32 %v36, 7
  %v38 = vsub.s32 1, %v37
  %v39 = vrot.slane %v30, %v38
  %v42 = vmul.f32 %v14, %v35
  %v43 = vmul.f32 %v15, %v39
  %v44 = vmul.f32 %v16, %v35
  %v45 = vmul.f32 %v17, %v39
  %v46 = vmul.f32 %v18, %v35
  %v47 = vmul.f32 %v19, %v39
  %v48 = vmul.f32 %v20, %v35
  %v49 = vmul.f32 %v21, %v39
  %v50 = vmul.f32 %v22, %v35
  %v51 = vmul.f32 %v23, %v39
  %v52 = vmul.f32 %v24, %v35
  %v53 = vmul.f32 %v25, %v39
  %v54 = vmul.f32 %v26, %v35
  %v55 = vmul.f32 %v27, %v39
  %v56 = vmul.f32 %v28, %v35
  %v57 = vmul.f32 %v29, %v39
  %v58 = vld [vmem:[%s2] sm:$0x3]
  %v60 = vlaneseq
  %v61 = vshrl.u32 %v60, 7
  %v62 = vsub.s32 0, %v61
  %v63 = vrot.slane %v58, %v62
  %v64 = vlaneseq
  %v65 = vshrl.u32 %v64, 7
  %v66 = vsub.s32 1, %v65
  %v67 = vrot.slane %v58, %v66
  %v70 = vadd.f32 %v42, %v63
  %v71 = vadd.f32 %v43, %v67
  %v72 = vadd.f32 %v44, %v63
  %v73 = vadd.f32 %v45, %v67
  %v74 = vadd.f32 %v46, %v63
  %v75 = vadd.f32 %v47, %v67
  %v76 = vadd.f32 %v48, %v63
  %v77 = vadd.f32 %v49, %v67
  %v78 = vadd.f32 %v50, %v63
  %v79 = vadd.f32 %v51, %v67
  %v80 = vadd.f32 %v52, %v63
  %v81 = vadd.f32 %v53, %v67
  %v82 = vadd.f32 %v54, %v63
  %v83 = vadd.f32 %v55, %v67
  %v84 = vadd.f32 %v56, %v63
  %v85 = vadd.f32 %v57, %v67
  %vm86 = vcmp.ge.f32.partialorder %v70, 0.0
  %vm87 = vcmp.ge.f32.partialorder %v71, 0.0
  %vm88 = vcmp.ge.f32.partialorder %v72, 0.0
  %vm89 = vcmp.ge.f32.partialorder %v73, 0.0
  %vm90 = vcmp.ge.f32.partialorder %v74, 0.0
  %vm91 = vcmp.ge.f32.partialorder %v75, 0.0
  %vm92 = vcmp.ge.f32.partialorder %v76, 0.0
  %vm93 = vcmp.ge.f32.partialorder %v77, 0.0
  %vm94 = vcmp.ge.f32.partialorder %v78, 0.0
  %vm95 = vcmp.ge.f32.partialorder %v79, 0.0
  %vm96 = vcmp.ge.f32.partialorder %v80, 0.0
  %vm97 = vcmp.ge.f32.partialorder %v81, 0.0
  %vm98 = vcmp.ge.f32.partialorder %v82, 0.0
  %vm99 = vcmp.ge.f32.partialorder %v83, 0.0
  %vm100 = vcmp.ge.f32.partialorder %v84, 0.0
  %vm101 = vcmp.ge.f32.partialorder %v85, 0.0
  %v102 = vmul.f32 %v70, 0.01
  %v103 = vmul.f32 %v71, 0.01
  %v104 = vmul.f32 %v72, 0.01
  %v105 = vmul.f32 %v73, 0.01
  %v106 = vmul.f32 %v74, 0.01
  %v107 = vmul.f32 %v75, 0.01
  %v108 = vmul.f32 %v76, 0.01
  %v109 = vmul.f32 %v77, 0.01
  %v110 = vmul.f32 %v78, 0.01
  %v111 = vmul.f32 %v79, 0.01
  %v112 = vmul.f32 %v80, 0.01
  %v113 = vmul.f32 %v81, 0.01
  %v114 = vmul.f32 %v82, 0.01
  %v115 = vmul.f32 %v83, 0.01
  %v116 = vmul.f32 %v84, 0.01
  %v117 = vmul.f32 %v85, 0.01
  %v118 = vsel %vm86, %v70, %v102
  %v119 = vsel %vm87, %v71, %v103
  %v120 = vsel %vm88, %v72, %v104
  %v121 = vsel %vm89, %v73, %v105
  %v122 = vsel %vm90, %v74, %v106
  %v123 = vsel %vm91, %v75, %v107
  %v124 = vsel %vm92, %v76, %v108
  %v125 = vsel %vm93, %v77, %v109
  %v126 = vsel %vm94, %v78, %v110
  %v127 = vsel %vm95, %v79, %v111
  %v128 = vsel %vm96, %v80, %v112
  %v129 = vsel %vm97, %v81, %v113
  %v130 = vsel %vm98, %v82, %v114
  %v131 = vsel %vm99, %v83, %v115
  %v132 = vsel %vm100, %v84, %v116
  %v133 = vsel %vm101, %v85, %v117
  %v134 = vpack.c.bf16 %v120, %v118
  %v135 = vpack.c.bf16 %v121, %v119
  %v136 = vpack.c.bf16 %v124, %v122
  %v137 = vpack.c.bf16 %v125, %v123
  %v138 = vpack.c.bf16 %v128, %v126
  %v139 = vpack.c.bf16 %v129, %v127
  %v140 = vpack.c.bf16 %v132, %v130
  %v141 = vpack.c.bf16 %v133, %v131
  %v150 = vunpack.c.l.b16 %v134
  %v151 = vunpack.c.l.b16 %v135
  %v152 = vunpack.c.h.b16 %v134
  %v153 = vunpack.c.h.b16 %v135
  %v154 = vunpack.c.l.b16 %v136
  %v155 = vunpack.c.l.b16 %v137
  %v156 = vunpack.c.h.b16 %v136
  %v157 = vunpack.c.h.b16 %v137
  %v158 = vunpack.c.l.b16 %v138
  %v159 = vunpack.c.l.b16 %v139
  %v160 = vunpack.c.h.b16 %v138
  %v161 = vunpack.c.h.b16 %v139
  %v162 = vunpack.c.l.b16 %v140
  %v163 = vunpack.c.l.b16 %v141
  %v164 = vunpack.c.h.b16 %v140
  %v165 = vunpack.c.h.b16 %v141
  %v166 = vpack.c.b16 %v151, %v150
  %v167 = vpack.c.b16 %v153, %v152
  %v168 = vpack.c.b16 %v155, %v154
  %v169 = vpack.c.b16 %v157, %v156
  %v170 = vpack.c.b16 %v159, %v158
  %v171 = vpack.c.b16 %v161, %v160
  %v172 = vpack.c.b16 %v163, %v162
  %v173 = vpack.c.b16 %v165, %v164
  %182 = vst [vmem:[%s3] sm:$0xff] %v166
  %183 = vst [vmem:[%s3 + $0x8] sm:$0xff] %v167
  %184 = vst [vmem:[%s3 + $0x10] sm:$0xff] %v168
  %185 = vst [vmem:[%s3 + $0x18] sm:$0xff] %v169
  %186 = vst [vmem:[%s3 + $0x20] sm:$0xff] %v170
  %187 = vst [vmem:[%s3 + $0x28] sm:$0xff] %v171
  %188 = vst [vmem:[%s3 + $0x30] sm:$0xff] %v172
  %189 = vst [vmem:[%s3 + $0x38] sm:$0xff] %v173
  // Predicated region
  $region14: #{vqvae_forward.20} parent=0 // pred_check
    _
  $region15: #{vqvae_forward.20} parent=0 // pred_check_branch
    %191 = sbr.rel (0) target = $region17
  $region16: #{vqvae_forward.20} parent=0 // pred_region
    _
  $region17: #{vqvae_forward.20} parent=0 // pred_fallthru
    _
  // Predicated region
  $region18: #{vqvae_forward.20} parent=0 // pred_check
    _
  $region19: #{vqvae_forward.20} parent=0 // pred_check_branch
    %193 = sbr.rel (0) target = $region21
  $region20: #{vqvae_forward.20} parent=0 // pred_region
    _
  $region21: #{vqvae_forward.20} parent=0 // pred_fallthru
    _

// kernel: tile.38
$region0: #{tile.38}
  #allocation0 [shape = 's32[1]{0}', space=sflag, size = 0x4, scoped, tag = 'scoped memory for tile.38']
  %s0 = inlined_call_operand.vmem [shape: f32[32], index: 0, kind: input, shape index: {}]
  %s1 = inlined_call_operand.vmem [shape: f32[4,32], index: 1, kind: output, shape index: {}]
  // Predicated region
  $region2: #{tile.38} parent=0 // pred_check
    _
  $region3: #{tile.38} parent=0 // pred_check_branch
    %3 = sbr.rel (0) target = $region5
  $region4: #{tile.38} parent=0 // pred_region
    _
  $region5: #{tile.38} parent=0 // pred_fallthru
    _
  %v4 = vld [vmem:[%s0] ss:$0 sm:$0xff]
  %5 = vst [vmem:[%s1] sm:$0xf] %v4

// kernel: vqvae_forward.22
$region0: #{vqvae_forward.22}
  #allocation0 [shape = 'u32[]', space=smem, size = 0x4, offset = 0x4, fixed_abs, tag = 'smem constant byte address 0x4 - core index']
  #allocation1 [shape = 'u32[144,128]{1,0:T(1,128)}', space=vmem, size = 0x12000, scoped, tag = 'internal scratch']
  %s0 = inlined_call_operand.vmem [shape: f32[176,128], index: 0, kind: input, shape index: {}]
  %s1 = inlined_call_operand.vmem [shape: f32[1,128], index: 1, kind: input, shape index: {}]
  %s2 = inlined_call_operand.vmem [shape: f32[1,128], index: 2, kind: input, shape index: {}]
  %s3 = inlined_call_operand.vmem [shape: bf16[176,128], index: 3, kind: output, shape index: {}]
  %s4 = sld [smem:[#allocation0]]
  $region22: #{vqvae_forward.22} parent=0
    _
  %s6 = ssub.s32 1, %s4
  %s7 = scalar_select 0, %s6, %s4
  // Predicated region
  $region2: #{vqvae_forward.22} parent=0 // pred_check
    _
  $region3: #{vqvae_forward.22} parent=0 // pred_check_branch
    %9 = sbr.rel (0) target = $region5
  $region4: #{vqvae_forward.22} parent=0 // pred_region
    _
  $region5: #{vqvae_forward.22} parent=0 // pred_fallthru
    _
  // Predicated region
  $region6: #{vqvae_forward.22} parent=0 // pred_check
    _
  $region7: #{vqvae_forward.22} parent=0 // pred_check_branch
    %11 = sbr.rel (0) target = $region9
  $region8: #{vqvae_forward.22} parent=0 // pred_region
    _
  $region9: #{vqvae_forward.22} parent=0 // pred_fallthru
    _
  // Predicated region
  $region10: #{vqvae_forward.22} parent=0 // pred_check
    _
  $region11: #{vqvae_forward.22} parent=0 // pred_check_branch
    %13 = sbr.rel (0) target = $region13
  $region12: #{vqvae_forward.22} parent=0 // pred_region
    _
  $region13: #{vqvae_forward.22} parent=0 // pred_fallthru
    _
  %v14 = vld [vmem:[%s0] sm:$0xff]
  %v15 = vld [vmem:[%s0 + $0x8] sm:$0xff]
  %v16 = vld [vmem:[%s0 + $0x10] sm:$0xff]
  %v17 = vld [vmem:[%s0 + $0x18] sm:$0xff]
  %v18 = vld [vmem:[%s0 + $0x20] sm:$0xff]
  %v19 = vld [vmem:[%s0 + $0x28] sm:$0xff]
  %v20 = vld [vmem:[%s0 + $0x30] sm:$0xff]
  %v21 = vld [vmem:[%s0 + $0x38] sm:$0xff]
  %v22 = vld [vmem:[%s0 + $0x40] sm:$0xff]
  %v23 = vld [vmem:[%s0 + $0x48] sm:$0xff]
  %v24 = vld [vmem:[%s0 + $0x50] sm:$0xff]
  %v25 = vld [vmem:[%s0 + $0x58] sm:$0xff]
  %v26 = vld [vmem:[%s0 + $0x60] sm:$0xff]
  %v27 = vld [vmem:[%s0 + $0x68] sm:$0xff]
  %v28 = vld [vmem:[%s0 + $0x70] sm:$0xff]
  %v29 = vld [vmem:[%s0 + $0x78] sm:$0xff]
  %v30 = vld [vmem:[%s0 + $0x80] sm:$0xff]
  %v31 = vld [vmem:[%s0 + $0x88] sm:$0xff]
  %v32 = vld [vmem:[%s0 + $0x90] sm:$0xff]
  %v33 = vld [vmem:[%s0 + $0x98] sm:$0xff]
  %v34 = vld [vmem:[%s0 + $0xa0] sm:$0xff]
  %v35 = vld [vmem:[%s0 + $0xa8] sm:$0xff]
  %v36 = vld [vmem:[%s1] sm:$0x1]
  %v38 = vlaneseq
  %v39 = vshrl.u32 %v38, 7
  %v40 = vsub.s32 0, %v39
  %v41 = vrot.slane %v36, %v40
  %v43 = vmul.f32 %v14, %v41
  %v44 = vmul.f32 %v15, %v41
  %v45 = vmul.f32 %v16, %v41
  %v46 = vmul.f32 %v17, %v41
  %v47 = vmul.f32 %v18, %v41
  %v48 = vmul.f32 %v19, %v41
  %v49 = vmul.f32 %v20, %v41
  %v50 = vmul.f32 %v21, %v41
  %v51 = vmul.f32 %v22, %v41
  %v52 = vmul.f32 %v23, %v41
  %v53 = vmul.f32 %v24, %v41
  %v54 = vmul.f32 %v25, %v41
  %v55 = vmul.f32 %v26, %v41
  %v56 = vmul.f32 %v27, %v41
  %v57 = vmul.f32 %v28, %v41
  %v58 = vmul.f32 %v29, %v41
  %v59 = vmul.f32 %v30, %v41
  %v60 = vmul.f32 %v31, %v41
  %v61 = vmul.f32 %v32, %v41
  %v62 = vmul.f32 %v33, %v41
  %v63 = vmul.f32 %v34, %v41
  %v64 = vmul.f32 %v35, %v41
  %v65 = vld [vmem:[%s2] sm:$0x1]
  %v67 = vlaneseq
  %v68 = vshrl.u32 %v67, 7
  %v69 = vsub.s32 0, %v68
  %v70 = vrot.slane %v65, %v69
  %v72 = vadd.f32 %v43, %v70
  %v73 = vadd.f32 %v44, %v70
  %v74 = vadd.f32 %v45, %v70
  %v75 = vadd.f32 %v46, %v70
  %v76 = vadd.f32 %v47, %v70
  %v77 = vadd.f32 %v48, %v70
  %v78 = vadd.f32 %v49, %v70
  %v79 = vadd.f32 %v50, %v70
  %v80 = vadd.f32 %v51, %v70
  %v81 = vadd.f32 %v52, %v70
  %v82 = vadd.f32 %v53, %v70
  %v83 = vadd.f32 %v54, %v70
  %v84 = vadd.f32 %v55, %v70
  %v85 = vadd.f32 %v56, %v70
  %v86 = vadd.f32 %v57, %v70
  %v87 = vadd.f32 %v58, %v70
  %v88 = vadd.f32 %v59, %v70
  %v89 = vadd.f32 %v60, %v70
  %v90 = vadd.f32 %v61, %v70
  %v91 = vadd.f32 %v62, %v70
  %v92 = vadd.f32 %v63, %v70
  %v93 = vadd.f32 %v64, %v70
  %vm94 = vcmp.ge.f32.partialorder %v72, 0.0
  %vm95 = vcmp.ge.f32.partialorder %v73, 0.0
  %vm96 = vcmp.ge.f32.partialorder %v74, 0.0
  %vm97 = vcmp.ge.f32.partialorder %v75, 0.0
  %vm98 = vcmp.ge.f32.partialorder %v76, 0.0
  %vm99 = vcmp.ge.f32.partialorder %v77, 0.0
  %vm100 = vcmp.ge.f32.partialorder %v78, 0.0
  %vm101 = vcmp.ge.f32.partialorder %v79, 0.0
  %vm102 = vcmp.ge.f32.partialorder %v80, 0.0
  %vm103 = vcmp.ge.f32.partialorder %v81, 0.0
  %vm104 = vcmp.ge.f32.partialorder %v82, 0.0
  %vm105 = vcmp.ge.f32.partialorder %v83, 0.0
  %vm106 = vcmp.ge.f32.partialorder %v84, 0.0
  %vm107 = vcmp.ge.f32.partialorder %v85, 0.0
  %vm108 = vcmp.ge.f32.partialorder %v86, 0.0
  %vm109 = vcmp.ge.f32.partialorder %v87, 0.0
  %vm110 = vcmp.ge.f32.partialorder %v88, 0.0
  %vm111 = vcmp.ge.f32.partialorder %v89, 0.0
  %vm112 = vcmp.ge.f32.partialorder %v90, 0.0
  %vm113 = vcmp.ge.f32.partialorder %v91, 0.0
  %vm114 = vcmp.ge.f32.partialorder %v92, 0.0
  %vm115 = vcmp.ge.f32.partialorder %v93, 0.0
  %v116 = vmul.f32 %v72, 0.01
  %v117 = vmul.f32 %v73, 0.01
  %v118 = vmul.f32 %v74, 0.01
  %v119 = vmul.f32 %v75, 0.01
  %v120 = vmul.f32 %v76, 0.01
  %v121 = vmul.f32 %v77, 0.01
  %v122 = vmul.f32 %v78, 0.01
  %v123 = vmul.f32 %v79, 0.01
  %v124 = vmul.f32 %v80, 0.01
  %v125 = vmul.f32 %v81, 0.01
  %v126 = vmul.f32 %v82, 0.01
  %v127 = vmul.f32 %v83, 0.01
  %v128 = vmul.f32 %v84, 0.01
  %v129 = vmul.f32 %v85, 0.01
  %v130 = vmul.f32 %v86, 0.01
  %v131 = vmul.f32 %v87, 0.01
  %v132 = vmul.f32 %v88, 0.01
  %v133 = vmul.f32 %v89, 0.01
  %v134 = vmul.f32 %v90, 0.01
  %v135 = vmul.f32 %v91, 0.01
  %v136 = vmul.f32 %v92, 0.01
  %v137 = vmul.f32 %v93, 0.01
  %v138 = vsel %vm94, %v72, %v116
  %v139 = vsel %vm95, %v73, %v117
  %v140 = vsel %vm96, %v74, %v118
  %v141 = vsel %vm97, %v75, %v119
  %v142 = vsel %vm98, %v76, %v120
  %v143 = vsel %vm99, %v77, %v121
  %v144 = vsel %vm100, %v78, %v122
  %v145 = vsel %vm101, %v79, %v123
  %v146 = vsel %vm102, %v80, %v124
  %v147 = vsel %vm103, %v81, %v125
  %v148 = vsel %vm104, %v82, %v126
  %v149 = vsel %vm105, %v83, %v127
  %v150 = vsel %vm106, %v84, %v128
  %v151 = vsel %vm107, %v85, %v129
  %v152 = vsel %vm108, %v86, %v130
  %v153 = vsel %vm109, %v87, %v131
  %v154 = vsel %vm110, %v88, %v132
  %v155 = vsel %vm111, %v89, %v133
  %v156 = vsel %vm112, %v90, %v134
  %v157 = vsel %vm113, %v91, %v135
  %v158 = vsel %vm114, %v92, %v136
  %v159 = vsel %vm115, %v93, %v137
  %v160 = vpack.c.bf16 %v139, %v138
  %v161 = vpack.c.bf16 %v141, %v140
  %v162 = vpack.c.bf16 %v143, %v142
  %v163 = vpack.c.bf16 %v145, %v144
  %v164 = vpack.c.bf16 %v147, %v146
  %v165 = vpack.c.bf16 %v149, %v148
  %v166 = vpack.c.bf16 %v151, %v150
  %v167 = vpack.c.bf16 %v153, %v152
  %v168 = vpack.c.bf16 %v155, %v154
  %v169 = vpack.c.bf16 %v157, %v156
  %v170 = vpack.c.bf16 %v159, %v158
  %v182 = vunpack.c.l.b16 %v160
  %v183 = vunpack.c.h.b16 %v160
  %v184 = vunpack.c.l.b16 %v161
  %v185 = vunpack.c.h.b16 %v161
  %v186 = vunpack.c.l.b16 %v162
  %v187 = vunpack.c.h.b16 %v162
  %v188 = vunpack.c.l.b16 %v163
  %v189 = vunpack.c.h.b16 %v163
  %v190 = vunpack.c.l.b16 %v164
  %v191 = vunpack.c.h.b16 %v164
  %v192 = vunpack.c.l.b16 %v165
  %v193 = vunpack.c.h.b16 %v165
  %v194 = vunpack.c.l.b16 %v166
  %v195 = vunpack.c.h.b16 %v166
  %v196 = vunpack.c.l.b16 %v167
  %v197 = vunpack.c.h.b16 %v167
  %v198 = vunpack.c.l.b16 %v168
  %v199 = vunpack.c.h.b16 %v168
  %v200 = vunpack.c.l.b16 %v169
  %v201 = vunpack.c.h.b16 %v169
  %v202 = vunpack.c.l.b16 %v170
  %v203 = vunpack.c.h.b16 %v170
  %v204 = vpack.c.b16 %v182, %v182
  %v205 = vpack.c.b16 %v183, %v183
  %v206 = vpack.c.b16 %v184, %v184
  %v207 = vpack.c.b16 %v185, %v185
  %v208 = vpack.c.b16 %v186, %v186
  %v209 = vpack.c.b16 %v187, %v187
  %v210 = vpack.c.b16 %v188, %v188
  %v211 = vpack.c.b16 %v189, %v189
  %v212 = vpack.c.b16 %v190, %v190
  %v213 = vpack.c.b16 %v191, %v191
  %v214 = vpack.c.b16 %v192, %v192
  %v215 = vpack.c.b16 %v193, %v193
  %v216 = vpack.c.b16 %v194, %v194
  %v217 = vpack.c.b16 %v195, %v195
  %v218 = vpack.c.b16 %v196, %v196
  %v219 = vpack.c.b16 %v197, %v197
  %v220 = vpack.c.b16 %v198, %v198
  %v221 = vpack.c.b16 %v199, %v199
  %v222 = vpack.c.b16 %v200, %v200
  %v223 = vpack.c.b16 %v201, %v201
  %v224 = vpack.c.b16 %v202, %v202
  %v225 = vpack.c.b16 %v203, %v203
  %248 = vst [vmem:[%s3] sm:$0xf] %v204
  %249 = vst [vmem:[%s3 + $0x4] sm:$0xf] %v205
  %250 = vst [vmem:[%s3 + $0x8] sm:$0xf] %v206
  %251 = vst [vmem:[%s3 + $0xc] sm:$0xf] %v207
  %252 = vst [vmem:[%s3 + $0x10] sm:$0xf] %v208
  %253 = vst [vmem:[%s3 + $0x14] sm:$0xf] %v209
  %254 = vst [vmem:[%s3 + $0x18] sm:$0xf] %v210
  %255 = vst [vmem:[%s3 + $0x1c] sm:$0xf] %v211
  %256 = vst [vmem:[%s3 + $0x20] sm:$0xf] %v212
  %257 = vst [vmem:[%s3 + $0x24] sm:$0xf] %v213
  %258 = vst [vmem:[%s3 + $0x28] sm:$0xf] %v214
  %259 = vst [vmem:[%s3 + $0x2c] sm:$0xf] %v215
  %260 = vst [vmem:[%s3 + $0x30] sm:$0xf] %v216
  %261 = vst [vmem:[%s3 + $0x34] sm:$0xf] %v217
  %262 = vst [vmem:[%s3 + $0x38] sm:$0xf] %v218
  %263 = vst [vmem:[%s3 + $0x3c] sm:$0xf] %v219
  %264 = vst [vmem:[%s3 + $0x40] sm:$0xf] %v220
  %265 = vst [vmem:[%s3 + $0x44] sm:$0xf] %v221
  %266 = vst [vmem:[%s3 + $0x48] sm:$0xf] %v222
  %267 = vst [vmem:[%s3 + $0x4c] sm:$0xf] %v223
  %268 = vst [vmem:[%s3 + $0x50] sm:$0xf] %v224
  %269 = vst [vmem:[%s3 + $0x54] sm:$0xf] %v225
  // Predicated region
  $region14: #{vqvae_forward.22} parent=0 // pred_check
    _
  $region15: #{vqvae_forward.22} parent=0 // pred_check_branch
    %271 = sbr.rel (0) target = $region17
  $region16: #{vqvae_forward.22} parent=0 // pred_region
    _
  $region17: #{vqvae_forward.22} parent=0 // pred_fallthru
    _
  // Predicated region
  $region18: #{vqvae_forward.22} parent=0 // pred_check
    _
  $region19: #{vqvae_forward.22} parent=0 // pred_check_branch
    %273 = sbr.rel (0) target = $region21
  $region20: #{vqvae_forward.22} parent=0 // pred_region
    _
  $region21: #{vqvae_forward.22} parent=0 // pred_fallthru
    _

// kernel: vqvae_forward.21
$region0: #{vqvae_forward.21}
  #allocation0 [shape = 'u32[]', space=smem, size = 0x4, offset = 0x4, fixed_abs, tag = 'smem constant byte address 0x4 - core index']
  #allocation1 [shape = 'u32[144,128]{1,0:T(1,128)}', space=vmem, size = 0x12000, scoped, tag = 'internal scratch']
  %s0 = inlined_call_operand.vmem [shape: bf16[176,256], index: 0, kind: input, shape index: {}]
  %s1 = inlined_call_operand.vmem [shape: bf16[256,128], index: 1, kind: input, shape index: {}]
  %s2 = inlined_call_operand.vmem [shape: f32[1,128], index: 2, kind: input, shape index: {}]
  %s3 = inlined_call_operand.vmem [shape: f32[176,128], index: 3, kind: output, shape index: {0}]
  %s4 = inlined_call_operand.hbm [shape: f32[1,2,128], index: 4, kind: output, shape index: {1}]
  %5 = xla_tuple %s3, %s4
  %s6 = sld [smem:[#allocation0]]
  $region30: #{vqvae_forward.21} parent=0
    _
  %s8 = ssub.s32 1, %s6
  %s9 = scalar_select 0, %s8, %s6
  $region1: #{vqvae_forward.21} parent=0
    #allocation2 [shape = 'u8[1024]{0}', space=vmem, size = 0x400, scoped, tag = 'output window, operand 1, single buffered']
    #allocation3 [shape = 's32[1]{0}', space=sflag, size = 0x4, scoped, tag = 'scoped memory for vqvae_forward.21']
    %10 = vsyncpa [#allocation3], 0
    // Predicated region
    $region2: #{vqvae_forward.21} parent=1 // pred_check
      _
    $region3: #{vqvae_forward.21} parent=1 // pred_check_branch
      %12 = sbr.rel (0) target = $region5
    $region4: #{vqvae_forward.21} parent=1 // pred_region
      _
    $region5: #{vqvae_forward.21} parent=1 // pred_fallthru
      _
    // Predicated region
    $region6: #{vqvae_forward.21} parent=1 // pred_check
      _
    $region7: #{vqvae_forward.21} parent=1 // pred_check_branch
      %14 = sbr.rel (0) target = $region9
    $region8: #{vqvae_forward.21} parent=1 // pred_region
      _
    $region9: #{vqvae_forward.21} parent=1 // pred_fallthru
      _
    // Predicated region
    $region10: #{vqvae_forward.21} parent=1 // pred_check
      _
    $region11: #{vqvae_forward.21} parent=1 // pred_check_branch
      %16 = sbr.rel (0) target = $region13
    $region12: #{vqvae_forward.21} parent=1 // pred_region
      _
    $region13: #{vqvae_forward.21} parent=1 // pred_fallthru
      _
    %v18 = vld [vmem:[%s0] sm:$0xff]
    %v19 = vld [vmem:[%s0 + $0x8] sm:$0xff]
    %v20 = vld [vmem:[%s0 + $0x10] sm:$0xff]
    %v21 = vld [vmem:[%s0 + $0x18] sm:$0xff]
    %v22 = vld [vmem:[%s0 + $0x20] sm:$0xff]
    %v23 = vld [vmem:[%s0 + $0x28] sm:$0xff]
    %v24 = vld [vmem:[%s0 + $0x30] sm:$0xff]
    %v25 = vld [vmem:[%s0 + $0x38] sm:$0xff]
    %v26 = vld [vmem:[%s0 + $0x40] sm:$0xff]
    %v27 = vld [vmem:[%s0 + $0x48] sm:$0xff]
    %v28 = vld [vmem:[%s0 + $0x50] sm:$0xff]
    %v29 = vld [vmem:[%s0 + $0x58] sm:$0xff]
    %v30 = vld [vmem:[%s0 + $0x60] sm:$0xff]
    %v31 = vld [vmem:[%s0 + $0x68] sm:$0xff]
    %v32 = vld [vmem:[%s0 + $0x70] sm:$0xff]
    %v33 = vld [vmem:[%s0 + $0x78] sm:$0xff]
    %v34 = vld [vmem:[%s0 + $0x80] sm:$0xff]
    %v35 = vld [vmem:[%s0 + $0x88] sm:$0xff]
    %v36 = vld [vmem:[%s0 + $0x90] sm:$0xff]
    %v37 = vld [vmem:[%s0 + $0x98] sm:$0xff]
    %v38 = vld [vmem:[%s0 + $0xa0] sm:$0xff]
    %v39 = vld [vmem:[%s0 + $0xa8] sm:$0xff]
    %v40 = vld [vmem:[%s1] sm:$0xf]
    %v41 = vld [vmem:[%s1 + $0x4] sm:$0xf]
    %v42 = vld [vmem:[%s1 + $0x8] sm:$0xf]
    %v43 = vld [vmem:[%s1 + $0xc] sm:$0xf]
    %v44 = vld [vmem:[%s1 + $0x10] sm:$0xf]
    %v45 = vld [vmem:[%s1 + $0x14] sm:$0xf]
    %v46 = vld [vmem:[%s1 + $0x18] sm:$0xf]
    %v47 = vld [vmem:[%s1 + $0x1c] sm:$0xf]
    %v48 = vld [vmem:[%s1 + $0x20] sm:$0xf]
    %v49 = vld [vmem:[%s1 + $0x24] sm:$0xf]
    %v50 = vld [vmem:[%s1 + $0x28] sm:$0xf]
    %v51 = vld [vmem:[%s1 + $0x2c] sm:$0xf]
    %v52 = vld [vmem:[%s1 + $0x30] sm:$0xf]
    %v53 = vld [vmem:[%s1 + $0x34] sm:$0xf]
    %v54 = vld [vmem:[%s1 + $0x38] sm:$0xf]
    %v55 = vld [vmem:[%s1 + $0x3c] sm:$0xf]
    %v56 = vld [vmem:[%s1 + $0x40] sm:$0xf]
    %v57 = vld [vmem:[%s1 + $0x44] sm:$0xf]
    %v58 = vld [vmem:[%s1 + $0x48] sm:$0xf]
    %v59 = vld [vmem:[%s1 + $0x4c] sm:$0xf]
    %v60 = vld [vmem:[%s1 + $0x50] sm:$0xf]
    %v61 = vld [vmem:[%s1 + $0x54] sm:$0xf]
    %v62 = vld [vmem:[%s1 + $0x58] sm:$0xf]
    %v63 = vld [vmem:[%s1 + $0x5c] sm:$0xf]
    %v64 = vld [vmem:[%s1 + $0x60] sm:$0xf]
    %v65 = vld [vmem:[%s1 + $0x64] sm:$0xf]
    %v66 = vld [vmem:[%s1 + $0x68] sm:$0xf]
    %v67 = vld [vmem:[%s1 + $0x6c] sm:$0xf]
    %v68 = vld [vmem:[%s1 + $0x70] sm:$0xf]
    %v69 = vld [vmem:[%s1 + $0x74] sm:$0xf]
    %v70 = vld [vmem:[%s1 + $0x78] sm:$0xf]
    %v71 = vld [vmem:[%s1 + $0x7c] sm:$0xf]
    %v72 = vld [vmem:[%s2] sm:$0x1]
    %v74 = vlaneseq
    %v75 = vshrl.u32 %v74, 7
    %v76 = vsub.s32 0, %v75
    %v77 = vrot.slane %v72, %v76
    %v101 = vunpack.c.l.b16 %v18
    %v102 = vunpack.c.h.b16 %v18
    %v103 = vunpack.c.l.b16 %v19
    %v104 = vunpack.c.h.b16 %v19
    %v105 = vunpack.c.l.b16 %v20
    %v106 = vunpack.c.h.b16 %v20
    %v107 = vunpack.c.l.b16 %v21
    %v108 = vunpack.c.h.b16 %v21
    %v109 = vunpack.c.l.b16 %v22
    %v110 = vunpack.c.h.b16 %v22
    %v111 = vunpack.c.l.b16 %v23
    %v112 = vunpack.c.h.b16 %v23
    %v113 = vunpack.c.l.b16 %v24
    %v114 = vunpack.c.h.b16 %v24
    %v115 = vunpack.c.l.b16 %v25
    %v116 = vunpack.c.h.b16 %v25
    %v117 = vunpack.c.l.b16 %v26
    %v118 = vunpack.c.h.b16 %v26
    %v119 = vunpack.c.l.b16 %v27
    %v120 = vunpack.c.h.b16 %v27
    %v121 = vunpack.c.l.b16 %v28
    %v122 = vunpack.c.h.b16 %v28
    %v123 = vunpack.c.l.b16 %v29
    %v124 = vunpack.c.h.b16 %v29
    %v125 = vunpack.c.l.b16 %v30
    %v126 = vunpack.c.h.b16 %v30
    %v127 = vunpack.c.l.b16 %v31
    %v128 = vunpack.c.h.b16 %v31
    %v129 = vunpack.c.l.b16 %v32
    %v130 = vunpack.c.h.b16 %v32
    %v131 = vunpack.c.l.b16 %v33
    %v132 = vunpack.c.h.b16 %v33
    %v133 = vunpack.c.l.b16 %v34
    %v134 = vunpack.c.h.b16 %v34
    %v135 = vunpack.c.l.b16 %v35
    %v136 = vunpack.c.h.b16 %v35
    %v137 = vunpack.c.l.b16 %v36
    %v138 = vunpack.c.h.b16 %v36
    %v139 = vunpack.c.l.b16 %v37
    %v140 = vunpack.c.h.b16 %v37
    %v141 = vunpack.c.l.b16 %v38
    %v142 = vunpack.c.h.b16 %v38
    %v143 = vunpack.c.l.b16 %v39
    %v144 = vunpack.c.h.b16 %v39
    %v145 = vpack.c.b16 %v103, %v101
    %v146 = vpack.c.b16 %v104, %v102
    %v147 = vpack.c.b16 %v107, %v105
    %v148 = vpack.c.b16 %v108, %v106
    %v149 = vpack.c.b16 %v111, %v109
    %v150 = vpack.c.b16 %v112, %v110
    %v151 = vpack.c.b16 %v115, %v113
    %v152 = vpack.c.b16 %v116, %v114
    %v153 = vpack.c.b16 %v119, %v117
    %v154 = vpack.c.b16 %v120, %v118
    %v155 = vpack.c.b16 %v123, %v121
    %v156 = vpack.c.b16 %v124, %v122
    %v157 = vpack.c.b16 %v127, %v125
    %v158 = vpack.c.b16 %v128, %v126
    %v159 = vpack.c.b16 %v131, %v129
    %v160 = vpack.c.b16 %v132, %v130
    %v161 = vpack.c.b16 %v135, %v133
    %v162 = vpack.c.b16 %v136, %v134
    %v163 = vpack.c.b16 %v139, %v137
    %v164 = vpack.c.b16 %v140, %v138
    %v165 = vpack.c.b16 %v143, %v141
    %v166 = vpack.c.b16 %v144, %v142
    %v221 = vunpack.c.l.b16 %v40
    %v222 = vunpack.c.l.b16 %v41
    %v223 = vunpack.c.l.b16 %v42
    %v224 = vunpack.c.l.b16 %v43
    %v225 = vunpack.c.l.b16 %v44
    %v226 = vunpack.c.l.b16 %v45
    %v227 = vunpack.c.l.b16 %v46
    %v228 = vunpack.c.l.b16 %v47
    %v229 = vunpack.c.l.b16 %v48
    %v230 = vunpack.c.l.b16 %v49
    %v231 = vunpack.c.l.b16 %v50
    %v232 = vunpack.c.l.b16 %v51
    %v233 = vunpack.c.l.b16 %v52
    %v234 = vunpack.c.l.b16 %v53
    %v235 = vunpack.c.l.b16 %v54
    %v236 = vunpack.c.l.b16 %v55
    %v237 = vunpack.c.l.b16 %v56
    %v238 = vunpack.c.l.b16 %v57
    %v239 = vunpack.c.l.b16 %v58
    %v240 = vunpack.c.l.b16 %v59
    %v241 = vunpack.c.l.b16 %v60
    %v242 = vunpack.c.l.b16 %v61
    %v243 = vunpack.c.l.b16 %v62
    %v244 = vunpack.c.l.b16 %v63
    %v245 = vunpack.c.l.b16 %v64
    %v246 = vunpack.c.l.b16 %v65
    %v247 = vunpack.c.l.b16 %v66
    %v248 = vunpack.c.l.b16 %v67
    %v249 = vunpack.c.l.b16 %v68
    %v250 = vunpack.c.l.b16 %v69
    %v251 = vunpack.c.l.b16 %v70
    %v252 = vunpack.c.l.b16 %v71
    %v253 = vpack.c.b16 %v222, %v221
    %v254 = vpack.c.b16 %v224, %v223
    %v255 = vpack.c.b16 %v226, %v225
    %v256 = vpack.c.b16 %v228, %v227
    %v257 = vpack.c.b16 %v230, %v229
    %v258 = vpack.c.b16 %v232, %v231
    %v259 = vpack.c.b16 %v234, %v233
    %v260 = vpack.c.b16 %v236, %v235
    %v261 = vpack.c.b16 %v238, %v237
    %v262 = vpack.c.b16 %v240, %v239
    %v263 = vpack.c.b16 %v242, %v241
    %v264 = vpack.c.b16 %v244, %v243
    %v265 = vpack.c.b16 %v246, %v245
    %v266 = vpack.c.b16 %v248, %v247
    %v267 = vpack.c.b16 %v250, %v249
    %v268 = vpack.c.b16 %v252, %v251
    %285 = vmatprep.subr.bf16.mxu0 0
    %286 = vmatpush1.bf16.msra.mxu0 %v253
    %287 = vmatprep.subr.bf16.mxu0 0
    %288 = vmatpush1.bf16.msra.mxu0 %v254
    %289 = vmatprep.subr.bf16.mxu0 0
    %290 = vmatpush1.bf16.msra.mxu0 %v255
    %291 = vmatprep.subr.bf16.mxu0 0
    %292 = vmatpush1.bf16.msra.mxu0 %v256
    %293 = vmatprep.subr.bf16.mxu0 0
    %294 = vmatpush1.bf16.msra.mxu0 %v257
    %295 = vmatprep.subr.bf16.mxu0 0
    %296 = vmatpush1.bf16.msra.mxu0 %v258
    %297 = vmatprep.subr.bf16.mxu0 0
    %298 = vmatpush1.bf16.msra.mxu0 %v259
    %299 = vmatprep.subr.bf16.mxu0 0
    %300 = vmatpush1.bf16.msra.mxu0 %v260
    %301 = vmatprep.subr.bf16.mxu0 0
    %302 = vmatpush1.bf16.msra.mxu0 %v261
    %303 = vmatprep.subr.bf16.mxu0 0
    %304 = vmatpush1.bf16.msra.mxu0 %v262
    %305 = vmatprep.subr.bf16.mxu0 0
    %306 = vmatpush1.bf16.msra.mxu0 %v263
    %307 = vmatprep.subr.bf16.mxu0 0
    %308 = vmatpush1.bf16.msra.mxu0 %v264
    %309 = vmatprep.subr.bf16.mxu0 0
    %310 = vmatpush1.bf16.msra.mxu0 %v265
    %311 = vmatprep.subr.bf16.mxu0 0
    %312 = vmatpush1.bf16.msra.mxu0 %v266
    %313 = vmatprep.subr.bf16.mxu0 0
    %314 = vmatpush1.bf16.msra.mxu0 %v267
    %315 = vmatprep.subr.bf16.mxu0 0
    %316 = vmatpush1.bf16.msra.mxu0 %v268
    %317 = vmatprep.mubr.bf16.mxu0 %v146
    %318 = vmatmul.mubr.bf16.gmra.mrb[0].mxu0 %v145
    %v319 = vpop.f32.mrb[0].mxu0
    %v320 = vadd.f32 %v77, %v319
    %v321 = vpop.f32.mrb[0].mxu0
    %v322 = vpop.f32.mrb[0].mxu0
    %v323 = vadd.f32 %v77, %v322
    %v324 = vpop.f32.mrb[0].mxu0
    %325 = vmatprep.mubr.bf16.mxu0 %v148
    %326 = vmatmul.mubr.bf16.gmra.mrb[0].mxu0 %v147
    %v327 = vpop.f32.mrb[0].mxu0
    %v328 = vadd.f32 %v77, %v327
    %v329 = vpop.f32.mrb[0].mxu0
    %v330 = vpop.f32.mrb[0].mxu0
    %v331 = vadd.f32 %v77, %v330
    %v332 = vpop.f32.mrb[0].mxu0
    %333 = vmatprep.mubr.bf16.mxu0 %v150
    %334 = vmatmul.mubr.bf16.gmra.mrb[0].mxu0 %v149
    %v335 = vpop.f32.mrb[0].mxu0
    %v336 = vadd.f32 %v77, %v335
    %v337 = vpop.f32.mrb[0].mxu0
    %v338 = vpop.f32.mrb[0].mxu0
    %v339 = vadd.f32 %v77, %v338
    %v340 = vpop.f32.mrb[0].mxu0
    %341 = vmatprep.mubr.bf16.mxu0 %v152
    %342 = vmatmul.mubr.bf16.gmra.mrb[0].mxu0 %v151
    %v343 = vpop.f32.mrb[0].mxu0
    %v344 = vadd.f32 %v77, %v343
    %v345 = vpop.f32.mrb[0].mxu0
    %v346 = vpop.f32.mrb[0].mxu0
    %v347 = vadd.f32 %v77, %v346
    %v348 = vpop.f32.mrb[0].mxu0
    %349 = vmatprep.mubr.bf16.mxu0 %v154
    %350 = vmatmul.mubr.bf16.gmra.mrb[0].mxu0 %v153
    %v351 = vpop.f32.mrb[0].mxu0
    %v352 = vadd.f32 %v77, %v351
    %v353 = vpop.f32.mrb[0].mxu0
    %v354 = vpop.f32.mrb[0].mxu0
    %v355 = vadd.f32 %v77, %v354
    %v356 = vpop.f32.mrb[0].mxu0
    %357 = vmatprep.mubr.bf16.mxu0 %v156
    %358 = vmatmul.mubr.bf16.gmra.mrb[0].mxu0 %v155
    %v359 = vpop.f32.mrb[0].mxu0
    %v360 = vadd.f32 %v77, %v359
    %v361 = vpop.f32.mrb[0].mxu0
    %v362 = vpop.f32.mrb[0].mxu0
    %v363 = vadd.f32 %v77, %v362
    %v364 = vpop.f32.mrb[0].mxu0
    %365 = vmatprep.mubr.bf16.mxu0 %v158
    %366 = vmatmul.mubr.bf16.gmra.mrb[0].mxu0 %v157
    %v367 = vpop.f32.mrb[0].mxu0
    %v368 = vadd.f32 %v77, %v367
    %v369 = vpop.f32.mrb[0].mxu0
    %v370 = vpop.f32.mrb[0].mxu0
    %v371 = vadd.f32 %v77, %v370
    %v372 = vpop.f32.mrb[0].mxu0
    %373 = vmatprep.mubr.bf16.mxu0 %v160
    %374 = vmatmul.mubr.bf16.gmra.mrb[0].mxu0 %v159
    %v375 = vpop.f32.mrb[0].mxu0
    %v376 = vadd.f32 %v77, %v375
    %v377 = vpop.f32.mrb[0].mxu0
    %v378 = vpop.f32.mrb[0].mxu0
    %v379 = vadd.f32 %v77, %v378
    %v380 = vpop.f32.mrb[0].mxu0
    %381 = vmatprep.mubr.bf16.mxu0 %v162
    %382 = vmatmul.mubr.bf16.gmra.mrb[0].mxu0 %v161
    %v383 = vpop.f32.mrb[0].mxu0
    %v384 = vadd.f32 %v77, %v383
    %v385 = vpop.f32.mrb[0].mxu0
    %v386 = vpop.f32.mrb[0].mxu0
    %v387 = vadd.f32 %v77, %v386
    %v388 = vpop.f32.mrb[0].mxu0
    %389 = vmatprep.mubr.bf16.mxu0 %v164
    %390 = vmatmul.mubr.bf16.gmra.mrb[0].mxu0 %v163
    %v391 = vpop.f32.mrb[0].mxu0
    %v392 = vadd.f32 %v77, %v391
    %v393 = vpop.f32.mrb[0].mxu0
    %v394 = vpop.f32.mrb[0].mxu0
    %v395 = vadd.f32 %v77, %v394
    %v396 = vpop.f32.mrb[0].mxu0
    %397 = vmatprep.mubr.bf16.mxu0 %v166
    %398 = vmatmul.mubr.bf16.gmra.mrb[0].mxu0 %v165
    %v399 = vpop.f32.mrb[0].mxu0
    %v400 = vadd.f32 %v77, %v399
    %v401 = vpop.f32.mrb[0].mxu0
    %v402 = vpop.f32.mrb[0].mxu0
    %v403 = vadd.f32 %v77, %v402
    %v404 = vpop.f32.mrb[0].mxu0
    %405 = vdwg.mxu0
    %406 = vst [vmem:[%s3] sm:$0xff] %v320
    %407 = vst [vmem:[%s3 + $0x8] sm:$0xff] %v323
    %408 = vst [vmem:[%s3 + $0x10] sm:$0xff] %v328
    %409 = vst [vmem:[%s3 + $0x18] sm:$0xff] %v331
    %410 = vst [vmem:[%s3 + $0x20] sm:$0xff] %v336
    %411 = vst [vmem:[%s3 + $0x28] sm:$0xff] %v339
    %412 = vst [vmem:[%s3 + $0x30] sm:$0xff] %v344
    %413 = vst [vmem:[%s3 + $0x38] sm:$0xff] %v347
    %414 = vst [vmem:[%s3 + $0x40] sm:$0xff] %v352
    %415 = vst [vmem:[%s3 + $0x48] sm:$0xff] %v355
    %416 = vst [vmem:[%s3 + $0x50] sm:$0xff] %v360
    %417 = vst [vmem:[%s3 + $0x58] sm:$0xff] %v363
    %418 = vst [vmem:[%s3 + $0x60] sm:$0xff] %v368
    %419 = vst [vmem:[%s3 + $0x68] sm:$0xff] %v371
    %420 = vst [vmem:[%s3 + $0x70] sm:$0xff] %v376
    %421 = vst [vmem:[%s3 + $0x78] sm:$0xff] %v379
    %422 = vst [vmem:[%s3 + $0x80] sm:$0xff] %v384
    %423 = vst [vmem:[%s3 + $0x88] sm:$0xff] %v387
    %424 = vst [vmem:[%s3 + $0x90] sm:$0xff] %v392
    %425 = vst [vmem:[%s3 + $0x98] sm:$0xff] %v395
    %426 = vst [vmem:[%s3 + $0xa0] sm:$0xff] %v400
    %427 = vst [vmem:[%s3 + $0xa8] sm:$0xff] %v403
    %s428 = smul.u32 0, 176
    %v429 = vlaneseq
    %v430 = vshrl.u32 %v429, 7
    %v431 = vadd.s32 %v430, 8
    %v432 = vadd.s32 %v430, 16
    %v433 = vadd.s32 %v430, 24
    %v434 = vadd.s32 %v430, 32
    %v435 = vadd.s32 %v430, 40
    %v436 = vadd.s32 %v430, 48
    %v437 = vadd.s32 %v430, 56
    %v438 = vadd.s32 %v430, 64
    %v439 = vadd.s32 %v430, 72
    %v440 = vadd.s32 %v430, 80
    %v441 = vadd.s32 %v430, 88
    %v442 = vadd.s32 %v430, 96
    %v443 = vadd.s32 %v430, 104
    %v444 = vadd.s32 %v430, 112
    %v445 = vadd.s32 %v430, 120
    %v446 = vadd.s32 %v430, 128
    %v447 = vadd.s32 %v430, 136
    %v448 = vadd.s32 %v430, 144
    %v449 = vadd.s32 %v430, 152
    %v450 = vadd.s32 %v430, 160
    %v451 = vadd.s32 %v430, 168
    %v452 = vstv %s428
    %v453 = vadd.s32 %v452, %v430
    %v454 = vadd.s32 %v452, %v431
    %v455 = vadd.s32 %v452, %v432
    %v456 = vadd.s32 %v452, %v433
    %v457 = vadd.s32 %v452, %v434
    %v458 = vadd.s32 %v452, %v435
    %v459 = vadd.s32 %v452, %v436
    %v460 = vadd.s32 %v452, %v437
    %v461 = vadd.s32 %v452, %v438
    %v462 = vadd.s32 %v452, %v439
    %v463 = vadd.s32 %v452, %v440
    %v464 = vadd.s32 %v452, %v441
    %v465 = vadd.s32 %v452, %v442
    %v466 = vadd.s32 %v452, %v443
    %v467 = vadd.s32 %v452, %v444
    %v468 = vadd.s32 %v452, %v445
    %v469 = vadd.s32 %v452, %v446
    %v470 = vadd.s32 %v452, %v447
    %v471 = vadd.s32 %v452, %v448
    %v472 = vadd.s32 %v452, %v449
    %v473 = vadd.s32 %v452, %v450
    %v474 = vadd.s32 %v452, %v451
    %vm475 = vcmp.lt.s32.totalorder %v453, 162
    %vm476 = vcmp.lt.s32.totalorder %v454, 162
    %vm477 = vcmp.lt.s32.totalorder %v455, 162
    %vm478 = vcmp.lt.s32.totalorder %v456, 162
    %vm479 = vcmp.lt.s32.totalorder %v457, 162
    %vm480 = vcmp.lt.s32.totalorder %v458, 162
    %vm481 = vcmp.lt.s32.totalorder %v459, 162
    %vm482 = vcmp.lt.s32.totalorder %v460, 162
    %vm483 = vcmp.lt.s32.totalorder %v461, 162
    %vm484 = vcmp.lt.s32.totalorder %v462, 162
    %vm485 = vcmp.lt.s32.totalorder %v463, 162
    %vm486 = vcmp.lt.s32.totalorder %v464, 162
    %vm487 = vcmp.lt.s32.totalorder %v465, 162
    %vm488 = vcmp.lt.s32.totalorder %v466, 162
    %vm489 = vcmp.lt.s32.totalorder %v467, 162
    %vm490 = vcmp.lt.s32.totalorder %v468, 162
    %vm491 = vcmp.lt.s32.totalorder %v469, 162
    %vm492 = vcmp.lt.s32.totalorder %v470, 162
    %vm493 = vcmp.lt.s32.totalorder %v471, 162
    %vm494 = vcmp.lt.s32.totalorder %v472, 162
    %vm495 = vcmp.lt.s32.totalorder %v473, 162
    %vm496 = vcmp.lt.s32.totalorder %v474, 162
    %v497 = vsel %vm475, 1, 0
    %v498 = vsel %vm476, 1, 0
    %v499 = vsel %vm477, 1, 0
    %v500 = vsel %vm478, 1, 0
    %v501 = vsel %vm479, 1, 0
    %v502 = vsel %vm480, 1, 0
    %v503 = vsel %vm481, 1, 0
    %v504 = vsel %vm482, 1, 0
    %v505 = vsel %vm483, 1, 0
    %v506 = vsel %vm484, 1, 0
    %v507 = vsel %vm485, 1, 0
    %v508 = vsel %vm486, 1, 0
    %v509 = vsel %vm487, 1, 0
    %v510 = vsel %vm488, 1, 0
    %v511 = vsel %vm489, 1, 0
    %v512 = vsel %vm490, 1, 0
    %v513 = vsel %vm491, 1, 0
    %v514 = vsel %vm492, 1, 0
    %v515 = vsel %vm493, 1, 0
    %v516 = vsel %vm494, 1, 0
    %v517 = vsel %vm495, 1, 0
    %v518 = vsel %vm496, 1, 0
    %v519 = vcvt.s32.f32 %v497
    %v520 = vcvt.s32.f32 %v498
    %v521 = vcvt.s32.f32 %v499
    %v522 = vcvt.s32.f32 %v500
    %v523 = vcvt.s32.f32 %v501
    %v524 = vcvt.s32.f32 %v502
    %v525 = vcvt.s32.f32 %v503
    %v526 = vcvt.s32.f32 %v504
    %v527 = vcvt.s32.f32 %v505
    %v528 = vcvt.s32.f32 %v506
    %v529 = vcvt.s32.f32 %v507
    %v530 = vcvt.s32.f32 %v508
    %v531 = vcvt.s32.f32 %v509
    %v532 = vcvt.s32.f32 %v510
    %v533 = vcvt.s32.f32 %v511
    %v534 = vcvt.s32.f32 %v512
    %v535 = vcvt.s32.f32 %v513
    %v536 = vcvt.s32.f32 %v514
    %v537 = vcvt.s32.f32 %v515
    %v538 = vcvt.s32.f32 %v516
    %v539 = vcvt.s32.f32 %v517
    %v540 = vcvt.s32.f32 %v518
    %v541 = vmul.f32 %v320, %v519
    %v542 = vmul.f32 %v323, %v520
    %v543 = vmul.f32 %v328, %v521
    %v544 = vmul.f32 %v331, %v522
    %v545 = vmul.f32 %v336, %v523
    %v546 = vmul.f32 %v339, %v524
    %v547 = vmul.f32 %v344, %v525
    %v548 = vmul.f32 %v347, %v526
    %v549 = vmul.f32 %v352, %v527
    %v550 = vmul.f32 %v355, %v528
    %v551 = vmul.f32 %v360, %v529
    %v552 = vmul.f32 %v363, %v530
    %v553 = vmul.f32 %v368, %v531
    %v554 = vmul.f32 %v371, %v532
    %v555 = vmul.f32 %v376, %v533
    %v556 = vmul.f32 %v379, %v534
    %v557 = vmul.f32 %v384, %v535
    %v558 = vmul.f32 %v387, %v536
    %v559 = vmul.f32 %v392, %v537
    %v560 = vmul.f32 %v395, %v538
    %v561 = vmul.f32 %v400, %v539
    %v562 = vmul.f32 %v403, %v540
    %v563 = vadd.f32 %v541, %v542
    %v564 = vadd.f32 %v563, %v543
    %v565 = vadd.f32 %v564, %v544
    %v566 = vadd.f32 %v565, %v545
    %v567 = vadd.f32 %v566, %v546
    %v568 = vadd.f32 %v567, %v547
    %v569 = vadd.f32 %v568, %v548
    %v570 = vadd.f32 %v569, %v549
    %v571 = vadd.f32 %v570, %v550
    %v572 = vadd.f32 %v571, %v551
    %v573 = vadd.f32 %v572, %v552
    %v574 = vadd.f32 %v573, %v553
    %v575 = vadd.f32 %v574, %v554
    %v576 = vadd.f32 %v575, %v555
    %v577 = vadd.f32 %v576, %v556
    %v578 = vadd.f32 %v577, %v557
    %v579 = vadd.f32 %v578, %v558
    %v580 = vadd.f32 %v579, %v559
    %v581 = vadd.f32 %v580, %v560
    %v582 = vadd.f32 %v581, %v561
    %v583 = vadd.f32 %v582, %v562
    %v584 = vrot.slane %v583, 4
    %v585 = vadd.f32 %v583, %v584
    %v586 = vrot.slane %v585, 2
    %v587 = vadd.f32 %v585, %v586
    %v588 = vrot.slane %v587, 1
    %v589 = vadd.f32 %v587, %v588
    %v590 = vmul.f32 %v541, %v541
    %v591 = vmul.f32 %v542, %v542
    %v592 = vmul.f32 %v543, %v543
    %v593 = vmul.f32 %v544, %v544
    %v594 = vmul.f32 %v545, %v545
    %v595 = vmul.f32 %v546, %v546
    %v596 = vmul.f32 %v547, %v547
    %v597 = vmul.f32 %v548, %v548
    %v598 = vmul.f32 %v549, %v549
    %v599 = vmul.f32 %v550, %v550
    %v600 = vmul.f32 %v551, %v551
    %v601 = vmul.f32 %v552, %v552
    %v602 = vmul.f32 %v553, %v553
    %v603 = vmul.f32 %v554, %v554
    %v604 = vmul.f32 %v555, %v555
    %v605 = vmul.f32 %v556, %v556
    %v606 = vmul.f32 %v557, %v557
    %v607 = vmul.f32 %v558, %v558
    %v608 = vmul.f32 %v559, %v559
    %v609 = vmul.f32 %v560, %v560
    %v610 = vmul.f32 %v561, %v561
    %v611 = vmul.f32 %v562, %v562
    %v612 = vadd.f32 %v590, %v591
    %v613 = vadd.f32 %v612, %v592
    %v614 = vadd.f32 %v613, %v593
    %v615 = vadd.f32 %v614, %v594
    %v616 = vadd.f32 %v615, %v595
    %v617 = vadd.f32 %v616, %v596
    %v618 = vadd.f32 %v617, %v597
    %v619 = vadd.f32 %v618, %v598
    %v620 = vadd.f32 %v619, %v599
    %v621 = vadd.f32 %v620, %v600
    %v622 = vadd.f32 %v621, %v601
    %v623 = vadd.f32 %v622, %v602
    %v624 = vadd.f32 %v623, %v603
    %v625 = vadd.f32 %v624, %v604
    %v626 = vadd.f32 %v625, %v605
    %v627 = vadd.f32 %v626, %v606
    %v628 = vadd.f32 %v627, %v607
    %v629 = vadd.f32 %v628, %v608
    %v630 = vadd.f32 %v629, %v609
    %v631 = vadd.f32 %v630, %v610
    %v632 = vadd.f32 %v631, %v611
    %v633 = vrot.slane %v632, 4
    %v634 = vadd.f32 %v632, %v633
    %v635 = vrot.slane %v634, 2
    %v636 = vadd.f32 %v634, %v635
    %v637 = vrot.slane %v636, 1
    %v638 = vadd.f32 %v636, %v637
    %vm639 = vcmask 1040384
    %v640 = vsel %vm639, %v589, %v638
    %641 = vst [vmem:[#allocation2] sm:$0x3] %v640
    // Predicated region
    $region14: #{vqvae_forward.21} parent=1 // pred_check
      _
    $region15: #{vqvae_forward.21} parent=1 // pred_check_branch
      %643 = sbr.rel (0) target = $region17
    $region16: #{vqvae_forward.21} parent=1 // pred_region
      _
    $region17: #{vqvae_forward.21} parent=1 // pred_fallthru
      _
    // Predicated region
    $region18: #{vqvae_forward.21} parent=1 // pred_check
      _
    $region19: #{vqvae_forward.21} parent=1 // pred_check_branch
      %645 = sbr.rel (0) target = $region21
    $region20: #{vqvae_forward.21} parent=1 // pred_region
      %s647 = ssub.s32 32, 32
      %648 = vsyncadd [#allocation3], %s647
      %s650 = sshll.u32 [#allocation2], 4
      %s651 = int_to_ptr.vmem [resolvable:$true] %s650
      %653 = dma.vmem_to_hbm [thread:$0]  %s651, 32, %s4, [#allocation3]
    $region21: #{vqvae_forward.21} parent=1 // pred_fallthru
      _
    // Predicated region
    $region22: #{vqvae_forward.21} parent=1 // pred_check
      _
    $region23: #{vqvae_forward.21} parent=1 // pred_check_branch
      %655 = sbr.rel (0) target = $region25
    $region24: #{vqvae_forward.21} parent=1 // pred_region
      _
    $region25: #{vqvae_forward.21} parent=1 // pred_fallthru
      _
    // Predicated region
    $region26: #{vqvae_forward.21} parent=1 // pred_check
      _
    $region27: #{vqvae_forward.21} parent=1 // pred_check_branch
      %657 = sbr.rel (0) target = $region29
    $region28: #{vqvae_forward.21} parent=1 // pred_region
      %658 = dma.done [#allocation3], 32
    $region29: #{vqvae_forward.21} parent=1 // pred_fallthru
      _
    %659 = vsyncpa [#allocation3], 1

// kernel: vqvae_forward.23
$region0: #{vqvae_forward.23}
  #allocation0 [shape = 'u32[]', space=smem, size = 0x4, offset = 0x4, fixed_abs, tag = 'smem constant byte address 0x4 - core index']
  #allocation1 [shape = 'u32[144,128]{1,0:T(1,128)}', space=vmem, size = 0x12000, scoped, tag = 'internal scratch']
  %s0 = inlined_call_operand.vmem [shape: bf16[512,288], index: 0, kind: input, shape index: {}]
  %s1 = inlined_call_operand.vmem [shape: bf16[288,128], index: 1, kind: input, shape index: {}]
  %s2 = inlined_call_operand.vmem [shape: f32[1,128], index: 2, kind: input, shape index: {}]
  %s3 = inlined_call_operand.vmem [shape: f32[512,128], index: 3, kind: output, shape index: {}]
  %s4 = sld [smem:[#allocation0]]
  $region22: #{vqvae_forward.23} parent=0
    _
  %s6 = ssub.s32 1, %s4
  %s7 = scalar_select 0, %s6, %s4
  // Predicated region
  $region2: #{vqvae_forward.23} parent=0 // pred_check
    _
  $region3: #{vqvae_forward.23} parent=0 // pred_check_branch
    %9 = sbr.rel (0) target = $region5
  $region4: #{vqvae_forward.23} parent=0 // pred_region
    _
  $region5: #{vqvae_forward.23} parent=0 // pred_fallthru
    _
  // Predicated region
  $region6: #{vqvae_forward.23} parent=0 // pred_check
    _
  $region7: #{vqvae_forward.23} parent=0 // pred_check_branch
    %11 = sbr.rel (0) target = $region9
  $region8: #{vqvae_forward.23} parent=0 // pred_region
    _
  $region9: #{vqvae_forward.23} parent=0 // pred_fallthru
    _
  // Predicated region
  $region10: #{vqvae_forward.23} parent=0 // pred_check
    _
  $region11: #{vqvae_forward.23} parent=0 // pred_check_branch
    %13 = sbr.rel (0) target = $region13
  $region12: #{vqvae_forward.23} parent=0 // pred_region
    _
  $region13: #{vqvae_forward.23} parent=0 // pred_fallthru
    _
  %v15 = vld [vmem:[%s0] sm:$0xff]
  %v16 = vld [vmem:[%s0 + $0x8] sm:$0xf]
  %v17 = vld [vmem:[%s0 + $0xc] sm:$0xff]
  %v18 = vld [vmem:[%s0 + $0x14] sm:$0xf]
  %v19 = vld [vmem:[%s0 + $0x18] sm:$0xff]
  %v20 = vld [vmem:[%s0 + $0x20] sm:$0xf]
  %v21 = vld [vmem:[%s0 + $0x24] sm:$0xff]
  %v22 = vld [vmem:[%s0 + $0x2c] sm:$0xf]
  %v23 = vld [vmem:[%s0 + $0x30] sm:$0xff]
  %v24 = vld [vmem:[%s0 + $0x38] sm:$0xf]
  %v25 = vld [vmem:[%s0 + $0x3c] sm:$0xff]
  %v26 = vld [vmem:[%s0 + $0x44] sm:$0xf]
  %v27 = vld [vmem:[%s0 + $0x48] sm:$0xff]
  %v28 = vld [vmem:[%s0 + $0x50] sm:$0xf]
  %v29 = vld [vmem:[%s0 + $0x54] sm:$0xff]
  %v30 = vld [vmem:[%s0 + $0x5c] sm:$0xf]
  %v31 = vld [vmem:[%s0 + $0x60] sm:$0xff]
  %v32 = vld [vmem:[%s0 + $0x68] sm:$0xf]
  %v33 = vld [vmem:[%s0 + $0x6c] sm:$0xff]
  %v34 = vld [vmem:[%s0 + $0x74] sm:$0xf]
  %v35 = vld [vmem:[%s0 + $0x78] sm:$0xff]
  %v36 = vld [vmem:[%s0 + $0x80] sm:$0xf]
  %v37 = vld [vmem:[%s0 + $0x84] sm:$0xff]
  %v38 = vld [vmem:[%s0 + $0x8c] sm:$0xf]
  %v39 = vld [vmem:[%s0 + $0x90] sm:$0xff]
  %v40 = vld [vmem:[%s0 + $0x98] sm:$0xf]
  %v41 = vld [vmem:[%s0 + $0x9c] sm:$0xff]
  %v42 = vld [vmem:[%s0 + $0xa4] sm:$0xf]
  %v43 = vld [vmem:[%s0 + $0xa8] sm:$0xff]
  %v44 = vld [vmem:[%s0 + $0xb0] sm:$0xf]
  %v45 = vld [vmem:[%s0 + $0xb4] sm:$0xff]
  %v46 = vld [vmem:[%s0 + $0xbc] sm:$0xf]
  %v47 = vld [vmem:[%s0 + $0xc0] sm:$0xff]
  %v48 = vld [vmem:[%s0 + $0xc8] sm:$0xf]
  %v49 = vld [vmem:[%s0 + $0xcc] sm:$0xff]
  %v50 = vld [vmem:[%s0 + $0xd4] sm:$0xf]
  %v51 = vld [vmem:[%s0 + $0xd8] sm:$0xff]
  %v52 = vld [vmem:[%s0 + $0xe0] sm:$0xf]
  %v53 = vld [vmem:[%s0 + $0xe4] sm:$0xff]
  %v54 = vld [vmem:[%s0 + $0xec] sm:$0xf]
  %v55 = vld [vmem:[%s0 + $0xf0] sm:$0xff]
  %v56 = vld [vmem:[%s0 + $0xf8] sm:$0xf]
  %v57 = vld [vmem:[%s0 + $0xfc] sm:$0xff]
  %v58 = vld [vmem:[%s0 + $0x104] sm:$0xf]
  %v59 = vld [vmem:[%s0 + $0x108] sm:$0xff]
  %v60 = vld [vmem:[%s0 + $0x110] sm:$0xf]
  %v61 = vld [vmem:[%s0 + $0x114] sm:$0xff]
  %v62 = vld [vmem:[%s0 + $0x11c] sm:$0xf]
  %v63 = vld [vmem:[%s0 + $0x120] sm:$0xff]
  %v64 = vld [vmem:[%s0 + $0x128] sm:$0xf]
  %v65 = vld [vmem:[%s0 + $0x12c] sm:$0xff]
  %v66 = vld [vmem:[%s0 + $0x134] sm:$0xf]
  %v67 = vld [vmem:[%s0 + $0x138] sm:$0xff]
  %v68 = vld [vmem:[%s0 + $0x140] sm:$0xf]
  %v69 = vld [vmem:[%s0 + $0x144] sm:$0xff]
  %v70 = vld [vmem:[%s0 + $0x14c] sm:$0xf]
  %v71 = vld [vmem:[%s0 + $0x150] sm:$0xff]
  %v72 = vld [vmem:[%s0 + $0x158] sm:$0xf]
  %v73 = vld [vmem:[%s0 + $0x15c] sm:$0xff]
  %v74 = vld [vmem:[%s0 + $0x164] sm:$0xf]
  %v75 = vld [vmem:[%s0 + $0x168] sm:$0xff]
  %v76 = vld [vmem:[%s0 + $0x170] sm:$0xf]
  %v77 = vld [vmem:[%s0 + $0x174] sm:$0xff]
  %v78 = vld [vmem:[%s0 + $0x17c] sm:$0xf]
  %v79 = vld [vmem:[%s0 + $0x180] sm:$0xff]
  %v80 = vld [vmem:[%s0 + $0x188] sm:$0xf]
  %v81 = vld [vmem:[%s0 + $0x18c] sm:$0xff]
  %v82 = vld [vmem:[%s0 + $0x194] sm:$0xf]
  %v83 = vld [vmem:[%s0 + $0x198] sm:$0xff]
  %v84 = vld [vmem:[%s0 + $0x1a0] sm:$0xf]
  %v85 = vld [vmem:[%s0 + $0x1a4] sm:$0xff]
  %v86 = vld [vmem:[%s0 + $0x1ac] sm:$0xf]
  %v87 = vld [vmem:[%s0 + $0x1b0] sm:$0xff]
  %v88 = vld [vmem:[%s0 + $0x1b8] sm:$0xf]
  %v89 = vld [vmem:[%s0 + $0x1bc] sm:$0xff]
  %v90 = vld [vmem:[%s0 + $0x1c4] sm:$0xf]
  %v91 = vld [vmem:[%s0 + $0x1c8] sm:$0xff]
  %v92 = vld [vmem:[%s0 + $0x1d0] sm:$0xf]
  %v93 = vld [vmem:[%s0 + $0x1d4] sm:$0xff]
  %v94 = vld [vmem:[%s0 + $0x1dc] sm:$0xf]
  %v95 = vld [vmem:[%s0 + $0x1e0] sm:$0xff]
  %v96 = vld [vmem:[%s0 + $0x1e8] sm:$0xf]
  %v97 = vld [vmem:[%s0 + $0x1ec] sm:$0xff]
  %v98 = vld [vmem:[%s0 + $0x1f4] sm:$0xf]
  %v99 = vld [vmem:[%s0 + $0x1f8] sm:$0xff]
  %v100 = vld [vmem:[%s0 + $0x200] sm:$0xf]
  %v101 = vld [vmem:[%s0 + $0x204] sm:$0xff]
  %v102 = vld [vmem:[%s0 + $0x20c] sm:$0xf]
  %v103 = vld [vmem:[%s0 + $0x210] sm:$0xff]
  %v104 = vld [vmem:[%s0 + $0x218] sm:$0xf]
  %v105 = vld [vmem:[%s0 + $0x21c] sm:$0xff]
  %v106 = vld [vmem:[%s0 + $0x224] sm:$0xf]
  %v107 = vld [vmem:[%s0 + $0x228] sm:$0xff]
  %v108 = vld [vmem:[%s0 + $0x230] sm:$0xf]
  %v109 = vld [vmem:[%s0 + $0x234] sm:$0xff]
  %v110 = vld [vmem:[%s0 + $0x23c] sm:$0xf]
  %v111 = vld [vmem:[%s0 + $0x240] sm:$0xff]
  %v112 = vld [vmem:[%s0 + $0x248] sm:$0xf]
  %v113 = vld [vmem:[%s0 + $0x24c] sm:$0xff]
  %v114 = vld [vmem:[%s0 + $0x254] sm:$0xf]
  %v115 = vld [vmem:[%s0 + $0x258] sm:$0xff]
  %v116 = vld [vmem:[%s0 + $0x260] sm:$0xf]
  %v117 = vld [vmem:[%s0 + $0x264] sm:$0xff]
  %v118 = vld [vmem:[%s0 + $0x26c] sm:$0xf]
  %v119 = vld [vmem:[%s0 + $0x270] sm:$0xff]
  %v120 = vld [vmem:[%s0 + $0x278] sm:$0xf]
  %v121 = vld [vmem:[%s0 + $0x27c] sm:$0xff]
  %v122 = vld [vmem:[%s0 + $0x284] sm:$0xf]
  %v123 = vld [vmem:[%s0 + $0x288] sm:$0xff]
  %v124 = vld [vmem:[%s0 + $0x290] sm:$0xf]
  %v125 = vld [vmem:[%s0 + $0x294] sm:$0xff]
  %v126 = vld [vmem:[%s0 + $0x29c] sm:$0xf]
  %v127 = vld [vmem:[%s0 + $0x2a0] sm:$0xff]
  %v128 = vld [vmem:[%s0 + $0x2a8] sm:$0xf]
  %v129 = vld [vmem:[%s0 + $0x2ac] sm:$0xff]
  %v130 = vld [vmem:[%s0 + $0x2b4] sm:$0xf]
  %v131 = vld [vmem:[%s0 + $0x2b8] sm:$0xff]
  %v132 = vld [vmem:[%s0 + $0x2c0] sm:$0xf]
  %v133 = vld [vmem:[%s0 + $0x2c4] sm:$0xff]
  %v134 = vld [vmem:[%s0 + $0x2cc] sm:$0xf]
  %v135 = vld [vmem:[%s0 + $0x2d0] sm:$0xff]
  %v136 = vld [vmem:[%s0 + $0x2d8] sm:$0xf]
  %v137 = vld [vmem:[%s0 + $0x2dc] sm:$0xff]
  %v138 = vld [vmem:[%s0 + $0x2e4] sm:$0xf]
  %v139 = vld [vmem:[%s0 + $0x2e8] sm:$0xff]
  %v140 = vld [vmem:[%s0 + $0x2f0] sm:$0xf]
  %v141 = vld [vmem:[%s0 + $0x2f4] sm:$0xff]
  %v142 = vld [vmem:[%s0 + $0x2fc] sm:$0xf]
  %v143 = vld [vmem:[%s1] sm:$0xf]
  %v144 = vld [vmem:[%s1 + $0x4] sm:$0xf]
  %v145 = vld [vmem:[%s1 + $0x8] sm:$0xf]
  %v146 = vld [vmem:[%s1 + $0xc] sm:$0xf]
  %v147 = vld [vmem:[%s1 + $0x10] sm:$0xf]
  %v148 = vld [vmem:[%s1 + $0x14] sm:$0xf]
  %v149 = vld [vmem:[%s1 + $0x18] sm:$0xf]
  %v150 = vld [vmem:[%s1 + $0x1c] sm:$0xf]
  %v151 = vld [vmem:[%s1 + $0x20] sm:$0xf]
  %v152 = vld [vmem:[%s1 + $0x24] sm:$0xf]
  %v153 = vld [vmem:[%s1 + $0x28] sm:$0xf]
  %v154 = vld [vmem:[%s1 + $0x2c] sm:$0xf]
  %v155 = vld [vmem:[%s1 + $0x30] sm:$0xf]
  %v156 = vld [vmem:[%s1 + $0x34] sm:$0xf]
  %v157 = vld [vmem:[%s1 + $0x38] sm:$0xf]
  %v158 = vld [vmem:[%s1 + $0x3c] sm:$0xf]
  %v159 = vld [vmem:[%s1 + $0x40] sm:$0xf]
  %v160 = vld [vmem:[%s1 + $0x44] sm:$0xf]
  %v161 = vld [vmem:[%s1 + $0x48] sm:$0xf]
  %v162 = vld [vmem:[%s1 + $0x4c] sm:$0xf]
  %v163 = vld [vmem:[%s1 + $0x50] sm:$0xf]
  %v164 = vld [vmem:[%s1 + $0x54] sm:$0xf]
  %v165 = vld [vmem:[%s1 + $0x58] sm:$0xf]
  %v166 = vld [vmem:[%s1 + $0x5c] sm:$0xf]
  %v167 = vld [vmem:[%s1 + $0x60] sm:$0xf]
  %v168 = vld [vmem:[%s1 + $0x64] sm:$0xf]
  %v169 = vld [vmem:[%s1 + $0x68] sm:$0xf]
  %v170 = vld [vmem:[%s1 + $0x6c] sm:$0xf]
  %v171 = vld [vmem:[%s1 + $0x70] sm:$0xf]
  %v172 = vld [vmem:[%s1 + $0x74] sm:$0xf]
  %v173 = vld [vmem:[%s1 + $0x78] sm:$0xf]
  %v174 = vld [vmem:[%s1 + $0x7c] sm:$0xf]
  %v175 = vld [vmem:[%s1 + $0x80] sm:$0xf]
  %v176 = vld [vmem:[%s1 + $0x84] sm:$0xf]
  %v177 = vld [vmem:[%s1 + $0x88] sm:$0xf]
  %v178 = vld [vmem:[%s1 + $0x8c] sm:$0xf]
  %v179 = vld [vmem:[%s2] sm:$0x1]
  %v181 = vlaneseq
  %v182 = vshrl.u32 %v181, 7
  %v183 = vsub.s32 0, %v182
  %v184 = vrot.slane %v179, %v183
  %v314 = vunpack.c.l.b16 %v15
  %v315 = vunpack.c.h.b16 %v15
  %v316 = vunpack.c.l.b16 %v16
  %v317 = vunpack.c.l.b16 %v17
  %v318 = vunpack.c.h.b16 %v17
  %v319 = vunpack.c.l.b16 %v18
  %v320 = vunpack.c.l.b16 %v19
  %v321 = vunpack.c.h.b16 %v19
  %v322 = vunpack.c.l.b16 %v20
  %v323 = vunpack.c.l.b16 %v21
  %v324 = vunpack.c.h.b16 %v21
  %v325 = vunpack.c.l.b16 %v22
  %v326 = vunpack.c.l.b16 %v23
  %v327 = vunpack.c.h.b16 %v23
  %v328 = vunpack.c.l.b16 %v24
  %v329 = vunpack.c.l.b16 %v25
  %v330 = vunpack.c.h.b16 %v25
  %v331 = vunpack.c.l.b16 %v26
  %v332 = vunpack.c.l.b16 %v27
  %v333 = vunpack.c.h.b16 %v27
  %v334 = vunpack.c.l.b16 %v28
  %v335 = vunpack.c.l.b16 %v29
  %v336 = vunpack.c.h.b16 %v29
  %v337 = vunpack.c.l.b16 %v30
  %v338 = vunpack.c.l.b16 %v31
  %v339 = vunpack.c.h.b16 %v31
  %v340 = vunpack.c.l.b16 %v32
  %v341 = vunpack.c.l.b16 %v33
  %v342 = vunpack.c.h.b16 %v33
  %v343 = vunpack.c.l.b16 %v34
  %v344 = vunpack.c.l.b16 %v35
  %v345 = vunpack.c.h.b16 %v35
  %v346 = vunpack.c.l.b16 %v36
  %v347 = vunpack.c.l.b16 %v37
  %v348 = vunpack.c.h.b16 %v37
  %v349 = vunpack.c.l.b16 %v38
  %v350 = vunpack.c.l.b16 %v39
  %v351 = vunpack.c.h.b16 %v39
  %v352 = vunpack.c.l.b16 %v40
  %v353 = vunpack.c.l.b16 %v41
  %v354 = vunpack.c.h.b16 %v41
  %v355 = vunpack.c.l.b16 %v42
  %v356 = vunpack.c.l.b16 %v43
  %v357 = vunpack.c.h.b16 %v43
  %v358 = vunpack.c.l.b16 %v44
  %v359 = vunpack.c.l.b16 %v45
  %v360 = vunpack.c.h.b16 %v45
  %v361 = vunpack.c.l.b16 %v46
  %v362 = vunpack.c.l.b16 %v47
  %v363 = vunpack.c.h.b16 %v47
  %v364 = vunpack.c.l.b16 %v48
  %v365 = vunpack.c.l.b16 %v49
  %v366 = vunpack.c.h.b16 %v49
  %v367 = vunpack.c.l.b16 %v50
  %v368 = vunpack.c.l.b16 %v51
  %v369 = vunpack.c.h.b16 %v51
  %v370 = vunpack.c.l.b16 %v52
  %v371 = vunpack.c.l.b16 %v53
  %v372 = vunpack.c.h.b16 %v53
  %v373 = vunpack.c.l.b16 %v54
  %v374 = vunpack.c.l.b16 %v55
  %v375 = vunpack.c.h.b16 %v55
  %v376 = vunpack.c.l.b16 %v56
  %v377 = vunpack.c.l.b16 %v57
  %v378 = vunpack.c.h.b16 %v57
  %v379 = vunpack.c.l.b16 %v58
  %v380 = vunpack.c.l.b16 %v59
  %v381 = vunpack.c.h.b16 %v59
  %v382 = vunpack.c.l.b16 %v60
  %v383 = vunpack.c.l.b16 %v61
  %v384 = vunpack.c.h.b16 %v61
  %v385 = vunpack.c.l.b16 %v62
  %v386 = vunpack.c.l.b16 %v63
  %v387 = vunpack.c.h.b16 %v63
  %v388 = vunpack.c.l.b16 %v64
  %v389 = vunpack.c.l.b16 %v65
  %v390 = vunpack.c.h.b16 %v65
  %v391 = vunpack.c.l.b16 %v66
  %v392 = vunpack.c.l.b16 %v67
  %v393 = vunpack.c.h.b16 %v67
  %v394 = vunpack.c.l.b16 %v68
  %v395 = vunpack.c.l.b16 %v69
  %v396 = vunpack.c.h.b16 %v69
  %v397 = vunpack.c.l.b16 %v70
  %v398 = vunpack.c.l.b16 %v71
  %v399 = vunpack.c.h.b16 %v71
  %v400 = vunpack.c.l.b16 %v72
  %v401 = vunpack.c.l.b16 %v73
  %v402 = vunpack.c.h.b16 %v73
  %v403 = vunpack.c.l.b16 %v74
  %v404 = vunpack.c.l.b16 %v75
  %v405 = vunpack.c.h.b16 %v75
  %v406 = vunpack.c.l.b16 %v76
  %v407 = vunpack.c.l.b16 %v77
  %v408 = vunpack.c.h.b16 %v77
  %v409 = vunpack.c.l.b16 %v78
  %v410 = vunpack.c.l.b16 %v79
  %v411 = vunpack.c.h.b16 %v79
  %v412 = vunpack.c.l.b16 %v80
  %v413 = vunpack.c.l.b16 %v81
  %v414 = vunpack.c.h.b16 %v81
  %v415 = vunpack.c.l.b16 %v82
  %v416 = vunpack.c.l.b16 %v83
  %v417 = vunpack.c.h.b16 %v83
  %v418 = vunpack.c.l.b16 %v84
  %v419 = vunpack.c.l.b16 %v85
  %v420 = vunpack.c.h.b16 %v85
  %v421 = vunpack.c.l.b16 %v86
  %v422 = vunpack.c.l.b16 %v87
  %v423 = vunpack.c.h.b16 %v87
  %v424 = vunpack.c.l.b16 %v88
  %v425 = vunpack.c.l.b16 %v89
  %v426 = vunpack.c.h.b16 %v89
  %v427 = vunpack.c.l.b16 %v90
  %v428 = vunpack.c.l.b16 %v91
  %v429 = vunpack.c.h.b16 %v91
  %v430 = vunpack.c.l.b16 %v92
  %v431 = vunpack.c.l.b16 %v93
  %v432 = vunpack.c.h.b16 %v93
  %v433 = vunpack.c.l.b16 %v94
  %v434 = vunpack.c.l.b16 %v95
  %v435 = vunpack.c.h.b16 %v95
  %v436 = vunpack.c.l.b16 %v96
  %v437 = vunpack.c.l.b16 %v97
  %v438 = vunpack.c.h.b16 %v97
  %v439 = vunpack.c.l.b16 %v98
  %v440 = vunpack.c.l.b16 %v99
  %v441 = vunpack.c.h.b16 %v99
  %v442 = vunpack.c.l.b16 %v100
  %v443 = vunpack.c.l.b16 %v101
  %v444 = vunpack.c.h.b16 %v101
  %v445 = vunpack.c.l.b16 %v102
  %v446 = vunpack.c.l.b16 %v103
  %v447 = vunpack.c.h.b16 %v103
  %v448 = vunpack.c.l.b16 %v104
  %v449 = vunpack.c.l.b16 %v105
  %v450 = vunpack.c.h.b16 %v105
  %v451 = vunpack.c.l.b16 %v106
  %v452 = vunpack.c.l.b16 %v107
  %v453 = vunpack.c.h.b16 %v107
  %v454 = vunpack.c.l.b16 %v108
  %v455 = vunpack.c.l.b16 %v109
  %v456 = vunpack.c.h.b16 %v109
  %v457 = vunpack.c.l.b16 %v110
  %v458 = vunpack.c.l.b16 %v111
  %v459 = vunpack.c.h.b16 %v111
  %v460 = vunpack.c.l.b16 %v112
  %v461 = vunpack.c.l.b16 %v113
  %v462 = vunpack.c.h.b16 %v113
  %v463 = vunpack.c.l.b16 %v114
  %v464 = vunpack.c.l.b16 %v115
  %v465 = vunpack.c.h.b16 %v115
  %v466 = vunpack.c.l.b16 %v116
  %v467 = vunpack.c.l.b16 %v117
  %v468 = vunpack.c.h.b16 %v117
  %v469 = vunpack.c.l.b16 %v118
  %v470 = vunpack.c.l.b16 %v119
  %v471 = vunpack.c.h.b16 %v119
  %v472 = vunpack.c.l.b16 %v120
  %v473 = vunpack.c.l.b16 %v121
  %v474 = vunpack.c.h.b16 %v121
  %v475 = vunpack.c.l.b16 %v122
  %v476 = vunpack.c.l.b16 %v123
  %v477 = vunpack.c.h.b16 %v123
  %v478 = vunpack.c.l.b16 %v124
  %v479 = vunpack.c.l.b16 %v125
  %v480 = vunpack.c.h.b16 %v125
  %v481 = vunpack.c.l.b16 %v126
  %v482 = vunpack.c.l.b16 %v127
  %v483 = vunpack.c.h.b16 %v127
  %v484 = vunpack.c.l.b16 %v128
  %v485 = vunpack.c.l.b16 %v129
  %v486 = vunpack.c.h.b16 %v129
  %v487 = vunpack.c.l.b16 %v130
  %v488 = vunpack.c.l.b16 %v131
  %v489 = vunpack.c.h.b16 %v131
  %v490 = vunpack.c.l.b16 %v132
  %v491 = vunpack.c.l.b16 %v133
  %v492 = vunpack.c.h.b16 %v133
  %v493 = vunpack.c.l.b16 %v134
  %v494 = vunpack.c.l.b16 %v135
  %v495 = vunpack.c.h.b16 %v135
  %v496 = vunpack.c.l.b16 %v136
  %v497 = vunpack.c.l.b16 %v137
  %v498 = vunpack.c.h.b16 %v137
  %v499 = vunpack.c.l.b16 %v138
  %v500 = vunpack.c.l.b16 %v139
  %v501 = vunpack.c.h.b16 %v139
  %v502 = vunpack.c.l.b16 %v140
  %v503 = vunpack.c.l.b16 %v141
  %v504 = vunpack.c.h.b16 %v141
  %v505 = vunpack.c.l.b16 %v142
  %v506 = vpack.c.b16 %v317, %v314
  %v507 = vpack.c.b16 %v318, %v315
  %v508 = vpack.c.b16 %v319, %v316
  %v509 = vpack.c.b16 %v323, %v320
  %v510 = vpack.c.b16 %v324, %v321
  %v511 = vpack.c.b16 %v325, %v322
  %v512 = vpack.c.b16 %v329, %v326
  %v513 = vpack.c.b16 %v330, %v327
  %v514 = vpack.c.b16 %v331, %v328
  %v515 = vpack.c.b16 %v335, %v332
  %v516 = vpack.c.b16 %v336, %v333
  %v517 = vpack.c.b16 %v337, %v334
  %v518 = vpack.c.b16 %v341, %v338
  %v519 = vpack.c.b16 %v342, %v339
  %v520 = vpack.c.b16 %v343, %v340
  %v521 = vpack.c.b16 %v347, %v344
  %v522 = vpack.c.b16 %v348, %v345
  %v523 = vpack.c.b16 %v349, %v346
  %v524 = vpack.c.b16 %v353, %v350
  %v525 = vpack.c.b16 %v354, %v351
  %v526 = vpack.c.b16 %v355, %v352
  %v527 = vpack.c.b16 %v359, %v356
  %v528 = vpack.c.b16 %v360, %v357
  %v529 = vpack.c.b16 %v361, %v358
  %v530 = vpack.c.b16 %v365, %v362
  %v531 = vpack.c.b16 %v366, %v363
  %v532 = vpack.c.b16 %v367, %v364
  %v533 = vpack.c.b16 %v371, %v368
  %v534 = vpack.c.b16 %v372, %v369
  %v535 = vpack.c.b16 %v373, %v370
  %v536 = vpack.c.b16 %v377, %v374
  %v537 = vpack.c.b16 %v378, %v375
  %v538 = vpack.c.b16 %v379, %v376
  %v539 = vpack.c.b16 %v383, %v380
  %v540 = vpack.c.b16 %v384, %v381
  %v541 = vpack.c.b16 %v385, %v382
  %v542 = vpack.c.b16 %v389, %v386
  %v543 = vpack.c.b16 %v390, %v387
  %v544 = vpack.c.b16 %v391, %v388
  %v545 = vpack.c.b16 %v395, %v392
  %v546 = vpack.c.b16 %v396, %v393
  %v547 = vpack.c.b16 %v397, %v394
  %v548 = vpack.c.b16 %v401, %v398
  %v549 = vpack.c.b16 %v402, %v399
  %v550 = vpack.c.b16 %v403, %v400
  %v551 = vpack.c.b16 %v407, %v404
  %v552 = vpack.c.b16 %v408, %v405
  %v553 = vpack.c.b16 %v409, %v406
  %v554 = vpack.c.b16 %v413, %v410
  %v555 = vpack.c.b16 %v414, %v411
  %v556 = vpack.c.b16 %v415, %v412
  %v557 = vpack.c.b16 %v419, %v416
  %v558 = vpack.c.b16 %v420, %v417
  %v559 = vpack.c.b16 %v421, %v418
  %v560 = vpack.c.b16 %v425, %v422
  %v561 = vpack.c.b16 %v426, %v423
  %v562 = vpack.c.b16 %v427, %v424
  %v563 = vpack.c.b16 %v431, %v428
  %v564 = vpack.c.b16 %v432, %v429
  %v565 = vpack.c.b16 %v433, %v430
  %v566 = vpack.c.b16 %v437, %v434
  %v567 = vpack.c.b16 %v438, %v435
  %v568 = vpack.c.b16 %v439, %v436
  %v569 = vpack.c.b16 %v443, %v440
  %v570 = vpack.c.b16 %v444, %v441
  %v571 = vpack.c.b16 %v445, %v442
  %v572 = vpack.c.b16 %v449, %v446
  %v573 = vpack.c.b16 %v450, %v447
  %v574 = vpack.c.b16 %v451, %v448
  %v575 = vpack.c.b16 %v455, %v452
  %v576 = vpack.c.b16 %v456, %v453
  %v577 = vpack.c.b16 %v457, %v454
  %v578 = vpack.c.b16 %v461, %v458
  %v579 = vpack.c.b16 %v462, %v459
  %v580 = vpack.c.b16 %v463, %v460
  %v581 = vpack.c.b16 %v467, %v464
  %v582 = vpack.c.b16 %v468, %v465
  %v583 = vpack.c.b16 %v469, %v466
  %v584 = vpack.c.b16 %v473, %v470
  %v585 = vpack.c.b16 %v474, %v471
  %v586 = vpack.c.b16 %v475, %v472
  %v587 = vpack.c.b16 %v479, %v476
  %v588 = vpack.c.b16 %v480, %v477
  %v589 = vpack.c.b16 %v481, %v478
  %v590 = vpack.c.b16 %v485, %v482
  %v591 = vpack.c.b16 %v486, %v483
  %v592 = vpack.c.b16 %v487, %v484
  %v593 = vpack.c.b16 %v491, %v488
  %v594 = vpack.c.b16 %v492, %v489
  %v595 = vpack.c.b16 %v493, %v490
  %v596 = vpack.c.b16 %v497, %v494
  %v597 = vpack.c.b16 %v498, %v495
  %v598 = vpack.c.b16 %v499, %v496
  %v599 = vpack.c.b16 %v503, %v500
  %v600 = vpack.c.b16 %v504, %v501
  %v601 = vpack.c.b16 %v505, %v502
  %v702 = vunpack.c.l.b16 %v143
  %v703 = vunpack.c.l.b16 %v144
  %v704 = vunpack.c.l.b16 %v145
  %v705 = vunpack.c.l.b16 %v146
  %v706 = vunpack.c.l.b16 %v147
  %v707 = vunpack.c.l.b16 %v148
  %v708 = vunpack.c.l.b16 %v149
  %v709 = vunpack.c.l.b16 %v150
  %v710 = vunpack.c.l.b16 %v151
  %v711 = vunpack.c.l.b16 %v152
  %v712 = vunpack.c.l.b16 %v153
  %v713 = vunpack.c.l.b16 %v154
  %v714 = vunpack.c.l.b16 %v155
  %v715 = vunpack.c.l.b16 %v156
  %v716 = vunpack.c.l.b16 %v157
  %v717 = vunpack.c.l.b16 %v158
  %v718 = vunpack.c.l.b16 %v159
  %v719 = vunpack.c.l.b16 %v160
  %v720 = vunpack.c.l.b16 %v161
  %v721 = vunpack.c.l.b16 %v162
  %v722 = vunpack.c.l.b16 %v163
  %v723 = vunpack.c.l.b16 %v164
  %v724 = vunpack.c.l.b16 %v165
  %v725 = vunpack.c.l.b16 %v166
  %v726 = vunpack.c.l.b16 %v167
  %v727 = vunpack.c.l.b16 %v168
  %v728 = vunpack.c.l.b16 %v169
  %v729 = vunpack.c.l.b16 %v170
  %v730 = vunpack.c.l.b16 %v171
  %v731 = vunpack.c.l.b16 %v172
  %v732 = vunpack.c.l.b16 %v173
  %v733 = vunpack.c.l.b16 %v174
  %v734 = vunpack.c.l.b16 %v175
  %v735 = vunpack.c.l.b16 %v176
  %v736 = vunpack.c.l.b16 %v177
  %v737 = vunpack.c.l.b16 %v178
  %v738 = vpack.c.b16 %v703, %v702
  %v739 = vpack.c.b16 %v705, %v704
  %v740 = vpack.c.b16 %v707, %v706
  %v741 = vpack.c.b16 %v709, %v708
  %v742 = vpack.c.b16 %v711, %v710
  %v743 = vpack.c.b16 %v713, %v712
  %v744 = vpack.c.b16 %v715, %v714
  %v745 = vpack.c.b16 %v717, %v716
  %v746 = vpack.c.b16 %v719, %v718
  %v747 = vpack.c.b16 %v721, %v720
  %v748 = vpack.c.b16 %v723, %v722
  %v749 = vpack.c.b16 %v725, %v724
  %v750 = vpack.c.b16 %v727, %v726
  %v751 = vpack.c.b16 %v729, %v728
  %v752 = vpack.c.b16 %v731, %v730
  %v753 = vpack.c.b16 %v733, %v732
  %v754 = vpack.c.b16 %v735, %v734
  %v755 = vpack.c.b16 %v737, %v736
  %vm774 = vcmask 261120
  %v776 = vsel %vm774, %v508, 0
  %v779 = vsel %vm774, %v511, 0
  %v782 = vsel %vm774, %v514, 0
  %v785 = vsel %vm774, %v517, 0
  %v788 = vsel %vm774, %v520, 0
  %v791 = vsel %vm774, %v523, 0
  %v794 = vsel %vm774, %v526, 0
  %v797 = vsel %vm774, %v529, 0
  %v800 = vsel %vm774, %v532, 0
  %v803 = vsel %vm774, %v535, 0
  %v806 = vsel %vm774, %v538, 0
  %v809 = vsel %vm774, %v541, 0
  %v812 = vsel %vm774, %v544, 0
  %v815 = vsel %vm774, %v547, 0
  %v818 = vsel %vm774, %v550, 0
  %v821 = vsel %vm774, %v553, 0
  %v824 = vsel %vm774, %v556, 0
  %v827 = vsel %vm774, %v559, 0
  %v830 = vsel %vm774, %v562, 0
  %v833 = vsel %vm774, %v565, 0
  %v836 = vsel %vm774, %v568, 0
  %v839 = vsel %vm774, %v571, 0
  %v842 = vsel %vm774, %v574, 0
  %v845 = vsel %vm774, %v577, 0
  %v848 = vsel %vm774, %v580, 0
  %v851 = vsel %vm774, %v583, 0
  %v854 = vsel %vm774, %v586, 0
  %v857 = vsel %vm774, %v589, 0
  %v860 = vsel %vm774, %v592, 0
  %v863 = vsel %vm774, %v595, 0
  %v866 = vsel %vm774, %v598, 0
  %v869 = vsel %vm774, %v601, 0
  %871 = vmatprep.subr.bf16.mxu0 0
  %872 = vmatpush1.bf16.msra.mxu0 %v738
  %873 = vmatprep.subr.bf16.mxu0 0
  %874 = vmatpush1.bf16.msra.mxu0 %v739
  %875 = vmatprep.subr.bf16.mxu0 0
  %876 = vmatpush1.bf16.msra.mxu0 %v740
  %877 = vmatprep.subr.bf16.mxu0 0
  %878 = vmatpush1.bf16.msra.mxu0 %v741
  %879 = vmatprep.subr.bf16.mxu0 0
  %880 = vmatpush1.bf16.msra.mxu0 %v742
  %881 = vmatprep.subr.bf16.mxu0 0
  %882 = vmatpush1.bf16.msra.mxu0 %v743
  %883 = vmatprep.subr.bf16.mxu0 0
  %884 = vmatpush1.bf16.msra.mxu0 %v744
  %885 = vmatprep.subr.bf16.mxu0 0
  %886 = vmatpush1.bf16.msra.mxu0 %v745
  %887 = vmatprep.subr.bf16.mxu0 0
  %888 = vmatpush1.bf16.msra.mxu0 %v746
  %889 = vmatprep.subr.bf16.mxu0 0
  %890 = vmatpush1.bf16.msra.mxu0 %v747
  %891 = vmatprep.subr.bf16.mxu0 0
  %892 = vmatpush1.bf16.msra.mxu0 %v748
  %893 = vmatprep.subr.bf16.mxu0 0
  %894 = vmatpush1.bf16.msra.mxu0 %v749
  %895 = vmatprep.subr.bf16.mxu0 0
  %896 = vmatpush1.bf16.msra.mxu0 %v750
  %897 = vmatprep.subr.bf16.mxu0 0
  %898 = vmatpush1.bf16.msra.mxu0 %v751
  %899 = vmatprep.subr.bf16.mxu0 0
  %900 = vmatpush1.bf16.msra.mxu0 %v752
  %901 = vmatprep.subr.bf16.mxu0 0
  %902 = vmatpush1.bf16.msra.mxu0 %v753
  %903 = vmatprep.mubr.bf16.mxu0 %v507
  %904 = vmatmul.mubr.bf16.gmra.mrb[0].mxu0 %v506
  %v905 = vpop.f32.mrb[0].mxu0
  %v906 = vadd.f32 %v184, %v905
  %v907 = vpop.f32.mrb[0].mxu0
  %v908 = vpop.f32.mrb[0].mxu0
  %v909 = vadd.f32 %v184, %v908
  %v910 = vpop.f32.mrb[0].mxu0
  %911 = vmatprep.mubr.bf16.mxu0 %v510
  %912 = vmatmul.mubr.bf16.gmra.mrb[0].mxu0 %v509
  %v913 = vpop.f32.mrb[0].mxu0
  %v914 = vadd.f32 %v184, %v913
  %v915 = vpop.f32.mrb[0].mxu0
  %v916 = vpop.f32.mrb[0].mxu0
  %v917 = vadd.f32 %v184, %v916
  %v918 = vpop.f32.mrb[0].mxu0
  %919 = vmatprep.mubr.bf16.mxu0 %v513
  %920 = vmatmul.mubr.bf16.gmra.mrb[0].mxu0 %v512
  %v921 = vpop.f32.mrb[0].mxu0
  %v922 = vadd.f32 %v184, %v921
  %v923 = vpop.f32.mrb[0].mxu0
  %v924 = vpop.f32.mrb[0].mxu0
  %v925 = vadd.f32 %v184, %v924
  %v926 = vpop.f32.mrb[0].mxu0
  %927 = vmatprep.mubr.bf16.mxu0 %v516
  %928 = vmatmul.mubr.bf16.gmra.mrb[0].mxu0 %v515
  %v929 = vpop.f32.mrb[0].mxu0
  %v930 = vadd.f32 %v184, %v929
  %v931 = vpop.f32.mrb[0].mxu0
  %v932 = vpop.f32.mrb[0].mxu0
  %v933 = vadd.f32 %v184, %v932
  %v934 = vpop.f32.mrb[0].mxu0
  %935 = vmatprep.mubr.bf16.mxu0 %v519
  %936 = vmatmul.mubr.bf16.gmra.mrb[0].mxu0 %v518
  %v937 = vpop.f32.mrb[0].mxu0
  %v938 = vadd.f32 %v184, %v937
  %v939 = vpop.f32.mrb[0].mxu0
  %v940 = vpop.f32.mrb[0].mxu0
  %v941 = vadd.f32 %v184, %v940
  %v942 = vpop.f32.mrb[0].mxu0
  %943 = vmatprep.mubr.bf16.mxu0 %v522
  %944 = vmatmul.mubr.bf16.gmra.mrb[0].mxu0 %v521
  %v945 = vpop.f32.mrb[0].mxu0
  %v946 = vadd.f32 %v184, %v945
  %v947 = vpop.f32.mrb[0].mxu0
  %v948 = vpop.f32.mrb[0].mxu0
  %v949 = vadd.f32 %v184, %v948
  %v950 = vpop.f32.mrb[0].mxu0
  %951 = vmatprep.mubr.bf16.mxu0 %v525
  %952 = vmatmul.mubr.bf16.gmra.mrb[0].mxu0 %v524
  %v953 = vpop.f32.mrb[0].mxu0
  %v954 = vadd.f32 %v184, %v953
  %v955 = vpop.f32.mrb[0].mxu0
  %v956 = vpop.f32.mrb[0].mxu0
  %v957 = vadd.f32 %v184, %v956
  %v958 = vpop.f32.mrb[0].mxu0
  %959 = vmatprep.mubr.bf16.mxu0 %v528
  %960 = vmatmul.mubr.bf16.gmra.mrb[0].mxu0 %v527
  %v961 = vpop.f32.mrb[0].mxu0
  %v962 = vadd.f32 %v184, %v961
  %v963 = vpop.f32.mrb[0].mxu0
  %v964 = vpop.f32.mrb[0].mxu0
  %v965 = vadd.f32 %v184, %v964
  %v966 = vpop.f32.mrb[0].mxu0
  %967 = vmatprep.mubr.bf16.mxu0 %v531
  %968 = vmatmul.mubr.bf16.gmra.mrb[0].mxu0 %v530
  %v969 = vpop.f32.mrb[0].mxu0
  %v970 = vadd.f32 %v184, %v969
  %v971 = vpop.f32.mrb[0].mxu0
  %v972 = vpop.f32.mrb[0].mxu0
  %v973 = vadd.f32 %v184, %v972
  %v974 = vpop.f32.mrb[0].mxu0
  %975 = vmatprep.mubr.bf16.mxu0 %v534
  %976 = vmatmul.mubr.bf16.gmra.mrb[0].mxu0 %v533
  %v977 = vpop.f32.mrb[0].mxu0
  %v978 = vadd.f32 %v184, %v977
  %v979 = vpop.f32.mrb[0].mxu0
  %v980 = vpop.f32.mrb[0].mxu0
  %v981 = vadd.f32 %v184, %v980
  %v982 = vpop.f32.mrb[0].mxu0
  %983 = vmatprep.mubr.bf16.mxu0 %v537
  %984 = vmatmul.mubr.bf16.gmra.mrb[0].mxu0 %v536
  %v985 = vpop.f32.mrb[0].mxu0
  %v986 = vadd.f32 %v184, %v985
  %v987 = vpop.f32.mrb[0].mxu0
  %v988 = vpop.f32.mrb[0].mxu0
  %v989 = vadd.f32 %v184, %v988
  %v990 = vpop.f32.mrb[0].mxu0
  %991 = vmatprep.mubr.bf16.mxu0 %v540
  %992 = vmatmul.mubr.bf16.gmra.mrb[0].mxu0 %v539
  %v993 = vpop.f32.mrb[0].mxu0
  %v994 = vadd.f32 %v184, %v993
  %v995 = vpop.f32.mrb[0].mxu0
  %v996 = vpop.f32.mrb[0].mxu0
  %v997 = vadd.f32 %v184, %v996
  %v998 = vpop.f32.mrb[0].mxu0
  %999 = vmatprep.mubr.bf16.mxu0 %v543
  %1000 = vmatmul.mubr.bf16.gmra.mrb[0].mxu0 %v542
  %v1001 = vpop.f32.mrb[0].mxu0
  %v1002 = vadd.f32 %v184, %v1001
  %v1003 = vpop.f32.mrb[0].mxu0
  %v1004 = vpop.f32.mrb[0].mxu0
  %v1005 = vadd.f32 %v184, %v1004
  %v1006 = vpop.f32.mrb[0].mxu0
  %1007 = vmatprep.mubr.bf16.mxu0 %v546
  %1008 = vmatmul.mubr.bf16.gmra.mrb[0].mxu0 %v545
  %v1009 = vpop.f32.mrb[0].mxu0
  %v1010 = vadd.f32 %v184, %v1009
  %v1011 = vpop.f32.mrb[0].mxu0
  %v1012 = vpop.f32.mrb[0].mxu0
  %v1013 = vadd.f32 %v184, %v1012
  %v1014 = vpop.f32.mrb[0].mxu0
  %1015 = vmatprep.mubr.bf16.mxu0 %v549
  %1016 = vmatmul.mubr.bf16.gmra.mrb[0].mxu0 %v548
  %v1017 = vpop.f32.mrb[0].mxu0
  %v1018 = vadd.f32 %v184, %v1017
  %v1019 = vpop.f32.mrb[0].mxu0
  %v1020 = vpop.f32.mrb[0].mxu0
  %v1021 = vadd.f32 %v184, %v1020
  %v1022 = vpop.f32.mrb[0].mxu0
  %1023 = vmatprep.mubr.bf16.mxu0 %v552
  %1024 = vmatmul.mubr.bf16.gmra.mrb[0].mxu0 %v551
  %v1025 = vpop.f32.mrb[0].mxu0
  %v1026 = vadd.f32 %v184, %v1025
  %v1027 = vpop.f32.mrb[0].mxu0
  %v1028 = vpop.f32.mrb[0].mxu0
  %v1029 = vadd.f32 %v184, %v1028
  %v1030 = vpop.f32.mrb[0].mxu0
  %1031 = vmatprep.mubr.bf16.mxu0 %v555
  %1032 = vmatmul.mubr.bf16.gmra.mrb[0].mxu0 %v554
  %v1033 = vpop.f32.mrb[0].mxu0
  %v1034 = vadd.f32 %v184, %v1033
  %v1035 = vpop.f32.mrb[0].mxu0
  %v1036 = vpop.f32.mrb[0].mxu0
  %v1037 = vadd.f32 %v184, %v1036
  %v1038 = vpop.f32.mrb[0].mxu0
  %1039 = vmatprep.mubr.bf16.mxu0 %v558
  %1040 = vmatmul.mubr.bf16.gmra.mrb[0].mxu0 %v557
  %v1041 = vpop.f32.mrb[0].mxu0
  %v1042 = vadd.f32 %v184, %v1041
  %v1043 = vpop.f32.mrb[0].mxu0
  %v1044 = vpop.f32.mrb[0].mxu0
  %v1045 = vadd.f32 %v184, %v1044
  %v1046 = vpop.f32.mrb[0].mxu0
  %1047 = vmatprep.mubr.bf16.mxu0 %v561
  %1048 = vmatmul.mubr.bf16.gmra.mrb[0].mxu0 %v560
  %v1049 = vpop.f32.mrb[0].mxu0
  %v1050 = vadd.f32 %v184, %v1049
  %v1051 = vpop.f32.mrb[0].mxu0
  %v1052 = vpop.f32.mrb[0].mxu0
  %v1053 = vadd.f32 %v184, %v1052
  %v1054 = vpop.f32.mrb[0].mxu0
  %1055 = vmatprep.mubr.bf16.mxu0 %v564
  %1056 = vmatmul.mubr.bf16.gmra.mrb[0].mxu0 %v563
  %v1057 = vpop.f32.mrb[0].mxu0
  %v1058 = vadd.f32 %v184, %v1057
  %v1059 = vpop.f32.mrb[0].mxu0
  %v1060 = vpop.f32.mrb[0].mxu0
  %v1061 = vadd.f32 %v184, %v1060
  %v1062 = vpop.f32.mrb[0].mxu0
  %1063 = vmatprep.mubr.bf16.mxu0 %v567
  %1064 = vmatmul.mubr.bf16.gmra.mrb[0].mxu0 %v566
  %v1065 = vpop.f32.mrb[0].mxu0
  %v1066 = vadd.f32 %v184, %v1065
  %v1067 = vpop.f32.mrb[0].mxu0
  %v1068 = vpop.f32.mrb[0].mxu0
  %v1069 = vadd.f32 %v184, %v1068
  %v1070 = vpop.f32.mrb[0].mxu0
  %1071 = vmatprep.mubr.bf16.mxu0 %v570
  %1072 = vmatmul.mubr.bf16.gmra.mrb[0].mxu0 %v569
  %v1073 = vpop.f32.mrb[0].mxu0
  %v1074 = vadd.f32 %v184, %v1073
  %v1075 = vpop.f32.mrb[0].mxu0
  %v1076 = vpop.f32.mrb[0].mxu0
  %v1077 = vadd.f32 %v184, %v1076
  %v1078 = vpop.f32.mrb[0].mxu0
  %1079 = vmatprep.mubr.bf16.mxu0 %v573
  %1080 = vmatmul.mubr.bf16.gmra.mrb[0].mxu0 %v572
  %v1081 = vpop.f32.mrb[0].mxu0
  %v1082 = vadd.f32 %v184, %v1081
  %v1083 = vpop.f32.mrb[0].mxu0
  %v1084 = vpop.f32.mrb[0].mxu0
  %v1085 = vadd.f32 %v184, %v1084
  %v1086 = vpop.f32.mrb[0].mxu0
  %1087 = vmatprep.mubr.bf16.mxu0 %v576
  %1088 = vmatmul.mubr.bf16.gmra.mrb[0].mxu0 %v575
  %v1089 = vpop.f32.mrb[0].mxu0
  %v1090 = vadd.f32 %v184, %v1089
  %v1091 = vpop.f32.mrb[0].mxu0
  %v1092 = vpop.f32.mrb[0].mxu0
  %v1093 = vadd.f32 %v184, %v1092
  %v1094 = vpop.f32.mrb[0].mxu0
  %1095 = vmatprep.mubr.bf16.mxu0 %v579
  %1096 = vmatmul.mubr.bf16.gmra.mrb[0].mxu0 %v578
  %v1097 = vpop.f32.mrb[0].mxu0
  %v1098 = vadd.f32 %v184, %v1097
  %v1099 = vpop.f32.mrb[0].mxu0
  %v1100 = vpop.f32.mrb[0].mxu0
  %v1101 = vadd.f32 %v184, %v1100
  %v1102 = vpop.f32.mrb[0].mxu0
  %1103 = vmatprep.mubr.bf16.mxu0 %v582
  %1104 = vmatmul.mubr.bf16.gmra.mrb[0].mxu0 %v581
  %v1105 = vpop.f32.mrb[0].mxu0
  %v1106 = vadd.f32 %v184, %v1105
  %v1107 = vpop.f32.mrb[0].mxu0
  %v1108 = vpop.f32.mrb[0].mxu0
  %v1109 = vadd.f32 %v184, %v1108
  %v1110 = vpop.f32.mrb[0].mxu0
  %1111 = vmatprep.mubr.bf16.mxu0 %v585
  %1112 = vmatmul.mubr.bf16.gmra.mrb[0].mxu0 %v584
  %v1113 = vpop.f32.mrb[0].mxu0
  %v1114 = vadd.f32 %v184, %v1113
  %v1115 = vpop.f32.mrb[0].mxu0
  %v1116 = vpop.f32.mrb[0].mxu0
  %v1117 = vadd.f32 %v184, %v1116
  %v1118 = vpop.f32.mrb[0].mxu0
  %1119 = vmatprep.mubr.bf16.mxu0 %v588
  %1120 = vmatmul.mubr.bf16.gmra.mrb[0].mxu0 %v587
  %v1121 = vpop.f32.mrb[0].mxu0
  %v1122 = vadd.f32 %v184, %v1121
  %v1123 = vpop.f32.mrb[0].mxu0
  %v1124 = vpop.f32.mrb[0].mxu0
  %v1125 = vadd.f32 %v184, %v1124
  %v1126 = vpop.f32.mrb[0].mxu0
  %1127 = vmatprep.mubr.bf16.mxu0 %v591
  %1128 = vmatmul.mubr.bf16.gmra.mrb[0].mxu0 %v590
  %v1129 = vpop.f32.mrb[0].mxu0
  %v1130 = vadd.f32 %v184, %v1129
  %v1131 = vpop.f32.mrb[0].mxu0
  %v1132 = vpop.f32.mrb[0].mxu0
  %v1133 = vadd.f32 %v184, %v1132
  %v1134 = vpop.f32.mrb[0].mxu0
  %1135 = vmatprep.mubr.bf16.mxu0 %v594
  %1136 = vmatmul.mubr.bf16.gmra.mrb[0].mxu0 %v593
  %v1137 = vpop.f32.mrb[0].mxu0
  %v1138 = vadd.f32 %v184, %v1137
  %v1139 = vpop.f32.mrb[0].mxu0
  %v1140 = vpop.f32.mrb[0].mxu0
  %v1141 = vadd.f32 %v184, %v1140
  %v1142 = vpop.f32.mrb[0].mxu0
  %1143 = vmatprep.mubr.bf16.mxu0 %v597
  %1144 = vmatmul.mubr.bf16.gmra.mrb[0].mxu0 %v596
  %v1145 = vpop.f32.mrb[0].mxu0
  %v1146 = vadd.f32 %v184, %v1145
  %v1147 = vpop.f32.mrb[0].mxu0
  %v1148 = vpop.f32.mrb[0].mxu0
  %v1149 = vadd.f32 %v184, %v1148
  %v1150 = vpop.f32.mrb[0].mxu0
  %1151 = vmatprep.mubr.bf16.mxu0 %v600
  %1152 = vmatmul.mubr.bf16.gmra.mrb[0].mxu0 %v599
  %v1153 = vpop.f32.mrb[0].mxu0
  %v1154 = vadd.f32 %v184, %v1153
  %v1155 = vpop.f32.mrb[0].mxu0
  %v1156 = vpop.f32.mrb[0].mxu0
  %v1157 = vadd.f32 %v184, %v1156
  %v1158 = vpop.f32.mrb[0].mxu0
  %1159 = vdwg.mxu0
  %1160 = vmatprep.subr.bf16.mxu0 0
  %1161 = vmatpush1.bf16.msra.mxu0 %v754
  %1162 = vmatprep.subr.bf16.mxu0 0
  %1163 = vmatpush1.bf16.msra.mxu0 %v755
  %1164 = vmatprep.subr.bf16.mxu0 0
  %1165 = vmatpush1.bf16.msra.mxu0 0
  %1166 = vmatprep.subr.bf16.mxu0 0
  %1167 = vmatpush1.bf16.msra.mxu0 0
  %1168 = vmatprep.subr.bf16.mxu0 0
  %1169 = vmatpush1.bf16.msra.mxu0 0
  %1170 = vmatprep.subr.bf16.mxu0 0
  %1171 = vmatpush1.bf16.msra.mxu0 0
  %1172 = vmatprep.subr.bf16.mxu0 0
  %1173 = vmatpush1.bf16.msra.mxu0 0
  %1174 = vmatprep.subr.bf16.mxu0 0
  %1175 = vmatpush1.bf16.msra.mxu0 0
  %1176 = vmatprep.subr.bf16.mxu0 0
  %1177 = vmatpush1.bf16.msra.mxu0 0
  %1178 = vmatprep.subr.bf16.mxu0 0
  %1179 = vmatpush1.bf16.msra.mxu0 0
  %1180 = vmatprep.subr.bf16.mxu0 0
  %1181 = vmatpush1.bf16.msra.mxu0 0
  %1182 = vmatprep.subr.bf16.mxu0 0
  %1183 = vmatpush1.bf16.msra.mxu0 0
  %1184 = vmatprep.subr.bf16.mxu0 0
  %1185 = vmatpush1.bf16.msra.mxu0 0
  %1186 = vmatprep.subr.bf16.mxu0 0
  %1187 = vmatpush1.bf16.msra.mxu0 0
  %1188 = vmatprep.subr.bf16.mxu0 0
  %1189 = vmatpush1.bf16.msra.mxu0 0
  %1190 = vmatprep.subr.bf16.mxu0 0
  %1191 = vmatpush1.bf16.msra.mxu0 0
  %1192 = vmatprep.mubr.bf16.mxu0 0
  %1193 = vmatmul.mubr.bf16.gmra.mrb[0].mxu0 %v776
  %v1194 = vpop.f32.mrb[0].mxu0
  %v1195 = vadd.f32 %v906, %v1194
  %v1196 = vpop.f32.mrb[0].mxu0
  %v1197 = vpop.f32.mrb[0].mxu0
  %v1198 = vadd.f32 %v909, %v1197
  %v1199 = vpop.f32.mrb[0].mxu0
  %1200 = vmatprep.mubr.bf16.mxu0 0
  %1201 = vmatmul.mubr.bf16.gmra.mrb[0].mxu0 %v779
  %v1202 = vpop.f32.mrb[0].mxu0
  %v1203 = vadd.f32 %v914, %v1202
  %v1204 = vpop.f32.mrb[0].mxu0
  %v1205 = vpop.f32.mrb[0].mxu0
  %v1206 = vadd.f32 %v917, %v1205
  %v1207 = vpop.f32.mrb[0].mxu0
  %1208 = vmatprep.mubr.bf16.mxu0 0
  %1209 = vmatmul.mubr.bf16.gmra.mrb[0].mxu0 %v782
  %v1210 = vpop.f32.mrb[0].mxu0
  %v1211 = vadd.f32 %v922, %v1210
  %v1212 = vpop.f32.mrb[0].mxu0
  %v1213 = vpop.f32.mrb[0].mxu0
  %v1214 = vadd.f32 %v925, %v1213
  %v1215 = vpop.f32.mrb[0].mxu0
  %1216 = vmatprep.mubr.bf16.mxu0 0
  %1217 = vmatmul.mubr.bf16.gmra.mrb[0].mxu0 %v785
  %v1218 = vpop.f32.mrb[0].mxu0
  %v1219 = vadd.f32 %v930, %v1218
  %v1220 = vpop.f32.mrb[0].mxu0
  %v1221 = vpop.f32.mrb[0].mxu0
  %v1222 = vadd.f32 %v933, %v1221
  %v1223 = vpop.f32.mrb[0].mxu0
  %1224 = vmatprep.mubr.bf16.mxu0 0
  %1225 = vmatmul.mubr.bf16.gmra.mrb[0].mxu0 %v788
  %v1226 = vpop.f32.mrb[0].mxu0
  %v1227 = vadd.f32 %v938, %v1226
  %v1228 = vpop.f32.mrb[0].mxu0
  %v1229 = vpop.f32.mrb[0].mxu0
  %v1230 = vadd.f32 %v941, %v1229
  %v1231 = vpop.f32.mrb[0].mxu0
  %1232 = vmatprep.mubr.bf16.mxu0 0
  %1233 = vmatmul.mubr.bf16.gmra.mrb[0].mxu0 %v791
  %v1234 = vpop.f32.mrb[0].mxu0
  %v1235 = vadd.f32 %v946, %v1234
  %v1236 = vpop.f32.mrb[0].mxu0
  %v1237 = vpop.f32.mrb[0].mxu0
  %v1238 = vadd.f32 %v949, %v1237
  %v1239 = vpop.f32.mrb[0].mxu0
  %1240 = vmatprep.mubr.bf16.mxu0 0
  %1241 = vmatmul.mubr.bf16.gmra.mrb[0].mxu0 %v794
  %v1242 = vpop.f32.mrb[0].mxu0
  %v1243 = vadd.f32 %v954, %v1242
  %v1244 = vpop.f32.mrb[0].mxu0
  %v1245 = vpop.f32.mrb[0].mxu0
  %v1246 = vadd.f32 %v957, %v1245
  %v1247 = vpop.f32.mrb[0].mxu0
  %1248 = vmatprep.mubr.bf16.mxu0 0
  %1249 = vmatmul.mubr.bf16.gmra.mrb[0].mxu0 %v797
  %v1250 = vpop.f32.mrb[0].mxu0
  %v1251 = vadd.f32 %v962, %v1250
  %v1252 = vpop.f32.mrb[0].mxu0
  %v1253 = vpop.f32.mrb[0].mxu0
  %v1254 = vadd.f32 %v965, %v1253
  %v1255 = vpop.f32.mrb[0].mxu0
  %1256 = vmatprep.mubr.bf16.mxu0 0
  %1257 = vmatmul.mubr.bf16.gmra.mrb[0].mxu0 %v800
  %v1258 = vpop.f32.mrb[0].mxu0
  %v1259 = vadd.f32 %v970, %v1258
  %v1260 = vpop.f32.mrb[0].mxu0
  %v1261 = vpop.f32.mrb[0].mxu0
  %v1262 = vadd.f32 %v973, %v1261
  %v1263 = vpop.f32.mrb[0].mxu0
  %1264 = vmatprep.mubr.bf16.mxu0 0
  %1265 = vmatmul.mubr.bf16.gmra.mrb[0].mxu0 %v803
  %v1266 = vpop.f32.mrb[0].mxu0
  %v1267 = vadd.f32 %v978, %v1266
  %v1268 = vpop.f32.mrb[0].mxu0
  %v1269 = vpop.f32.mrb[0].mxu0
  %v1270 = vadd.f32 %v981, %v1269
  %v1271 = vpop.f32.mrb[0].mxu0
  %1272 = vmatprep.mubr.bf16.mxu0 0
  %1273 = vmatmul.mubr.bf16.gmra.mrb[0].mxu0 %v806
  %v1274 = vpop.f32.mrb[0].mxu0
  %v1275 = vadd.f32 %v986, %v1274
  %v1276 = vpop.f32.mrb[0].mxu0
  %v1277 = vpop.f32.mrb[0].mxu0
  %v1278 = vadd.f32 %v989, %v1277
  %v1279 = vpop.f32.mrb[0].mxu0
  %1280 = vmatprep.mubr.bf16.mxu0 0
  %1281 = vmatmul.mubr.bf16.gmra.mrb[0].mxu0 %v809
  %v1282 = vpop.f32.mrb[0].mxu0
  %v1283 = vadd.f32 %v994, %v1282
  %v1284 = vpop.f32.mrb[0].mxu0
  %v1285 = vpop.f32.mrb[0].mxu0
  %v1286 = vadd.f32 %v997, %v1285
  %v1287 = vpop.f32.mrb[0].mxu0
  %1288 = vmatprep.mubr.bf16.mxu0 0
  %1289 = vmatmul.mubr.bf16.gmra.mrb[0].mxu0 %v812
  %v1290 = vpop.f32.mrb[0].mxu0
  %v1291 = vadd.f32 %v1002, %v1290
  %v1292 = vpop.f32.mrb[0].mxu0
  %v1293 = vpop.f32.mrb[0].mxu0
  %v1294 = vadd.f32 %v1005, %v1293
  %v1295 = vpop.f32.mrb[0].mxu0
  %1296 = vmatprep.mubr.bf16.mxu0 0
  %1297 = vmatmul.mubr.bf16.gmra.mrb[0].mxu0 %v815
  %v1298 = vpop.f32.mrb[0].mxu0
  %v1299 = vadd.f32 %v1010, %v1298
  %v1300 = vpop.f32.mrb[0].mxu0
  %v1301 = vpop.f32.mrb[0].mxu0
  %v1302 = vadd.f32 %v1013, %v1301
  %v1303 = vpop.f32.mrb[0].mxu0
  %1304 = vmatprep.mubr.bf16.mxu0 0
  %1305 = vmatmul.mubr.bf16.gmra.mrb[0].mxu0 %v818
  %v1306 = vpop.f32.mrb[0].mxu0
  %v1307 = vadd.f32 %v1018, %v1306
  %v1308 = vpop.f32.mrb[0].mxu0
  %v1309 = vpop.f32.mrb[0].mxu0
  %v1310 = vadd.f32 %v1021, %v1309
  %v1311 = vpop.f32.mrb[0].mxu0
  %1312 = vmatprep.mubr.bf16.mxu0 0
  %1313 = vmatmul.mubr.bf16.gmra.mrb[0].mxu0 %v821
  %v1314 = vpop.f32.mrb[0].mxu0
  %v1315 = vadd.f32 %v1026, %v1314
  %v1316 = vpop.f32.mrb[0].mxu0
  %v1317 = vpop.f32.mrb[0].mxu0
  %v1318 = vadd.f32 %v1029, %v1317
  %v1319 = vpop.f32.mrb[0].mxu0
  %1320 = vmatprep.mubr.bf16.mxu0 0
  %1321 = vmatmul.mubr.bf16.gmra.mrb[0].mxu0 %v824
  %v1322 = vpop.f32.mrb[0].mxu0
  %v1323 = vadd.f32 %v1034, %v1322
  %v1324 = vpop.f32.mrb[0].mxu0
  %v1325 = vpop.f32.mrb[0].mxu0
  %v1326 = vadd.f32 %v1037, %v1325
  %v1327 = vpop.f32.mrb[0].mxu0
  %1328 = vmatprep.mubr.bf16.mxu0 0
  %1329 = vmatmul.mubr.bf16.gmra.mrb[0].mxu0 %v827
  %v1330 = vpop.f32.mrb[0].mxu0
  %v1331 = vadd.f32 %v1042, %v1330
  %v1332 = vpop.f32.mrb[0].mxu0
  %v1333 = vpop.f32.mrb[0].mxu0
  %v1334 = vadd.f32 %v1045, %v1333
  %v1335 = vpop.f32.mrb[0].mxu0
  %1336 = vmatprep.mubr.bf16.mxu0 0
  %1337 = vmatmul.mubr.bf16.gmra.mrb[0].mxu0 %v830
  %v1338 = vpop.f32.mrb[0].mxu0
  %v1339 = vadd.f32 %v1050, %v1338
  %v1340 = vpop.f32.mrb[0].mxu0
  %v1341 = vpop.f32.mrb[0].mxu0
  %v1342 = vadd.f32 %v1053, %v1341
  %v1343 = vpop.f32.mrb[0].mxu0
  %1344 = vmatprep.mubr.bf16.mxu0 0
  %1345 = vmatmul.mubr.bf16.gmra.mrb[0].mxu0 %v833
  %v1346 = vpop.f32.mrb[0].mxu0
  %v1347 = vadd.f32 %v1058, %v1346
  %v1348 = vpop.f32.mrb[0].mxu0
  %v1349 = vpop.f32.mrb[0].mxu0
  %v1350 = vadd.f32 %v1061, %v1349
  %v1351 = vpop.f32.mrb[0].mxu0
  %1352 = vmatprep.mubr.bf16.mxu0 0
  %1353 = vmatmul.mubr.bf16.gmra.mrb[0].mxu0 %v836
  %v1354 = vpop.f32.mrb[0].mxu0
  %v1355 = vadd.f32 %v1066, %v1354
  %v1356 = vpop.f32.mrb[0].mxu0
  %v1357 = vpop.f32.mrb[0].mxu0
  %v1358 = vadd.f32 %v1069, %v1357
  %v1359 = vpop.f32.mrb[0].mxu0
  %1360 = vmatprep.mubr.bf16.mxu0 0
  %1361 = vmatmul.mubr.bf16.gmra.mrb[0].mxu0 %v839
  %v1362 = vpop.f32.mrb[0].mxu0
  %v1363 = vadd.f32 %v1074, %v1362
  %v1364 = vpop.f32.mrb[0].mxu0
  %v1365 = vpop.f32.mrb[0].mxu0
  %v1366 = vadd.f32 %v1077, %v1365
  %v1367 = vpop.f32.mrb[0].mxu0
  %1368 = vmatprep.mubr.bf16.mxu0 0
  %1369 = vmatmul.mubr.bf16.gmra.mrb[0].mxu0 %v842
  %v1370 = vpop.f32.mrb[0].mxu0
  %v1371 = vadd.f32 %v1082, %v1370
  %v1372 = vpop.f32.mrb[0].mxu0
  %v1373 = vpop.f32.mrb[0].mxu0
  %v1374 = vadd.f32 %v1085, %v1373
  %v1375 = vpop.f32.mrb[0].mxu0
  %1376 = vmatprep.mubr.bf16.mxu0 0
  %1377 = vmatmul.mubr.bf16.gmra.mrb[0].mxu0 %v845
  %v1378 = vpop.f32.mrb[0].mxu0
  %v1379 = vadd.f32 %v1090, %v1378
  %v1380 = vpop.f32.mrb[0].mxu0
  %v1381 = vpop.f32.mrb[0].mxu0
  %v1382 = vadd.f32 %v1093, %v1381
  %v1383 = vpop.f32.mrb[0].mxu0
  %1384 = vmatprep.mubr.bf16.mxu0 0
  %1385 = vmatmul.mubr.bf16.gmra.mrb[0].mxu0 %v848
  %v1386 = vpop.f32.mrb[0].mxu0
  %v1387 = vadd.f32 %v1098, %v1386
  %v1388 = vpop.f32.mrb[0].mxu0
  %v1389 = vpop.f32.mrb[0].mxu0
  %v1390 = vadd.f32 %v1101, %v1389
  %v1391 = vpop.f32.mrb[0].mxu0
  %1392 = vmatprep.mubr.bf16.mxu0 0
  %1393 = vmatmul.mubr.bf16.gmra.mrb[0].mxu0 %v851
  %v1394 = vpop.f32.mrb[0].mxu0
  %v1395 = vadd.f32 %v1106, %v1394
  %v1396 = vpop.f32.mrb[0].mxu0
  %v1397 = vpop.f32.mrb[0].mxu0
  %v1398 = vadd.f32 %v1109, %v1397
  %v1399 = vpop.f32.mrb[0].mxu0
  %1400 = vmatprep.mubr.bf16.mxu0 0
  %1401 = vmatmul.mubr.bf16.gmra.mrb[0].mxu0 %v854
  %v1402 = vpop.f32.mrb[0].mxu0
  %v1403 = vadd.f32 %v1114, %v1402
  %v1404 = vpop.f32.mrb[0].mxu0
  %v1405 = vpop.f32.mrb[0].mxu0
  %v1406 = vadd.f32 %v1117, %v1405
  %v1407 = vpop.f32.mrb[0].mxu0
  %1408 = vmatprep.mubr.bf16.mxu0 0
  %1409 = vmatmul.mubr.bf16.gmra.mrb[0].mxu0 %v857
  %v1410 = vpop.f32.mrb[0].mxu0
  %v1411 = vadd.f32 %v1122, %v1410
  %v1412 = vpop.f32.mrb[0].mxu0
  %v1413 = vpop.f32.mrb[0].mxu0
  %v1414 = vadd.f32 %v1125, %v1413
  %v1415 = vpop.f32.mrb[0].mxu0
  %1416 = vmatprep.mubr.bf16.mxu0 0
  %1417 = vmatmul.mubr.bf16.gmra.mrb[0].mxu0 %v860
  %v1418 = vpop.f32.mrb[0].mxu0
  %v1419 = vadd.f32 %v1130, %v1418
  %v1420 = vpop.f32.mrb[0].mxu0
  %v1421 = vpop.f32.mrb[0].mxu0
  %v1422 = vadd.f32 %v1133, %v1421
  %v1423 = vpop.f32.mrb[0].mxu0
  %1424 = vmatprep.mubr.bf16.mxu0 0
  %1425 = vmatmul.mubr.bf16.gmra.mrb[0].mxu0 %v863
  %v1426 = vpop.f32.mrb[0].mxu0
  %v1427 = vadd.f32 %v1138, %v1426
  %v1428 = vpop.f32.mrb[0].mxu0
  %v1429 = vpop.f32.mrb[0].mxu0
  %v1430 = vadd.f32 %v1141, %v1429
  %v1431 = vpop.f32.mrb[0].mxu0
  %1432 = vmatprep.mubr.bf16.mxu0 0
  %1433 = vmatmul.mubr.bf16.gmra.mrb[0].mxu0 %v866
  %v1434 = vpop.f32.mrb[0].mxu0
  %v1435 = vadd.f32 %v1146, %v1434
  %v1436 = vpop.f32.mrb[0].mxu0
  %v1437 = vpop.f32.mrb[0].mxu0
  %v1438 = vadd.f32 %v1149, %v1437
  %v1439 = vpop.f32.mrb[0].mxu0
  %1440 = vmatprep.mubr.bf16.mxu0 0
  %1441 = vmatmul.mubr.bf16.gmra.mrb[0].mxu0 %v869
  %v1442 = vpop.f32.mrb[0].mxu0
  %v1443 = vadd.f32 %v1154, %v1442
  %v1444 = vpop.f32.mrb[0].mxu0
  %v1445 = vpop.f32.mrb[0].mxu0
  %v1446 = vadd.f32 %v1157, %v1445
  %v1447 = vpop.f32.mrb[0].mxu0
  %1448 = vdwg.mxu0
  %v1449 = vtanh.pop %v1195
  %v1450 = vtanh.pop %v1198
  %v1451 = vtanh.pop %v1203
  %v1452 = vtanh.pop %v1206
  %v1453 = vtanh.pop %v1211
  %v1454 = vtanh.pop %v1214
  %v1455 = vtanh.pop %v1219
  %v1456 = vtanh.pop %v1222
  %v1457 = vtanh.pop %v1227
  %v1458 = vtanh.pop %v1230
  %v1459 = vtanh.pop %v1235
  %v1460 = vtanh.pop %v1238
  %v1461 = vtanh.pop %v1243
  %v1462 = vtanh.pop %v1246
  %v1463 = vtanh.pop %v1251
  %v1464 = vtanh.pop %v1254
  %v1465 = vtanh.pop %v1259
  %v1466 = vtanh.pop %v1262
  %v1467 = vtanh.pop %v1267
  %v1468 = vtanh.pop %v1270
  %v1469 = vtanh.pop %v1275
  %v1470 = vtanh.pop %v1278
  %v1471 = vtanh.pop %v1283
  %v1472 = vtanh.pop %v1286
  %v1473 = vtanh.pop %v1291
  %v1474 = vtanh.pop %v1294
  %v1475 = vtanh.pop %v1299
  %v1476 = vtanh.pop %v1302
  %v1477 = vtanh.pop %v1307
  %v1478 = vtanh.pop %v1310
  %v1479 = vtanh.pop %v1315
  %v1480 = vtanh.pop %v1318
  %v1481 = vtanh.pop %v1323
  %v1482 = vtanh.pop %v1326
  %v1483 = vtanh.pop %v1331
  %v1484 = vtanh.pop %v1334
  %v1485 = vtanh.pop %v1339
  %v1486 = vtanh.pop %v1342
  %v1487 = vtanh.pop %v1347
  %v1488 = vtanh.pop %v1350
  %v1489 = vtanh.pop %v1355
  %v1490 = vtanh.pop %v1358
  %v1491 = vtanh.pop %v1363
  %v1492 = vtanh.pop %v1366
  %v1493 = vtanh.pop %v1371
  %v1494 = vtanh.pop %v1374
  %v1495 = vtanh.pop %v1379
  %v1496 = vtanh.pop %v1382
  %v1497 = vtanh.pop %v1387
  %v1498 = vtanh.pop %v1390
  %v1499 = vtanh.pop %v1395
  %v1500 = vtanh.pop %v1398
  %v1501 = vtanh.pop %v1403
  %v1502 = vtanh.pop %v1406
  %v1503 = vtanh.pop %v1411
  %v1504 = vtanh.pop %v1414
  %v1505 = vtanh.pop %v1419
  %v1506 = vtanh.pop %v1422
  %v1507 = vtanh.pop %v1427
  %v1508 = vtanh.pop %v1430
  %v1509 = vtanh.pop %v1435
  %v1510 = vtanh.pop %v1438
  %v1511 = vtanh.pop %v1443
  %v1512 = vtanh.pop %v1446
  %1513 = vst [vmem:[%s3] sm:$0xff] %v1449
  %1514 = vst [vmem:[%s3 + $0x8] sm:$0xff] %v1450
  %1515 = vst [vmem:[%s3 + $0x10] sm:$0xff] %v1451
  %1516 = vst [vmem:[%s3 + $0x18] sm:$0xff] %v1452
  %1517 = vst [vmem:[%s3 + $0x20] sm:$0xff] %v1453
  %1518 = vst [vmem:[%s3 + $0x28] sm:$0xff] %v1454
  %1519 = vst [vmem:[%s3 + $0x30] sm:$0xff] %v1455
  %1520 = vst [vmem:[%s3 + $0x38] sm:$0xff] %v1456
  %1521 = vst [vmem:[%s3 + $0x40] sm:$0xff] %v1457
  %1522 = vst [vmem:[%s3 + $0x48] sm:$0xff] %v1458
  %1523 = vst [vmem:[%s3 + $0x50] sm:$0xff] %v1459
  %1524 = vst [vmem:[%s3 + $0x58] sm:$0xff] %v1460
  %1525 = vst [vmem:[%s3 + $0x60] sm:$0xff] %v1461
  %1526 = vst [vmem:[%s3 + $0x68] sm:$0xff] %v1462
  %1527 = vst [vmem:[%s3 + $0x70] sm:$0xff] %v1463
  %1528 = vst [vmem:[%s3 + $0x78] sm:$0xff] %v1464
  %1529 = vst [vmem:[%s3 + $0x80] sm:$0xff] %v1465
  %1530 = vst [vmem:[%s3 + $0x88] sm:$0xff] %v1466
  %1531 = vst [vmem:[%s3 + $0x90] sm:$0xff] %v1467
  %1532 = vst [vmem:[%s3 + $0x98] sm:$0xff] %v1468
  %1533 = vst [vmem:[%s3 + $0xa0] sm:$0xff] %v1469
  %1534 = vst [vmem:[%s3 + $0xa8] sm:$0xff] %v1470
  %1535 = vst [vmem:[%s3 + $0xb0] sm:$0xff] %v1471
  %1536 = vst [vmem:[%s3 + $0xb8] sm:$0xff] %v1472
  %1537 = vst [vmem:[%s3 + $0xc0] sm:$0xff] %v1473
  %1538 = vst [vmem:[%s3 + $0xc8] sm:$0xff] %v1474
  %1539 = vst [vmem:[%s3 + $0xd0] sm:$0xff] %v1475
  %1540 = vst [vmem:[%s3 + $0xd8] sm:$0xff] %v1476
  %1541 = vst [vmem:[%s3 + $0xe0] sm:$0xff] %v1477
  %1542 = vst [vmem:[%s3 + $0xe8] sm:$0xff] %v1478
  %1543 = vst [vmem:[%s3 + $0xf0] sm:$0xff] %v1479
  %1544 = vst [vmem:[%s3 + $0xf8] sm:$0xff] %v1480
  %1545 = vst [vmem:[%s3 + $0x100] sm:$0xff] %v1481
  %1546 = vst [vmem:[%s3 + $0x108] sm:$0xff] %v1482
  %1547 = vst [vmem:[%s3 + $0x110] sm:$0xff] %v1483
  %1548 = vst [vmem:[%s3 + $0x118] sm:$0xff] %v1484
  %1549 = vst [vmem:[%s3 + $0x120] sm:$0xff] %v1485
  %1550 = vst [vmem:[%s3 + $0x128] sm:$0xff] %v1486
  %1551 = vst [vmem:[%s3 + $0x130] sm:$0xff] %v1487
  %1552 = vst [vmem:[%s3 + $0x138] sm:$0xff] %v1488
  %1553 = vst [vmem:[%s3 + $0x140] sm:$0xff] %v1489
  %1554 = vst [vmem:[%s3 + $0x148] sm:$0xff] %v1490
  %1555 = vst [vmem:[%s3 + $0x150] sm:$0xff] %v1491
  %1556 = vst [vmem:[%s3 + $0x158] sm:$0xff] %v1492
  %1557 = vst [vmem:[%s3 + $0x160] sm:$0xff] %v1493
  %1558 = vst [vmem:[%s3 + $0x168] sm:$0xff] %v1494
  %1559 = vst [vmem:[%s3 + $0x170] sm:$0xff] %v1495
  %1560 = vst [vmem:[%s3 + $0x178] sm:$0xff] %v1496
  %1561 = vst [vmem:[%s3 + $0x180] sm:$0xff] %v1497
  %1562 = vst [vmem:[%s3 + $0x188] sm:$0xff] %v1498
  %1563 = vst [vmem:[%s3 + $0x190] sm:$0xff] %v1499
  %1564 = vst [vmem:[%s3 + $0x198] sm:$0xff] %v1500
  %1565 = vst [vmem:[%s3 + $0x1a0] sm:$0xff] %v1501
  %1566 = vst [vmem:[%s3 + $0x1a8] sm:$0xff] %v1502
  %1567 = vst [vmem:[%s3 + $0x1b0] sm:$0xff] %v1503
  %1568 = vst [vmem:[%s3 + $0x1b8] sm:$0xff] %v1504
  %1569 = vst [vmem:[%s3 + $0x1c0] sm:$0xff] %v1505
  %1570 = vst [vmem:[%s3 + $0x1c8] sm:$0xff] %v1506
  %1571 = vst [vmem:[%s3 + $0x1d0] sm:$0xff] %v1507
  %1572 = vst [vmem:[%s3 + $0x1d8] sm:$0xff] %v1508
  %1573 = vst [vmem:[%s3 + $0x1e0] sm:$0xff] %v1509
  %1574 = vst [vmem:[%s3 + $0x1e8] sm:$0xff] %v1510
  %1575 = vst [vmem:[%s3 + $0x1f0] sm:$0xff] %v1511
  %1576 = vst [vmem:[%s3 + $0x1f8] sm:$0xff] %v1512
  // Predicated region
  $region14: #{vqvae_forward.23} parent=0 // pred_check
    _
  $region15: #{vqvae_forward.23} parent=0 // pred_check_branch
    %1578 = sbr.rel (0) target = $region17
  $region16: #{vqvae_forward.23} parent=0 // pred_region
    _
  $region17: #{vqvae_forward.23} parent=0 // pred_fallthru
    _
  // Predicated region
  $region18: #{vqvae_forward.23} parent=0 // pred_check
    _
  $region19: #{vqvae_forward.23} parent=0 // pred_check_branch
    %1580 = sbr.rel (0) target = $region21
  $region20: #{vqvae_forward.23} parent=0 // pred_region
    _
  $region21: #{vqvae_forward.23} parent=0 // pred_fallthru
    _

</llo_original>
